<compile_context>
chip_gen: v5e
topology: v5e:2x2
jax: 0.10.0
libtpu: 0.0.40
codegen_flags: <defaults>
</compile_context>

<pallas_src>
import jax
import jax.numpy as jnp
from jax.experimental import pallas as pl
from jax.experimental.pallas import tpu as pltpu

# ---------------- config (swinvit-style: embed_dim=4, depths=[2,2]) ----------------
B = 2
IN_CHANS = 1
H = W = D = 16
NUM_STAGES = 2
EMBED_DIM = 4
C_FEAT = EMBED_DIM * 2 ** NUM_STAGES            # 16  channels of last feature
FEAT = H // (2 ** (NUM_STAGES + 1))             # 2   spatial size of last feature
PATCH = H // FEAT                               # 8
NVOX = FEAT ** 3                                # 8   coarse voxels per sample
FLAT = C_FEAT * NVOX                            # 128 flattened feature per sample
PATCH_DIM = IN_CHANS * PATCH ** 3               # 512
CONTRAS_DIM = 32
NUM_ROT_CLS = 4
HEAD_PAD = 128                                  # lane-dense padded head output
DEC_CH = [C_FEAT, C_FEAT // 2, C_FEAT // 4, IN_CHANS]   # 16 -> 8 -> 4 -> 1
ALPHA_CONTRAS = ALPHA_ROT = ALPHA_RECON = 1.0
TEMPERATURE = 0.5


# ====================== single fused Pallas kernel ======================
def _fused_ssl_kernel(patches_ref, pflat_ref, target_ref,
                      fw_ref, fb_ref, fwbd_ref, fbbd_ref,
                      bnw_ref, bnb_ref, hw_ref, hb_ref,
                      w0_ref, b0_ref, w1_ref, b1_ref, w2_ref, b2_ref,
                      heads_ref, sse_ref):
    # ---- per-voxel encoder features (SwinViT last-stage stand-in), decoder branch ----
    feat = jnp.dot(patches_ref[...].astype(jnp.bfloat16), fw_ref[...],
                   preferred_element_type=jnp.float32) + fb_ref[...]          # [32,16] f32

    # ---- contrastive + rotation branch (per-sample flattened features) ----
    # Block-diagonal copy of the same patch embedding gives flat = [2B, FLAT]
    # directly, with no in-kernel relayout of `feat`.
    flat = jnp.dot(pflat_ref[...].astype(jnp.bfloat16), fwbd_ref[...],
                   preferred_element_type=jnp.float32) + fbbd_ref[...]        # [4,128] f32
    bn = jnp.dot(flat.astype(jnp.bfloat16), bnw_ref[...],
                 preferred_element_type=jnp.float32) + bnb_ref[...]           # [4,32]  f32
    heads_ref[...] = jnp.dot(bn.astype(jnp.bfloat16), hw_ref[...],
                             preferred_element_type=jnp.float32) + hb_ref[...]  # [4,128]

    # ---- reconstruction branch: 3x stride-2 ConvTranspose3d as per-voxel matmuls ----
    x = jnp.dot(feat.astype(jnp.bfloat16), w0_ref[...],
                preferred_element_type=jnp.float32) + b0_ref[...]             # [32,64]
    x = jnp.maximum(x, 0.0)
    x = jnp.dot(x.astype(jnp.bfloat16), w1_ref[...],
                preferred_element_type=jnp.float32) + b1_ref[...]             # [32,256]
    x = jnp.maximum(x, 0.0)
    x = jnp.dot(x.astype(jnp.bfloat16), w2_ref[...],
                preferred_element_type=jnp.float32) + b2_ref[...]             # [32,512]
    d = x - target_ref[...]                                                   # f32 MSE diff
    sse_ref[...] = jnp.broadcast_to(jnp.sum(d * d), (1, 128))


def fused_ssl(patches, patches_flat, target, params):
    """patches [2B*NVOX, PATCH_DIM], patches_flat [2B, NVOX*PATCH_DIM], target [2B*NVOX, PATCH^3]
       -> heads [2B, 128] (cols 0:32 contras embed, 32:36 rot logits), sse [1,128] (broadcast scalar)."""
    n_samp = patches_flat.shape[0]
    args = (patches, patches_flat, target,
            params["feat_w"], params["feat_b"],
            params["feat_w_bd"], params["feat_b_bd"],
            params["bn_w"], params["bn_b"],
            params["head_w"], params["head_b"],
            params["deconv_w0"], params["deconv_b0"],
            params["deconv_w1_bd"], params["deconv_b1_bd"],
            params["deconv_w2_bd"], params["deconv_b2_bd"])
    return pl.pallas_call(
        _fused_ssl_kernel,
        out_shape=(jax.ShapeDtypeStruct((n_samp, HEAD_PAD), jnp.float32),
                   jax.ShapeDtypeStruct((1, 128), jnp.float32)),
        grid=(1,),
        in_specs=[pl.BlockSpec(a.shape, lambda i: (0, 0)) for a in args],
        out_specs=(pl.BlockSpec((n_samp, HEAD_PAD), lambda i: (0, 0)),
                   pl.BlockSpec((1, 128), lambda i: (0, 0))),
        compiler_params=pltpu.CompilerParams(dimension_semantics=("arbitrary",)),
    )(*args)


# ---------------- augmentation (RNG driven; plain jax, not Pallas) ----------------
def _rot_single(x, k):
    return jax.lax.switch(
        k,
        [lambda v: v,
         lambda v: jnp.rot90(v, 1, axes=(1, 2)),
         lambda v: jnp.rot90(v, 2, axes=(1, 2)),
         lambda v: jnp.rot90(v, 3, axes=(1, 2))],
        x)


def rot_rand(x, key):
    ks = jax.random.randint(key, (x.shape[0],), 0, 4)
    return jax.vmap(_rot_single)(x, ks), ks


def aug_rand(x, key):
    bsz, _, hh, ww, dd = x.shape
    cs = hh // 4
    k0, k1, k2 = jax.random.split(key, 3)
    h0 = jax.random.randint(k0, (bsz,), 0, hh - cs)
    w0 = jax.random.randint(k1, (bsz,), 0, ww - cs)
    d0 = jax.random.randint(k2, (bsz,), 0, dd - cs)
    hi = jnp.arange(hh)[None, :, None, None]
    wi = jnp.arange(ww)[None, None, :, None]
    di = jnp.arange(dd)[None, None, None, :]
    cut = (
        (hi >= h0[:, None, None, None]) & (hi < (h0 + cs)[:, None, None, None])
        & (wi >= w0[:, None, None, None]) & (wi < (w0 + cs)[:, None, None, None])
        & (di >= d0[:, None, None, None]) & (di < (d0 + cs)[:, None, None, None])
    )
    return x * (1.0 - cut[:, None, :, :, :].astype(x.dtype))


# ---------------- losses (tiny tensors; plain jnp) ----------------
def contrastive_loss(z1, z2, temperature=TEMPERATURE):
    bsz = z1.shape[0]
    z = jnp.concatenate([z1, z2], axis=0)
    z = z / (jnp.linalg.norm(z, axis=1, keepdims=True) + 1e-8)
    sim = (z @ z.T) / temperature
    sim = jnp.where(jnp.eye(2 * bsz, dtype=bool), -1e9, sim)
    pos_idx = jnp.concatenate([jnp.arange(bsz) + bsz, jnp.arange(bsz)])
    pos = sim[jnp.arange(2 * bsz), pos_idx]
    return jnp.mean(jax.nn.logsumexp(sim, axis=1) - pos)


def cross_entropy_loss(logits, targets):
    logp = jax.nn.log_softmax(logits, axis=-1)
    picked = jnp.take_along_axis(logp, targets[:, None].astype(jnp.int32), axis=1)
    return -jnp.mean(picked)


# ---------------- parameters (deterministic synthetic init) ----------------
def init_params(key):
    ks = jax.random.split(key, 8)

    def lin(k, fan_in, shape):
        return jax.random.normal(k, shape, jnp.float32) / jnp.sqrt(jnp.float32(fan_in))

    p = {}
    # patch-embedding stand-in for the SwinViT last stage (MXU weights stored bf16)
    feat_w = lin(ks[0], PATCH_DIM, (PATCH_DIM, C_FEAT))                      # [512,16]
    p["feat_w"] = feat_w.astype(jnp.bfloat16)
    p["feat_b"] = jnp.zeros((1, C_FEAT), jnp.float32)
    # block-diagonal copy for the per-sample flattened layout (bottleneck branch)
    p["feat_w_bd"] = jnp.kron(jnp.eye(NVOX, dtype=jnp.float32),
                              feat_w).astype(jnp.bfloat16)                   # [4096,128]
    p["feat_b_bd"] = jnp.zeros((1, FLAT), jnp.float32)

    # contras + rot bottlenecks fused along N (flattened per-sample feature layout)
    contras_bn_w = lin(ks[1], FLAT, (FLAT, C_FEAT))
    rot_bn_w = lin(ks[2], FLAT, (FLAT, C_FEAT))
    p["bn_w"] = jnp.concatenate([contras_bn_w, rot_bn_w], axis=1).astype(jnp.bfloat16)  # [128,32]
    p["bn_b"] = jnp.zeros((1, 2 * C_FEAT), jnp.float32)

    # block-diagonal fused heads, padded to a lane-dense 128-wide output
    contras_head_w = lin(ks[3], C_FEAT, (C_FEAT, CONTRAS_DIM))
    rot_head_w = lin(ks[4], C_FEAT, (C_FEAT, NUM_ROT_CLS))
    head_w = jnp.zeros((2 * C_FEAT, HEAD_PAD), jnp.float32)
    head_w = head_w.at[:C_FEAT, :CONTRAS_DIM].set(contras_head_w)
    head_w = head_w.at[C_FEAT:, CONTRAS_DIM:CONTRAS_DIM + NUM_ROT_CLS].set(rot_head_w)
    p["head_w"] = head_w.astype(jnp.bfloat16)                                # [32,128]
    p["head_b"] = jnp.zeros((1, HEAD_PAD), jnp.float32)

    # deconv chain; per-voxel weight [cin, 8*cout] with columns (subvoxel, cout);
    # later layers block-diagonal over already-emitted sub-voxels (no relayouts).
    w0 = lin(ks[5], DEC_CH[0], (DEC_CH[0], 8 * DEC_CH[1]))                   # [16,64]
    w1 = lin(ks[6], DEC_CH[1], (DEC_CH[1], 8 * DEC_CH[2]))                   # [8,32]
    w2 = lin(ks[7], DEC_CH[2], (DEC_CH[2], 8 * DEC_CH[3]))                   # [4,8]
    p["deconv_w0"] = w0.astype(jnp.bfloat16)
    p["deconv_b0"] = jnp.zeros((1, 8 * DEC_CH[1]), jnp.float32)
    p["deconv_w1_bd"] = jnp.kron(jnp.eye(8, dtype=jnp.float32), w1).astype(jnp.bfloat16)   # [64,256]
    p["deconv_b1_bd"] = jnp.zeros((1, 64 * DEC_CH[2]), jnp.float32)
    p["deconv_w2_bd"] = jnp.kron(jnp.eye(64, dtype=jnp.float32), w2).astype(jnp.bfloat16)  # [256,512]
    p["deconv_b2_bd"] = jnp.zeros((1, 512 * DEC_CH[3]), jnp.float32)
    return p


# ---------------- forward (mirrors VisionSSL.forward) ----------------
def vision_ssl_forward(params, x, key):
    k1, k2, k3, k4 = jax.random.split(key, 4)

    # augment_data
    x1, rot1 = rot_rand(x, k1)
    x2, rot2 = rot_rand(x, k2)
    x1_aug = aug_rand(x1, k3)
    x2_aug = aug_rand(x2, k4)
    target_rot = jnp.concatenate([rot1, rot2], axis=0)                       # [2B]
    x_aug = jnp.concatenate([x1_aug, x2_aug], axis=0)                        # [2B,1,H,W,D]
    target_recon = jnp.concatenate([x1, x2], axis=0)                         # [2B,1,H,W,D]
    n_samp = 2 * B

    # patch rows, sample-major (row = sample*NVOX + coarse voxel)
    patches = x_aug.reshape(n_samp, IN_CHANS, FEAT, PATCH, FEAT, PATCH, FEAT, PATCH)
    patches = patches.transpose(0, 2, 4, 6, 1, 3, 5, 7)
    patches = patches.reshape(n_samp * NVOX, PATCH_DIM)                      # [32,512]
    patches_flat = patches.reshape(n_samp, NVOX * PATCH_DIM)                 # [4,4096] (free reshape)

    # recon target permuted into the decoder's (coarse voxel, hierarchical sub-voxel)
    # order — MSE is permutation-invariant, so loss_recon equals the NCDHW comparison.
    t = target_recon.reshape(n_samp, H, W, D)                                # in_chans == 1
    t = t.reshape(n_samp, FEAT, 2, 2, 2, FEAT, 2, 2, 2, FEAT, 2, 2, 2)
    t = t.transpose(0, 1, 5, 9, 2, 6, 10, 3, 7, 11, 4, 8, 12)
    t = t.reshape(n_samp * NVOX, PATCH ** 3)                                 # [32,512]

    # ---- single fused Pallas kernel ----
    heads, sse = fused_ssl(patches, patches_flat, t, params)                 # [4,128], [1,128]
    z1 = heads[:B, :CONTRAS_DIM]
    z2 = heads[B:n_samp, :CONTRAS_DIM]
    logits_rot = heads[:, CONTRAS_DIM:CONTRAS_DIM + NUM_ROT_CLS]
    loss_recon = sse[0, 0] / jnp.float32(target_recon.size)

    # losses
    loss_contras = contrastive_loss(z1, z2)
    loss_rot = cross_entropy_loss(logits_rot, target_rot)
    loss = (ALPHA_CONTRAS * loss_contras
            + ALPHA_ROT * loss_rot
            + ALPHA_RECON * loss_recon)
    return {"loss": loss, "loss_contras": loss_contras,
            "loss_rot": loss_rot, "loss_recon": loss_recon}


if __name__ == "__main__":
    key = jax.random.PRNGKey(0)
    k_data, k_param, k_aug = jax.random.split(key, 3)
    x = jax.random.normal(k_data, (B, IN_CHANS, H, W, D), jnp.float32)
    params = init_params(k_param)
    out = jax.jit(vision_ssl_forward)(params, x, k_aug)
    out = jax.block_until_ready(out)
    assert jnp.isfinite(out["loss"]).item()
    print("KERNEL_OK")
</pallas_src>

<mosaic_0001>
module attributes {stable_mosaic.version = 11 : i64} {
  func.func @_fused_ssl_kernel(%arg0: i32, %arg1: memref<32x512xf32, #tpu.memory_space<vmem>>, %arg2: memref<4x4096xf32, #tpu.memory_space<vmem>>, %arg3: memref<32x512xf32, #tpu.memory_space<vmem>>, %arg4: memref<512x16xbf16, #tpu.memory_space<vmem>>, %arg5: memref<1x16xf32, #tpu.memory_space<vmem>>, %arg6: memref<4096x128xbf16, #tpu.memory_space<vmem>>, %arg7: memref<1x128xf32, #tpu.memory_space<vmem>>, %arg8: memref<128x32xbf16, #tpu.memory_space<vmem>>, %arg9: memref<1x32xf32, #tpu.memory_space<vmem>>, %arg10: memref<32x128xbf16, #tpu.memory_space<vmem>>, %arg11: memref<1x128xf32, #tpu.memory_space<vmem>>, %arg12: memref<16x64xbf16, #tpu.memory_space<vmem>>, %arg13: memref<1x64xf32, #tpu.memory_space<vmem>>, %arg14: memref<64x256xbf16, #tpu.memory_space<vmem>>, %arg15: memref<1x256xf32, #tpu.memory_space<vmem>>, %arg16: memref<256x512xbf16, #tpu.memory_space<vmem>>, %arg17: memref<1x512xf32, #tpu.memory_space<vmem>>, %arg18: memref<4x128xf32, #tpu.memory_space<vmem>>, %arg19: memref<1x128xf32, #tpu.memory_space<vmem>>) attributes {dimension_semantics = [#tpu.dimension_semantics<arbitrary>], iteration_bounds = array<i64: 1>, scalar_prefetch = 0 : i64, scratch_operands = 0 : i64, tpu.core_type = #tpu.core_type<tc>, window_params = [{pipeline_mode = #tpu.pipeline_mode<synchronous>, transform_indices = @transform_0, window_bounds = array<i64: 32, 512>}, {pipeline_mode = #tpu.pipeline_mode<synchronous>, transform_indices = @transform_1, window_bounds = array<i64: 4, 4096>}, {pipeline_mode = #tpu.pipeline_mode<synchronous>, transform_indices = @transform_2, window_bounds = array<i64: 32, 512>}, {pipeline_mode = #tpu.pipeline_mode<synchronous>, transform_indices = @transform_3, window_bounds = array<i64: 512, 16>}, {pipeline_mode = #tpu.pipeline_mode<synchronous>, transform_indices = @transform_4, window_bounds = array<i64: 1, 16>}, {pipeline_mode = #tpu.pipeline_mode<synchronous>, transform_indices = @transform_5, window_bounds = array<i64: 4096, 128>}, {pipeline_mode = #tpu.pipeline_mode<synchronous>, transform_indices = @transform_6, window_bounds = array<i64: 1, 128>}, {pipeline_mode = #tpu.pipeline_mode<synchronous>, transform_indices = @transform_7, window_bounds = array<i64: 128, 32>}, {pipeline_mode = #tpu.pipeline_mode<synchronous>, transform_indices = @transform_8, window_bounds = array<i64: 1, 32>}, {pipeline_mode = #tpu.pipeline_mode<synchronous>, transform_indices = @transform_9, window_bounds = array<i64: 32, 128>}, {pipeline_mode = #tpu.pipeline_mode<synchronous>, transform_indices = @transform_10, window_bounds = array<i64: 1, 128>}, {pipeline_mode = #tpu.pipeline_mode<synchronous>, transform_indices = @transform_11, window_bounds = array<i64: 16, 64>}, {pipeline_mode = #tpu.pipeline_mode<synchronous>, transform_indices = @transform_12, window_bounds = array<i64: 1, 64>}, {pipeline_mode = #tpu.pipeline_mode<synchronous>, transform_indices = @transform_13, window_bounds = array<i64: 64, 256>}, {pipeline_mode = #tpu.pipeline_mode<synchronous>, transform_indices = @transform_14, window_bounds = array<i64: 1, 256>}, {pipeline_mode = #tpu.pipeline_mode<synchronous>, transform_indices = @transform_15, window_bounds = array<i64: 256, 512>}, {pipeline_mode = #tpu.pipeline_mode<synchronous>, transform_indices = @transform_16, window_bounds = array<i64: 1, 512>}, {pipeline_mode = #tpu.pipeline_mode<synchronous>, transform_indices = @transform_17, window_bounds = array<i64: 4, 128>}, {pipeline_mode = #tpu.pipeline_mode<synchronous>, transform_indices = @transform_18, window_bounds = array<i64: 1, 128>}]} {
    %c0 = arith.constant 0 : index
    %c0_0 = arith.constant 0 : index
    %0 = vector.load %arg1[%c0, %c0_0] : memref<32x512xf32, #tpu.memory_space<vmem>>, vector<32x512xf32>
    %1 = arith.truncf %0 : vector<32x512xf32> to vector<32x512xbf16>
    %c0_1 = arith.constant 0 : index
    %c0_2 = arith.constant 0 : index
    %2 = vector.load %arg4[%c0_1, %c0_2] : memref<512x16xbf16, #tpu.memory_space<vmem>>, vector<512x16xbf16>
    %cst = arith.constant dense<0.000000e+00> : vector<32x16xf32>
    %3 = tpu.matmul %1, %2, %cst {dimension_numbers = #tpu.dot_dimension_numbers<[1], [0], [0], [1], [0, 0, 1, 1], [], []>} : vector<32x512xbf16>, vector<512x16xbf16>, vector<32x16xf32> -> vector<32x16xf32>
    %c0_3 = arith.constant 0 : index
    %c0_4 = arith.constant 0 : index
    %4 = vector.load %arg5[%c0_3, %c0_4] : memref<1x16xf32, #tpu.memory_space<vmem>>, vector<1x16xf32>
    %5 = vector.broadcast %4 : vector<1x16xf32> to vector<32x16xf32>
    %6 = arith.addf %3, %5 : vector<32x16xf32>
    %c0_5 = arith.constant 0 : index
    %c0_6 = arith.constant 0 : index
    %7 = vector.load %arg2[%c0_5, %c0_6] : memref<4x4096xf32, #tpu.memory_space<vmem>>, vector<4x4096xf32>
    %8 = arith.truncf %7 : vector<4x4096xf32> to vector<4x4096xbf16>
    %c0_7 = arith.constant 0 : index
    %c0_8 = arith.constant 0 : index
    %9 = vector.load %arg6[%c0_7, %c0_8] : memref<4096x128xbf16, #tpu.memory_space<vmem>>, vector<4096x128xbf16>
    %cst_9 = arith.constant dense<0.000000e+00> : vector<4x128xf32>
    %10 = tpu.matmul %8, %9, %cst_9 {dimension_numbers = #tpu.dot_dimension_numbers<[1], [0], [0], [1], [0, 0, 1, 1], [], []>} : vector<4x4096xbf16>, vector<4096x128xbf16>, vector<4x128xf32> -> vector<4x128xf32>
    %c0_10 = arith.constant 0 : index
    %c0_11 = arith.constant 0 : index
    %11 = vector.load %arg7[%c0_10, %c0_11] : memref<1x128xf32, #tpu.memory_space<vmem>>, vector<1x128xf32>
    %12 = vector.broadcast %11 : vector<1x128xf32> to vector<4x128xf32>
    %13 = arith.addf %10, %12 : vector<4x128xf32>
    %14 = arith.truncf %13 : vector<4x128xf32> to vector<4x128xbf16>
    %c0_12 = arith.constant 0 : index
    %c0_13 = arith.constant 0 : index
    %15 = vector.load %arg8[%c0_12, %c0_13] : memref<128x32xbf16, #tpu.memory_space<vmem>>, vector<128x32xbf16>
    %cst_14 = arith.constant dense<0.000000e+00> : vector<4x32xf32>
    %16 = tpu.matmul %14, %15, %cst_14 {dimension_numbers = #tpu.dot_dimension_numbers<[1], [0], [0], [1], [0, 0, 1, 1], [], []>} : vector<4x128xbf16>, vector<128x32xbf16>, vector<4x32xf32> -> vector<4x32xf32>
    %c0_15 = arith.constant 0 : index
    %c0_16 = arith.constant 0 : index
    %17 = vector.load %arg9[%c0_15, %c0_16] : memref<1x32xf32, #tpu.memory_space<vmem>>, vector<1x32xf32>
    %18 = vector.broadcast %17 : vector<1x32xf32> to vector<4x32xf32>
    %19 = arith.addf %16, %18 : vector<4x32xf32>
    %20 = arith.truncf %19 : vector<4x32xf32> to vector<4x32xbf16>
    %c0_17 = arith.constant 0 : index
    %c0_18 = arith.constant 0 : index
    %21 = vector.load %arg10[%c0_17, %c0_18] : memref<32x128xbf16, #tpu.memory_space<vmem>>, vector<32x128xbf16>
    %cst_19 = arith.constant dense<0.000000e+00> : vector<4x128xf32>
    %22 = tpu.matmul %20, %21, %cst_19 {dimension_numbers = #tpu.dot_dimension_numbers<[1], [0], [0], [1], [0, 0, 1, 1], [], []>} : vector<4x32xbf16>, vector<32x128xbf16>, vector<4x128xf32> -> vector<4x128xf32>
    %c0_20 = arith.constant 0 : index
    %c0_21 = arith.constant 0 : index
    %23 = vector.load %arg11[%c0_20, %c0_21] : memref<1x128xf32, #tpu.memory_space<vmem>>, vector<1x128xf32>
    %24 = vector.broadcast %23 : vector<1x128xf32> to vector<4x128xf32>
    %25 = arith.addf %22, %24 : vector<4x128xf32>
    %c0_22 = arith.constant 0 : index
    %c0_23 = arith.constant 0 : index
    %26 = vector.load %arg18[%c0_22, %c0_23] : memref<4x128xf32, #tpu.memory_space<vmem>>, vector<4x128xf32>
    tpu.vector_store %arg18[%c0_22, %c0_23], %25 {strides = array<i32>} : memref<4x128xf32, #tpu.memory_space<vmem>>, vector<4x128xf32>,
    %27 = arith.truncf %6 : vector<32x16xf32> to vector<32x16xbf16>
    %c0_24 = arith.constant 0 : index
    %c0_25 = arith.constant 0 : index
    %28 = vector.load %arg12[%c0_24, %c0_25] : memref<16x64xbf16, #tpu.memory_space<vmem>>, vector<16x64xbf16>
    %cst_26 = arith.constant dense<0.000000e+00> : vector<32x64xf32>
    %29 = tpu.matmul %27, %28, %cst_26 {dimension_numbers = #tpu.dot_dimension_numbers<[1], [0], [0], [1], [0, 0, 1, 1], [], []>} : vector<32x16xbf16>, vector<16x64xbf16>, vector<32x64xf32> -> vector<32x64xf32>
    %c0_27 = arith.constant 0 : index
    %c0_28 = arith.constant 0 : index
    %30 = vector.load %arg13[%c0_27, %c0_28] : memref<1x64xf32, #tpu.memory_space<vmem>>, vector<1x64xf32>
    %31 = vector.broadcast %30 : vector<1x64xf32> to vector<32x64xf32>
    %32 = arith.addf %29, %31 : vector<32x64xf32>
    %cst_29 = arith.constant 0.000000e+00 : f32
    %33 = vector.broadcast %cst_29 : f32 to vector<32x64xf32>
    %34 = arith.maximumf %32, %33 : vector<32x64xf32>
    %35 = arith.truncf %34 : vector<32x64xf32> to vector<32x64xbf16>
    %c0_30 = arith.constant 0 : index
    %c0_31 = arith.constant 0 : index
    %36 = vector.load %arg14[%c0_30, %c0_31] : memref<64x256xbf16, #tpu.memory_space<vmem>>, vector<64x256xbf16>
    %cst_32 = arith.constant dense<0.000000e+00> : vector<32x256xf32>
    %37 = tpu.matmul %35, %36, %cst_32 {dimension_numbers = #tpu.dot_dimension_numbers<[1], [0], [0], [1], [0, 0, 1, 1], [], []>} : vector<32x64xbf16>, vector<64x256xbf16>, vector<32x256xf32> -> vector<32x256xf32>
    %c0_33 = arith.constant 0 : index
    %c0_34 = arith.constant 0 : index
    %38 = vector.load %arg15[%c0_33, %c0_34] : memref<1x256xf32, #tpu.memory_space<vmem>>, vector<1x256xf32>
    %39 = vector.broadcast %38 : vector<1x256xf32> to vector<32x256xf32>
    %40 = arith.addf %37, %39 : vector<32x256xf32>
    %cst_35 = arith.constant 0.000000e+00 : f32
    %41 = vector.broadcast %cst_35 : f32 to vector<32x256xf32>
    %42 = arith.maximumf %40, %41 : vector<32x256xf32>
    %43 = arith.truncf %42 : vector<32x256xf32> to vector<32x256xbf16>
    %c0_36 = arith.constant 0 : index
    %c0_37 = arith.constant 0 : index
    %44 = vector.load %arg16[%c0_36, %c0_37] : memref<256x512xbf16, #tpu.memory_space<vmem>>, vector<256x512xbf16>
    %cst_38 = arith.constant dense<0.000000e+00> : vector<32x512xf32>
    %45 = tpu.matmul %43, %44, %cst_38 {dimension_numbers = #tpu.dot_dimension_numbers<[1], [0], [0], [1], [0, 0, 1, 1], [], []>} : vector<32x256xbf16>, vector<256x512xbf16>, vector<32x512xf32> -> vector<32x512xf32>
    %c0_39 = arith.constant 0 : index
    %c0_40 = arith.constant 0 : index
    %46 = vector.load %arg17[%c0_39, %c0_40] : memref<1x512xf32, #tpu.memory_space<vmem>>, vector<1x512xf32>
    %47 = vector.broadcast %46 : vector<1x512xf32> to vector<32x512xf32>
    %48 = arith.addf %45, %47 : vector<32x512xf32>
    %c0_41 = arith.constant 0 : index
    %c0_42 = arith.constant 0 : index
    %49 = vector.load %arg3[%c0_41, %c0_42] : memref<32x512xf32, #tpu.memory_space<vmem>>, vector<32x512xf32>
    %50 = arith.subf %48, %49 : vector<32x512xf32>
    %51 = arith.mulf %50, %50 : vector<32x512xf32>
    %52 = vector.shape_cast %51 : vector<32x512xf32> to vector<1x32x512xf32>
    %cst_43 = arith.constant dense<0.000000e+00> : vector<1xf32>
    %53 = vector.multi_reduction <add>, %52, %cst_43 [1, 2] : vector<1x32x512xf32> to vector<1xf32>
    %54 = vector.shape_cast %53 : vector<1xf32> to vector<1x1x1xf32>
    %55 = vector.extract %54[0, 0, 0] : f32 from vector<1x1x1xf32>
    %56 = vector.broadcast %55 : f32 to vector<1x128xf32>
    %c0_44 = arith.constant 0 : index
    %c0_45 = arith.constant 0 : index
    %57 = vector.load %arg19[%c0_44, %c0_45] : memref<1x128xf32, #tpu.memory_space<vmem>>, vector<1x128xf32>
    tpu.vector_store %arg19[%c0_44, %c0_45], %56 {strides = array<i32>} : memref<1x128xf32, #tpu.memory_space<vmem>>, vector<1x128xf32>,
    return
  }
  func.func @transform_0(%arg0: i32) -> (i32, i32) {
    %c0_i32 = arith.constant 0 : i32
    %c0_i32_0 = arith.constant 0 : i32
    %c0_i32_1 = arith.constant 0 : i32
    return %c0_i32, %c0_i32_0 : i32, i32
  }
  func.func @transform_1(%arg0: i32) -> (i32, i32) {
    %c0_i32 = arith.constant 0 : i32
    %c0_i32_0 = arith.constant 0 : i32
    %c0_i32_1 = arith.constant 0 : i32
    return %c0_i32, %c0_i32_0 : i32, i32
  }
  func.func @transform_2(%arg0: i32) -> (i32, i32) {
    %c0_i32 = arith.constant 0 : i32
    %c0_i32_0 = arith.constant 0 : i32
    %c0_i32_1 = arith.constant 0 : i32
    return %c0_i32, %c0_i32_0 : i32, i32
  }
  func.func @transform_3(%arg0: i32) -> (i32, i32) {
    %c0_i32 = arith.constant 0 : i32
    %c0_i32_0 = arith.constant 0 : i32
    %c0_i32_1 = arith.constant 0 : i32
    return %c0_i32, %c0_i32_0 : i32, i32
  }
  func.func @transform_4(%arg0: i32) -> (i32, i32) {
    %c0_i32 = arith.constant 0 : i32
    %c0_i32_0 = arith.constant 0 : i32
    %c0_i32_1 = arith.constant 0 : i32
    return %c0_i32, %c0_i32_0 : i32, i32
  }
  func.func @transform_5(%arg0: i32) -> (i32, i32) {
    %c0_i32 = arith.constant 0 : i32
    %c0_i32_0 = arith.constant 0 : i32
    %c0_i32_1 = arith.constant 0 : i32
    return %c0_i32, %c0_i32_0 : i32, i32
  }
  func.func @transform_6(%arg0: i32) -> (i32, i32) {
    %c0_i32 = arith.constant 0 : i32
    %c0_i32_0 = arith.constant 0 : i32
    %c0_i32_1 = arith.constant 0 : i32
    return %c0_i32, %c0_i32_0 : i32, i32
  }
  func.func @transform_7(%arg0: i32) -> (i32, i32) {
    %c0_i32 = arith.constant 0 : i32
    %c0_i32_0 = arith.constant 0 : i32
    %c0_i32_1 = arith.constant 0 : i32
    return %c0_i32, %c0_i32_0 : i32, i32
  }
  func.func @transform_8(%arg0: i32) -> (i32, i32) {
    %c0_i32 = arith.constant 0 : i32
    %c0_i32_0 = arith.constant 0 : i32
    %c0_i32_1 = arith.constant 0 : i32
    return %c0_i32, %c0_i32_0 : i32, i32
  }
  func.func @transform_9(%arg0: i32) -> (i32, i32) {
    %c0_i32 = arith.constant 0 : i32
    %c0_i32_0 = arith.constant 0 : i32
    %c0_i32_1 = arith.constant 0 : i32
    return %c0_i32, %c0_i32_0 : i32, i32
  }
  func.func @transform_10(%arg0: i32) -> (i32, i32) {
    %c0_i32 = arith.constant 0 : i32
    %c0_i32_0 = arith.constant 0 : i32
    %c0_i32_1 = arith.constant 0 : i32
    return %c0_i32, %c0_i32_0 : i32, i32
  }
  func.func @transform_11(%arg0: i32) -> (i32, i32) {
    %c0_i32 = arith.constant 0 : i32
    %c0_i32_0 = arith.constant 0 : i32
    %c0_i32_1 = arith.constant 0 : i32
    return %c0_i32, %c0_i32_0 : i32, i32
  }
  func.func @transform_12(%arg0: i32) -> (i32, i32) {
    %c0_i32 = arith.constant 0 : i32
    %c0_i32_0 = arith.constant 0 : i32
    %c0_i32_1 = arith.constant 0 : i32
    return %c0_i32, %c0_i32_0 : i32, i32
  }
  func.func @transform_13(%arg0: i32) -> (i32, i32) {
    %c0_i32 = arith.constant 0 : i32
    %c0_i32_0 = arith.constant 0 : i32
    %c0_i32_1 = arith.constant 0 : i32
    return %c0_i32, %c0_i32_0 : i32, i32
  }
  func.func @transform_14(%arg0: i32) -> (i32, i32) {
    %c0_i32 = arith.constant 0 : i32
    %c0_i32_0 = arith.constant 0 : i32
    %c0_i32_1 = arith.constant 0 : i32
    return %c0_i32, %c0_i32_0 : i32, i32
  }
  func.func @transform_15(%arg0: i32) -> (i32, i32) {
    %c0_i32 = arith.constant 0 : i32
    %c0_i32_0 = arith.constant 0 : i32
    %c0_i32_1 = arith.constant 0 : i32
    return %c0_i32, %c0_i32_0 : i32, i32
  }
  func.func @transform_16(%arg0: i32) -> (i32, i32) {
    %c0_i32 = arith.constant 0 : i32
    %c0_i32_0 = arith.constant 0 : i32
    %c0_i32_1 = arith.constant 0 : i32
    return %c0_i32, %c0_i32_0 : i32, i32
  }
  func.func @transform_17(%arg0: i32) -> (i32, i32) {
    %c0_i32 = arith.constant 0 : i32
    %c0_i32_0 = arith.constant 0 : i32
    %c0_i32_1 = arith.constant 0 : i32
    return %c0_i32, %c0_i32_0 : i32, i32
  }
  func.func @transform_18(%arg0: i32) -> (i32, i32) {
    %c0_i32 = arith.constant 0 : i32
    %c0_i32_0 = arith.constant 0 : i32
    %c0_i32_1 = arith.constant 0 : i32
    return %c0_i32, %c0_i32_0 : i32, i32
  }
}

</mosaic_0001>

<llo_original>
// kernel: vision_ssl_forward.3
$region0: #{vision_ssl_forward.3}
  #allocation0 [shape = 'u32[]', space=smem, size = 0x4, offset = 0x4, fixed_abs, tag = 'smem constant byte address 0x4 - core index']
  #allocation1 [shape = 'u32[72,128]{1,0:T(1,128)}', space=vmem, size = 0x9000, scoped, tag = 'internal scratch']
  %s0 = inlined_call_operand.vmem [shape: f32[32,512], index: 0, kind: input, shape index: {}]
  %s1 = inlined_call_operand.vmem [shape: f32[4,4096], index: 1, kind: input, shape index: {}]
  %s2 = inlined_call_operand.vmem [shape: f32[32,512], index: 2, kind: input, shape index: {}]
  %s3 = inlined_call_operand.vmem [shape: bf16[512,16], index: 3, kind: input, shape index: {}]
  %s4 = inlined_call_operand.vmem [shape: f32[1,16], index: 4, kind: input, shape index: {}]
  %s5 = inlined_call_operand.vmem [shape: bf16[4096,128], index: 5, kind: input, shape index: {}]
  %s6 = inlined_call_operand.vmem [shape: f32[1,128], index: 6, kind: input, shape index: {}]
  %s7 = inlined_call_operand.vmem [shape: bf16[128,32], index: 7, kind: input, shape index: {}]
  %s8 = inlined_call_operand.vmem [shape: f32[1,32], index: 8, kind: input, shape index: {}]
  %s9 = inlined_call_operand.vmem [shape: bf16[32,128], index: 9, kind: input, shape index: {}]
  %s10 = inlined_call_operand.vmem [shape: f32[1,128], index: 10, kind: input, shape index: {}]
  %s11 = inlined_call_operand.vmem [shape: bf16[16,64], index: 11, kind: input, shape index: {}]
  %s12 = inlined_call_operand.vmem [shape: f32[1,64], index: 12, kind: input, shape index: {}]
  %s13 = inlined_call_operand.vmem [shape: bf16[64,256], index: 13, kind: input, shape index: {}]
  %s14 = inlined_call_operand.vmem [shape: f32[1,256], index: 14, kind: input, shape index: {}]
  %s15 = inlined_call_operand.vmem [shape: bf16[256,512], index: 15, kind: input, shape index: {}]
  %s16 = inlined_call_operand.vmem [shape: f32[1,512], index: 16, kind: input, shape index: {}]
  %s17 = inlined_call_operand.vmem [shape: f32[4,128], index: 17, kind: output, shape index: {0}]
  %s18 = inlined_call_operand.vmem [shape: f32[1,128], index: 18, kind: output, shape index: {1}]
  %19 = xla_tuple %s17, %s18
  %s20 = sld [smem:[#allocation0]]
  $region86: #{vision_ssl_forward.3} parent=0
    _
  %s22 = ssub.s32 1, %s20
  %s23 = scalar_select 0, %s22, %s20
  // Predicated region
  $region2: #{vision_ssl_forward.3} parent=0 // pred_check
    _
  $region3: #{vision_ssl_forward.3} parent=0 // pred_check_branch
    %25 = sbr.rel (0) target = $region5
  $region4: #{vision_ssl_forward.3} parent=0 // pred_region
    _
  $region5: #{vision_ssl_forward.3} parent=0 // pred_fallthru
    _
  // Predicated region
  $region6: #{vision_ssl_forward.3} parent=0 // pred_check
    _
  $region7: #{vision_ssl_forward.3} parent=0 // pred_check_branch
    %27 = sbr.rel (0) target = $region9
  $region8: #{vision_ssl_forward.3} parent=0 // pred_region
    _
  $region9: #{vision_ssl_forward.3} parent=0 // pred_fallthru
    _
  // Predicated region
  $region10: #{vision_ssl_forward.3} parent=0 // pred_check
    _
  $region11: #{vision_ssl_forward.3} parent=0 // pred_check_branch
    %29 = sbr.rel (0) target = $region13
  $region12: #{vision_ssl_forward.3} parent=0 // pred_region
    _
  $region13: #{vision_ssl_forward.3} parent=0 // pred_fallthru
    _
  // Predicated region
  $region14: #{vision_ssl_forward.3} parent=0 // pred_check
    _
  $region15: #{vision_ssl_forward.3} parent=0 // pred_check_branch
    %31 = sbr.rel (0) target = $region17
  $region16: #{vision_ssl_forward.3} parent=0 // pred_region
    _
  $region17: #{vision_ssl_forward.3} parent=0 // pred_fallthru
    _
  // Predicated region
  $region18: #{vision_ssl_forward.3} parent=0 // pred_check
    _
  $region19: #{vision_ssl_forward.3} parent=0 // pred_check_branch
    %33 = sbr.rel (0) target = $region21
  $region20: #{vision_ssl_forward.3} parent=0 // pred_region
    _
  $region21: #{vision_ssl_forward.3} parent=0 // pred_fallthru
    _
  // Predicated region
  $region22: #{vision_ssl_forward.3} parent=0 // pred_check
    _
  $region23: #{vision_ssl_forward.3} parent=0 // pred_check_branch
    %35 = sbr.rel (0) target = $region25
  $region24: #{vision_ssl_forward.3} parent=0 // pred_region
    _
  $region25: #{vision_ssl_forward.3} parent=0 // pred_fallthru
    _
  // Predicated region
  $region26: #{vision_ssl_forward.3} parent=0 // pred_check
    _
  $region27: #{vision_ssl_forward.3} parent=0 // pred_check_branch
    %37 = sbr.rel (0) target = $region29
  $region28: #{vision_ssl_forward.3} parent=0 // pred_region
    _
  $region29: #{vision_ssl_forward.3} parent=0 // pred_fallthru
    _
  // Predicated region
  $region30: #{vision_ssl_forward.3} parent=0 // pred_check
    _
  $region31: #{vision_ssl_forward.3} parent=0 // pred_check_branch
    %39 = sbr.rel (0) target = $region33
  $region32: #{vision_ssl_forward.3} parent=0 // pred_region
    _
  $region33: #{vision_ssl_forward.3} parent=0 // pred_fallthru
    _
  // Predicated region
  $region34: #{vision_ssl_forward.3} parent=0 // pred_check
    _
  $region35: #{vision_ssl_forward.3} parent=0 // pred_check_branch
    %41 = sbr.rel (0) target = $region37
  $region36: #{vision_ssl_forward.3} parent=0 // pred_region
    _
  $region37: #{vision_ssl_forward.3} parent=0 // pred_fallthru
    _
  // Predicated region
  $region38: #{vision_ssl_forward.3} parent=0 // pred_check
    _
  $region39: #{vision_ssl_forward.3} parent=0 // pred_check_branch
    %43 = sbr.rel (0) target = $region41
  $region40: #{vision_ssl_forward.3} parent=0 // pred_region
    _
  $region41: #{vision_ssl_forward.3} parent=0 // pred_fallthru
    _
  // Predicated region
  $region42: #{vision_ssl_forward.3} parent=0 // pred_check
    _
  $region43: #{vision_ssl_forward.3} parent=0 // pred_check_branch
    %45 = sbr.rel (0) target = $region45
  $region44: #{vision_ssl_forward.3} parent=0 // pred_region
    _
  $region45: #{vision_ssl_forward.3} parent=0 // pred_fallthru
    _
  // Predicated region
  $region46: #{vision_ssl_forward.3} parent=0 // pred_check
    _
  $region47: #{vision_ssl_forward.3} parent=0 // pred_check_branch
    %47 = sbr.rel (0) target = $region49
  $region48: #{vision_ssl_forward.3} parent=0 // pred_region
    _
  $region49: #{vision_ssl_forward.3} parent=0 // pred_fallthru
    _
  // Predicated region
  $region50: #{vision_ssl_forward.3} parent=0 // pred_check
    _
  $region51: #{vision_ssl_forward.3} parent=0 // pred_check_branch
    %49 = sbr.rel (0) target = $region53
  $region52: #{vision_ssl_forward.3} parent=0 // pred_region
    _
  $region53: #{vision_ssl_forward.3} parent=0 // pred_fallthru
    _
  // Predicated region
  $region54: #{vision_ssl_forward.3} parent=0 // pred_check
    _
  $region55: #{vision_ssl_forward.3} parent=0 // pred_check_branch
    %51 = sbr.rel (0) target = $region57
  $region56: #{vision_ssl_forward.3} parent=0 // pred_region
    _
  $region57: #{vision_ssl_forward.3} parent=0 // pred_fallthru
    _
  // Predicated region
  $region58: #{vision_ssl_forward.3} parent=0 // pred_check
    _
  $region59: #{vision_ssl_forward.3} parent=0 // pred_check_branch
    %53 = sbr.rel (0) target = $region61
  $region60: #{vision_ssl_forward.3} parent=0 // pred_region
    _
  $region61: #{vision_ssl_forward.3} parent=0 // pred_fallthru
    _
  // Predicated region
  $region62: #{vision_ssl_forward.3} parent=0 // pred_check
    _
  $region63: #{vision_ssl_forward.3} parent=0 // pred_check_branch
    %55 = sbr.rel (0) target = $region65
  $region64: #{vision_ssl_forward.3} parent=0 // pred_region
    _
  $region65: #{vision_ssl_forward.3} parent=0 // pred_fallthru
    _
  // Predicated region
  $region66: #{vision_ssl_forward.3} parent=0 // pred_check
    _
  $region67: #{vision_ssl_forward.3} parent=0 // pred_check_branch
    %57 = sbr.rel (0) target = $region69
  $region68: #{vision_ssl_forward.3} parent=0 // pred_region
    _
  $region69: #{vision_ssl_forward.3} parent=0 // pred_fallthru
    _
  %v59 = vld [vmem:[%s0] sm:$0xff]
  %v60 = vld [vmem:[%s0 + $0x8] sm:$0xff]
  %v61 = vld [vmem:[%s0 + $0x10] sm:$0xff]
  %v62 = vld [vmem:[%s0 + $0x18] sm:$0xff]
  %v63 = vld [vmem:[%s0 + $0x20] sm:$0xff]
  %v64 = vld [vmem:[%s0 + $0x28] sm:$0xff]
  %v65 = vld [vmem:[%s0 + $0x30] sm:$0xff]
  %v66 = vld [vmem:[%s0 + $0x38] sm:$0xff]
  %v67 = vld [vmem:[%s0 + $0x40] sm:$0xff]
  %v68 = vld [vmem:[%s0 + $0x48] sm:$0xff]
  %v69 = vld [vmem:[%s0 + $0x50] sm:$0xff]
  %v70 = vld [vmem:[%s0 + $0x58] sm:$0xff]
  %v71 = vld [vmem:[%s0 + $0x60] sm:$0xff]
  %v72 = vld [vmem:[%s0 + $0x68] sm:$0xff]
  %v73 = vld [vmem:[%s0 + $0x70] sm:$0xff]
  %v74 = vld [vmem:[%s0 + $0x78] sm:$0xff]
  %v75 = vpack.c.bf16 %v63, %v59
  %v76 = vpack.c.bf16 %v64, %v60
  %v77 = vpack.c.bf16 %v65, %v61
  %v78 = vpack.c.bf16 %v66, %v62
  %v79 = vpack.c.bf16 %v71, %v67
  %v80 = vpack.c.bf16 %v72, %v68
  %v81 = vpack.c.bf16 %v73, %v69
  %v82 = vpack.c.bf16 %v74, %v70
  %v83 = vld [vmem:[%s3] sm:$0xf]
  %v84 = vld [vmem:[%s3 + $0x4] sm:$0xf]
  %v85 = vld [vmem:[%s3 + $0x8] sm:$0xf]
  %v86 = vld [vmem:[%s3 + $0xc] sm:$0xf]
  %v87 = vld [vmem:[%s3 + $0x10] sm:$0xf]
  %v88 = vld [vmem:[%s3 + $0x14] sm:$0xf]
  %v89 = vld [vmem:[%s3 + $0x18] sm:$0xf]
  %v90 = vld [vmem:[%s3 + $0x1c] sm:$0xf]
  %v91 = vld [vmem:[%s3 + $0x20] sm:$0xf]
  %v92 = vld [vmem:[%s3 + $0x24] sm:$0xf]
  %v93 = vld [vmem:[%s3 + $0x28] sm:$0xf]
  %v94 = vld [vmem:[%s3 + $0x2c] sm:$0xf]
  %v95 = vld [vmem:[%s3 + $0x30] sm:$0xf]
  %v96 = vld [vmem:[%s3 + $0x34] sm:$0xf]
  %v97 = vld [vmem:[%s3 + $0x38] sm:$0xf]
  %v98 = vld [vmem:[%s3 + $0x3c] sm:$0xf]
  %v99 = vld [vmem:[%s3 + $0x40] sm:$0xf]
  %v100 = vld [vmem:[%s3 + $0x44] sm:$0xf]
  %v101 = vld [vmem:[%s3 + $0x48] sm:$0xf]
  %v102 = vld [vmem:[%s3 + $0x4c] sm:$0xf]
  %v103 = vld [vmem:[%s3 + $0x50] sm:$0xf]
  %v104 = vld [vmem:[%s3 + $0x54] sm:$0xf]
  %v105 = vld [vmem:[%s3 + $0x58] sm:$0xf]
  %v106 = vld [vmem:[%s3 + $0x5c] sm:$0xf]
  %v107 = vld [vmem:[%s3 + $0x60] sm:$0xf]
  %v108 = vld [vmem:[%s3 + $0x64] sm:$0xf]
  %v109 = vld [vmem:[%s3 + $0x68] sm:$0xf]
  %v110 = vld [vmem:[%s3 + $0x6c] sm:$0xf]
  %v111 = vld [vmem:[%s3 + $0x70] sm:$0xf]
  %v112 = vld [vmem:[%s3 + $0x74] sm:$0xf]
  %v113 = vld [vmem:[%s3 + $0x78] sm:$0xf]
  %v114 = vld [vmem:[%s3 + $0x7c] sm:$0xf]
  %v115 = vld [vmem:[%s3 + $0x80] sm:$0xf]
  %v116 = vld [vmem:[%s3 + $0x84] sm:$0xf]
  %v117 = vld [vmem:[%s3 + $0x88] sm:$0xf]
  %v118 = vld [vmem:[%s3 + $0x8c] sm:$0xf]
  %v119 = vld [vmem:[%s3 + $0x90] sm:$0xf]
  %v120 = vld [vmem:[%s3 + $0x94] sm:$0xf]
  %v121 = vld [vmem:[%s3 + $0x98] sm:$0xf]
  %v122 = vld [vmem:[%s3 + $0x9c] sm:$0xf]
  %v123 = vld [vmem:[%s3 + $0xa0] sm:$0xf]
  %v124 = vld [vmem:[%s3 + $0xa4] sm:$0xf]
  %v125 = vld [vmem:[%s3 + $0xa8] sm:$0xf]
  %v126 = vld [vmem:[%s3 + $0xac] sm:$0xf]
  %v127 = vld [vmem:[%s3 + $0xb0] sm:$0xf]
  %v128 = vld [vmem:[%s3 + $0xb4] sm:$0xf]
  %v129 = vld [vmem:[%s3 + $0xb8] sm:$0xf]
  %v130 = vld [vmem:[%s3 + $0xbc] sm:$0xf]
  %v131 = vld [vmem:[%s3 + $0xc0] sm:$0xf]
  %v132 = vld [vmem:[%s3 + $0xc4] sm:$0xf]
  %v133 = vld [vmem:[%s3 + $0xc8] sm:$0xf]
  %v134 = vld [vmem:[%s3 + $0xcc] sm:$0xf]
  %v135 = vld [vmem:[%s3 + $0xd0] sm:$0xf]
  %v136 = vld [vmem:[%s3 + $0xd4] sm:$0xf]
  %v137 = vld [vmem:[%s3 + $0xd8] sm:$0xf]
  %v138 = vld [vmem:[%s3 + $0xdc] sm:$0xf]
  %v139 = vld [vmem:[%s3 + $0xe0] sm:$0xf]
  %v140 = vld [vmem:[%s3 + $0xe4] sm:$0xf]
  %v141 = vld [vmem:[%s3 + $0xe8] sm:$0xf]
  %v142 = vld [vmem:[%s3 + $0xec] sm:$0xf]
  %v143 = vld [vmem:[%s3 + $0xf0] sm:$0xf]
  %v144 = vld [vmem:[%s3 + $0xf4] sm:$0xf]
  %v145 = vld [vmem:[%s3 + $0xf8] sm:$0xf]
  %v146 = vld [vmem:[%s3 + $0xfc] sm:$0xf]
  %v147 = vld [vmem:[%s4] sm:$0x1]
  %v149 = vperm.slane %v147, 0
  %v215 = vunpack.c.l.b16 %v83
  %v216 = vunpack.c.l.b16 %v84
  %v217 = vunpack.c.l.b16 %v85
  %v218 = vunpack.c.l.b16 %v86
  %v219 = vunpack.c.l.b16 %v87
  %v220 = vunpack.c.l.b16 %v88
  %v221 = vunpack.c.l.b16 %v89
  %v222 = vunpack.c.l.b16 %v90
  %v223 = vunpack.c.l.b16 %v91
  %v224 = vunpack.c.l.b16 %v92
  %v225 = vunpack.c.l.b16 %v93
  %v226 = vunpack.c.l.b16 %v94
  %v227 = vunpack.c.l.b16 %v95
  %v228 = vunpack.c.l.b16 %v96
  %v229 = vunpack.c.l.b16 %v97
  %v230 = vunpack.c.l.b16 %v98
  %v231 = vunpack.c.l.b16 %v99
  %v232 = vunpack.c.l.b16 %v100
  %v233 = vunpack.c.l.b16 %v101
  %v234 = vunpack.c.l.b16 %v102
  %v235 = vunpack.c.l.b16 %v103
  %v236 = vunpack.c.l.b16 %v104
  %v237 = vunpack.c.l.b16 %v105
  %v238 = vunpack.c.l.b16 %v106
  %v239 = vunpack.c.l.b16 %v107
  %v240 = vunpack.c.l.b16 %v108
  %v241 = vunpack.c.l.b16 %v109
  %v242 = vunpack.c.l.b16 %v110
  %v243 = vunpack.c.l.b16 %v111
  %v244 = vunpack.c.l.b16 %v112
  %v245 = vunpack.c.l.b16 %v113
  %v246 = vunpack.c.l.b16 %v114
  %v247 = vunpack.c.l.b16 %v115
  %v248 = vunpack.c.l.b16 %v116
  %v249 = vunpack.c.l.b16 %v117
  %v250 = vunpack.c.l.b16 %v118
  %v251 = vunpack.c.l.b16 %v119
  %v252 = vunpack.c.l.b16 %v120
  %v253 = vunpack.c.l.b16 %v121
  %v254 = vunpack.c.l.b16 %v122
  %v255 = vunpack.c.l.b16 %v123
  %v256 = vunpack.c.l.b16 %v124
  %v257 = vunpack.c.l.b16 %v125
  %v258 = vunpack.c.l.b16 %v126
  %v259 = vunpack.c.l.b16 %v127
  %v260 = vunpack.c.l.b16 %v128
  %v261 = vunpack.c.l.b16 %v129
  %v262 = vunpack.c.l.b16 %v130
  %v263 = vunpack.c.l.b16 %v131
  %v264 = vunpack.c.l.b16 %v132
  %v265 = vunpack.c.l.b16 %v133
  %v266 = vunpack.c.l.b16 %v134
  %v267 = vunpack.c.l.b16 %v135
  %v268 = vunpack.c.l.b16 %v136
  %v269 = vunpack.c.l.b16 %v137
  %v270 = vunpack.c.l.b16 %v138
  %v271 = vunpack.c.l.b16 %v139
  %v272 = vunpack.c.l.b16 %v140
  %v273 = vunpack.c.l.b16 %v141
  %v274 = vunpack.c.l.b16 %v142
  %v275 = vunpack.c.l.b16 %v143
  %v276 = vunpack.c.l.b16 %v144
  %v277 = vunpack.c.l.b16 %v145
  %v278 = vunpack.c.l.b16 %v146
  %v279 = vpack.c.b16 %v216, %v215
  %v280 = vpack.c.b16 %v218, %v217
  %v281 = vpack.c.b16 %v220, %v219
  %v282 = vpack.c.b16 %v222, %v221
  %v283 = vpack.c.b16 %v224, %v223
  %v284 = vpack.c.b16 %v226, %v225
  %v285 = vpack.c.b16 %v228, %v227
  %v286 = vpack.c.b16 %v230, %v229
  %v287 = vpack.c.b16 %v232, %v231
  %v288 = vpack.c.b16 %v234, %v233
  %v289 = vpack.c.b16 %v236, %v235
  %v290 = vpack.c.b16 %v238, %v237
  %v291 = vpack.c.b16 %v240, %v239
  %v292 = vpack.c.b16 %v242, %v241
  %v293 = vpack.c.b16 %v244, %v243
  %v294 = vpack.c.b16 %v246, %v245
  %v295 = vpack.c.b16 %v248, %v247
  %v296 = vpack.c.b16 %v250, %v249
  %v297 = vpack.c.b16 %v252, %v251
  %v298 = vpack.c.b16 %v254, %v253
  %v299 = vpack.c.b16 %v256, %v255
  %v300 = vpack.c.b16 %v258, %v257
  %v301 = vpack.c.b16 %v260, %v259
  %v302 = vpack.c.b16 %v262, %v261
  %v303 = vpack.c.b16 %v264, %v263
  %v304 = vpack.c.b16 %v266, %v265
  %v305 = vpack.c.b16 %v268, %v267
  %v306 = vpack.c.b16 %v270, %v269
  %v307 = vpack.c.b16 %v272, %v271
  %v308 = vpack.c.b16 %v274, %v273
  %v309 = vpack.c.b16 %v276, %v275
  %v310 = vpack.c.b16 %v278, %v277
  %343 = vmatpush.bf16.msra.mxu0 %v286
  %344 = vmatpush.bf16.msra.mxu0 %v285
  %345 = vmatpush.bf16.msra.mxu0 %v284
  %346 = vmatpush.bf16.msra.mxu0 %v283
  %347 = vmatpush.bf16.msra.mxu0 %v282
  %348 = vmatpush.bf16.msra.mxu0 %v281
  %349 = vmatpush.bf16.msra.mxu0 %v280
  %350 = vmatpush.bf16.msra.mxu0 %v279
  %351 = vmatmul.bf16.gmra.mxu0 %v75
  %v352 = vpop.f32.mrf.mxu0
  %v353 = vadd.f32 %v149, %v352
  %v354 = vpop.f32.mrf.mxu0
  %v355 = vadd.f32 %v149, %v354
  %356 = vmatmul.bf16.gmra.mxu0 %v79
  %v357 = vpop.f32.mrf.mxu0
  %v358 = vadd.f32 %v149, %v357
  %v359 = vpop.f32.mrf.mxu0
  %v360 = vadd.f32 %v149, %v359
  %361 = vdwg.mxu0
  %362 = vmatpush.bf16.msra.mxu0 %v294
  %363 = vmatpush.bf16.msra.mxu0 %v293
  %364 = vmatpush.bf16.msra.mxu0 %v292
  %365 = vmatpush.bf16.msra.mxu0 %v291
  %366 = vmatpush.bf16.msra.mxu0 %v290
  %367 = vmatpush.bf16.msra.mxu0 %v289
  %368 = vmatpush.bf16.msra.mxu0 %v288
  %369 = vmatpush.bf16.msra.mxu0 %v287
  %370 = vmatmul.bf16.gmra.mxu0 %v76
  %v371 = vpop.f32.mrf.mxu0
  %v372 = vadd.f32 %v353, %v371
  %v373 = vpop.f32.mrf.mxu0
  %v374 = vadd.f32 %v355, %v373
  %375 = vmatmul.bf16.gmra.mxu0 %v80
  %v376 = vpop.f32.mrf.mxu0
  %v377 = vadd.f32 %v358, %v376
  %v378 = vpop.f32.mrf.mxu0
  %v379 = vadd.f32 %v360, %v378
  %380 = vdwg.mxu0
  %381 = vmatpush.bf16.msra.mxu0 %v302
  %382 = vmatpush.bf16.msra.mxu0 %v301
  %383 = vmatpush.bf16.msra.mxu0 %v300
  %384 = vmatpush.bf16.msra.mxu0 %v299
  %385 = vmatpush.bf16.msra.mxu0 %v298
  %386 = vmatpush.bf16.msra.mxu0 %v297
  %387 = vmatpush.bf16.msra.mxu0 %v296
  %388 = vmatpush.bf16.msra.mxu0 %v295
  %389 = vmatmul.bf16.gmra.mxu0 %v77
  %v390 = vpop.f32.mrf.mxu0
  %v391 = vadd.f32 %v372, %v390
  %v392 = vpop.f32.mrf.mxu0
  %v393 = vadd.f32 %v374, %v392
  %394 = vmatmul.bf16.gmra.mxu0 %v81
  %v395 = vpop.f32.mrf.mxu0
  %v396 = vadd.f32 %v377, %v395
  %v397 = vpop.f32.mrf.mxu0
  %v398 = vadd.f32 %v379, %v397
  %399 = vdwg.mxu0
  %400 = vmatpush.bf16.msra.mxu0 %v310
  %401 = vmatpush.bf16.msra.mxu0 %v309
  %402 = vmatpush.bf16.msra.mxu0 %v308
  %403 = vmatpush.bf16.msra.mxu0 %v307
  %404 = vmatpush.bf16.msra.mxu0 %v306
  %405 = vmatpush.bf16.msra.mxu0 %v305
  %406 = vmatpush.bf16.msra.mxu0 %v304
  %407 = vmatpush.bf16.msra.mxu0 %v303
  %408 = vmatmul.bf16.gmra.mxu0 %v78
  %v409 = vpop.f32.mrf.mxu0
  %v410 = vadd.f32 %v391, %v409
  %v411 = vpop.f32.mrf.mxu0
  %v412 = vadd.f32 %v393, %v411
  %413 = vmatmul.bf16.gmra.mxu0 %v82
  %v414 = vpop.f32.mrf.mxu0
  %v415 = vadd.f32 %v396, %v414
  %v416 = vpop.f32.mrf.mxu0
  %v417 = vadd.f32 %v398, %v416
  %418 = vdwg.mxu0
  %v419 = vld [vmem:[%s1] sm:$0xff]
  %v420 = vld [vmem:[%s1 + $0x8] sm:$0xff]
  %v421 = vld [vmem:[%s1 + $0x10] sm:$0xff]
  %v422 = vld [vmem:[%s1 + $0x18] sm:$0xff]
  %v423 = vld [vmem:[%s1 + $0x20] sm:$0xff]
  %v424 = vld [vmem:[%s1 + $0x28] sm:$0xff]
  %v425 = vld [vmem:[%s1 + $0x30] sm:$0xff]
  %v426 = vld [vmem:[%s1 + $0x38] sm:$0xff]
  %v427 = vld [vmem:[%s1 + $0x40] sm:$0xff]
  %v428 = vld [vmem:[%s1 + $0x48] sm:$0xff]
  %v429 = vld [vmem:[%s1 + $0x50] sm:$0xff]
  %v430 = vld [vmem:[%s1 + $0x58] sm:$0xff]
  %v431 = vld [vmem:[%s1 + $0x60] sm:$0xff]
  %v432 = vld [vmem:[%s1 + $0x68] sm:$0xff]
  %v433 = vld [vmem:[%s1 + $0x70] sm:$0xff]
  %v434 = vld [vmem:[%s1 + $0x78] sm:$0xff]
  %451 = vst [vmem:[#allocation1] ss:$2 sm:$0xff] %v419
  %s452 = scalar_lea.vmem [#allocation1], 16
  %453 = vst [vmem:[%s452] ss:$2 sm:$0xff] %v420
  %s454 = scalar_lea.vmem [#allocation1], 32
  %455 = vst [vmem:[%s454] ss:$2 sm:$0xff] %v421
  %s456 = scalar_lea.vmem [#allocation1], 48
  %457 = vst [vmem:[%s456] ss:$2 sm:$0xff] %v422
  %v458 = vld.sshfl [vmem:[#allocation1] sm:$0xff pattern:$0x75316420]
  %v459 = vld.sshfl [vmem:[#allocation1 + $0x8] sm:$0xff pattern:$0x75316420]
  %v460 = vld.sshfl [vmem:[#allocation1 + $0x10] sm:$0xff pattern:$0x75316420]
  %v461 = vld.sshfl [vmem:[#allocation1 + $0x18] sm:$0xff pattern:$0x75316420]
  %v462 = vld.sshfl [vmem:[#allocation1 + $0x20] sm:$0xff pattern:$0x75316420]
  %v463 = vld.sshfl [vmem:[#allocation1 + $0x28] sm:$0xff pattern:$0x75316420]
  %v464 = vld.sshfl [vmem:[#allocation1 + $0x30] sm:$0xff pattern:$0x75316420]
  %v465 = vld.sshfl [vmem:[#allocation1 + $0x38] sm:$0xff pattern:$0x75316420]
  %466 = vst [vmem:[#allocation1] ss:$2 sm:$0xff] %v423
  %467 = vst [vmem:[%s452] ss:$2 sm:$0xff] %v424
  %468 = vst [vmem:[%s454] ss:$2 sm:$0xff] %v425
  %469 = vst [vmem:[%s456] ss:$2 sm:$0xff] %v426
  %v470 = vld.sshfl [vmem:[#allocation1] sm:$0xff pattern:$0x75316420]
  %v471 = vld.sshfl [vmem:[#allocation1 + $0x8] sm:$0xff pattern:$0x75316420]
  %v472 = vld.sshfl [vmem:[#allocation1 + $0x10] sm:$0xff pattern:$0x75316420]
  %v473 = vld.sshfl [vmem:[#allocation1 + $0x18] sm:$0xff pattern:$0x75316420]
  %v474 = vld.sshfl [vmem:[#allocation1 + $0x20] sm:$0xff pattern:$0x75316420]
  %v475 = vld.sshfl [vmem:[#allocation1 + $0x28] sm:$0xff pattern:$0x75316420]
  %v476 = vld.sshfl [vmem:[#allocation1 + $0x30] sm:$0xff pattern:$0x75316420]
  %v477 = vld.sshfl [vmem:[#allocation1 + $0x38] sm:$0xff pattern:$0x75316420]
  %478 = vst [vmem:[#allocation1] ss:$2 sm:$0xff] %v427
  %479 = vst [vmem:[%s452] ss:$2 sm:$0xff] %v428
  %480 = vst [vmem:[%s454] ss:$2 sm:$0xff] %v429
  %481 = vst [vmem:[%s456] ss:$2 sm:$0xff] %v430
  %v482 = vld.sshfl [vmem:[#allocation1] sm:$0xff pattern:$0x75316420]
  %v483 = vld.sshfl [vmem:[#allocation1 + $0x8] sm:$0xff pattern:$0x75316420]
  %v484 = vld.sshfl [vmem:[#allocation1 + $0x10] sm:$0xff pattern:$0x75316420]
  %v485 = vld.sshfl [vmem:[#allocation1 + $0x18] sm:$0xff pattern:$0x75316420]
  %v486 = vld.sshfl [vmem:[#allocation1 + $0x20] sm:$0xff pattern:$0x75316420]
  %v487 = vld.sshfl [vmem:[#allocation1 + $0x28] sm:$0xff pattern:$0x75316420]
  %v488 = vld.sshfl [vmem:[#allocation1 + $0x30] sm:$0xff pattern:$0x75316420]
  %v489 = vld.sshfl [vmem:[#allocation1 + $0x38] sm:$0xff pattern:$0x75316420]
  %490 = vst [vmem:[#allocation1] ss:$2 sm:$0xff] %v431
  %491 = vst [vmem:[%s452] ss:$2 sm:$0xff] %v432
  %492 = vst [vmem:[%s454] ss:$2 sm:$0xff] %v433
  %493 = vst [vmem:[%s456] ss:$2 sm:$0xff] %v434
  %v494 = vld.sshfl [vmem:[#allocation1] sm:$0xff pattern:$0x75316420]
  %v495 = vld.sshfl [vmem:[#allocation1 + $0x8] sm:$0xff pattern:$0x75316420]
  %v496 = vld.sshfl [vmem:[#allocation1 + $0x10] sm:$0xff pattern:$0x75316420]
  %v497 = vld.sshfl [vmem:[#allocation1 + $0x18] sm:$0xff pattern:$0x75316420]
  %v498 = vld.sshfl [vmem:[#allocation1 + $0x20] sm:$0xff pattern:$0x75316420]
  %v499 = vld.sshfl [vmem:[#allocation1 + $0x28] sm:$0xff pattern:$0x75316420]
  %v500 = vld.sshfl [vmem:[#allocation1 + $0x30] sm:$0xff pattern:$0x75316420]
  %v501 = vld.sshfl [vmem:[#allocation1 + $0x38] sm:$0xff pattern:$0x75316420]
  %v534 = vpack.c.bf16 %v458, %v458
  %v535 = vpack.c.bf16 %v459, %v459
  %v536 = vpack.c.bf16 %v460, %v460
  %v537 = vpack.c.bf16 %v461, %v461
  %v538 = vpack.c.bf16 %v462, %v462
  %v539 = vpack.c.bf16 %v463, %v463
  %v540 = vpack.c.bf16 %v464, %v464
  %v541 = vpack.c.bf16 %v465, %v465
  %v542 = vpack.c.bf16 %v470, %v470
  %v543 = vpack.c.bf16 %v471, %v471
  %v544 = vpack.c.bf16 %v472, %v472
  %v545 = vpack.c.bf16 %v473, %v473
  %v546 = vpack.c.bf16 %v474, %v474
  %v547 = vpack.c.bf16 %v475, %v475
  %v548 = vpack.c.bf16 %v476, %v476
  %v549 = vpack.c.bf16 %v477, %v477
  %v550 = vpack.c.bf16 %v482, %v482
  %v551 = vpack.c.bf16 %v483, %v483
  %v552 = vpack.c.bf16 %v484, %v484
  %v553 = vpack.c.bf16 %v485, %v485
  %v554 = vpack.c.bf16 %v486, %v486
  %v555 = vpack.c.bf16 %v487, %v487
  %v556 = vpack.c.bf16 %v488, %v488
  %v557 = vpack.c.bf16 %v489, %v489
  %v558 = vpack.c.bf16 %v494, %v494
  %v559 = vpack.c.bf16 %v495, %v495
  %v560 = vpack.c.bf16 %v496, %v496
  %v561 = vpack.c.bf16 %v497, %v497
  %v562 = vpack.c.bf16 %v498, %v498
  %v563 = vpack.c.bf16 %v499, %v499
  %v564 = vpack.c.bf16 %v500, %v500
  %v565 = vpack.c.bf16 %v501, %v501
  %v566 = vld [vmem:[%s5] sm:$0xf]
  %v567 = vld [vmem:[%s5 + $0x4] sm:$0xf]
  %v568 = vld [vmem:[%s5 + $0x8] sm:$0xf]
  %v569 = vld [vmem:[%s5 + $0xc] sm:$0xf]
  %v570 = vld [vmem:[%s5 + $0x10] sm:$0xf]
  %v571 = vld [vmem:[%s5 + $0x14] sm:$0xf]
  %v572 = vld [vmem:[%s5 + $0x18] sm:$0xf]
  %v573 = vld [vmem:[%s5 + $0x1c] sm:$0xf]
  %v574 = vld [vmem:[%s5 + $0x20] sm:$0xf]
  %v575 = vld [vmem:[%s5 + $0x24] sm:$0xf]
  %v576 = vld [vmem:[%s5 + $0x28] sm:$0xf]
  %v577 = vld [vmem:[%s5 + $0x2c] sm:$0xf]
  %v578 = vld [vmem:[%s5 + $0x30] sm:$0xf]
  %v579 = vld [vmem:[%s5 + $0x34] sm:$0xf]
  %v580 = vld [vmem:[%s5 + $0x38] sm:$0xf]
  %v581 = vld [vmem:[%s5 + $0x3c] sm:$0xf]
  %v582 = vld [vmem:[%s5 + $0x40] sm:$0xf]
  %v583 = vld [vmem:[%s5 + $0x44] sm:$0xf]
  %v584 = vld [vmem:[%s5 + $0x48] sm:$0xf]
  %v585 = vld [vmem:[%s5 + $0x4c] sm:$0xf]
  %v586 = vld [vmem:[%s5 + $0x50] sm:$0xf]
  %v587 = vld [vmem:[%s5 + $0x54] sm:$0xf]
  %v588 = vld [vmem:[%s5 + $0x58] sm:$0xf]
  %v589 = vld [vmem:[%s5 + $0x5c] sm:$0xf]
  %v590 = vld [vmem:[%s5 + $0x60] sm:$0xf]
  %v591 = vld [vmem:[%s5 + $0x64] sm:$0xf]
  %v592 = vld [vmem:[%s5 + $0x68] sm:$0xf]
  %v593 = vld [vmem:[%s5 + $0x6c] sm:$0xf]
  %v594 = vld [vmem:[%s5 + $0x70] sm:$0xf]
  %v595 = vld [vmem:[%s5 + $0x74] sm:$0xf]
  %v596 = vld [vmem:[%s5 + $0x78] sm:$0xf]
  %v597 = vld [vmem:[%s5 + $0x7c] sm:$0xf]
  %v598 = vld [vmem:[%s5 + $0x80] sm:$0xf]
  %v599 = vld [vmem:[%s5 + $0x84] sm:$0xf]
  %v600 = vld [vmem:[%s5 + $0x88] sm:$0xf]
  %v601 = vld [vmem:[%s5 + $0x8c] sm:$0xf]
  %v602 = vld [vmem:[%s5 + $0x90] sm:$0xf]
  %v603 = vld [vmem:[%s5 + $0x94] sm:$0xf]
  %v604 = vld [vmem:[%s5 + $0x98] sm:$0xf]
  %v605 = vld [vmem:[%s5 + $0x9c] sm:$0xf]
  %v606 = vld [vmem:[%s5 + $0xa0] sm:$0xf]
  %v607 = vld [vmem:[%s5 + $0xa4] sm:$0xf]
  %v608 = vld [vmem:[%s5 + $0xa8] sm:$0xf]
  %v609 = vld [vmem:[%s5 + $0xac] sm:$0xf]
  %v610 = vld [vmem:[%s5 + $0xb0] sm:$0xf]
  %v611 = vld [vmem:[%s5 + $0xb4] sm:$0xf]
  %v612 = vld [vmem:[%s5 + $0xb8] sm:$0xf]
  %v613 = vld [vmem:[%s5 + $0xbc] sm:$0xf]
  %v614 = vld [vmem:[%s5 + $0xc0] sm:$0xf]
  %v615 = vld [vmem:[%s5 + $0xc4] sm:$0xf]
  %v616 = vld [vmem:[%s5 + $0xc8] sm:$0xf]
  %v617 = vld [vmem:[%s5 + $0xcc] sm:$0xf]
  %v618 = vld [vmem:[%s5 + $0xd0] sm:$0xf]
  %v619 = vld [vmem:[%s5 + $0xd4] sm:$0xf]
  %v620 = vld [vmem:[%s5 + $0xd8] sm:$0xf]
  %v621 = vld [vmem:[%s5 + $0xdc] sm:$0xf]
  %v622 = vld [vmem:[%s5 + $0xe0] sm:$0xf]
  %v623 = vld [vmem:[%s5 + $0xe4] sm:$0xf]
  %v624 = vld [vmem:[%s5 + $0xe8] sm:$0xf]
  %v625 = vld [vmem:[%s5 + $0xec] sm:$0xf]
  %v626 = vld [vmem:[%s5 + $0xf0] sm:$0xf]
  %v627 = vld [vmem:[%s5 + $0xf4] sm:$0xf]
  %v628 = vld [vmem:[%s5 + $0xf8] sm:$0xf]
  %v629 = vld [vmem:[%s5 + $0xfc] sm:$0xf]
  %v630 = vld [vmem:[%s5 + $0x100] sm:$0xf]
  %v631 = vld [vmem:[%s5 + $0x104] sm:$0xf]
  %v632 = vld [vmem:[%s5 + $0x108] sm:$0xf]
  %v633 = vld [vmem:[%s5 + $0x10c] sm:$0xf]
  %v634 = vld [vmem:[%s5 + $0x110] sm:$0xf]
  %v635 = vld [vmem:[%s5 + $0x114] sm:$0xf]
  %v636 = vld [vmem:[%s5 + $0x118] sm:$0xf]
  %v637 = vld [vmem:[%s5 + $0x11c] sm:$0xf]
  %v638 = vld [vmem:[%s5 + $0x120] sm:$0xf]
  %v639 = vld [vmem:[%s5 + $0x124] sm:$0xf]
  %v640 = vld [vmem:[%s5 + $0x128] sm:$0xf]
  %v641 = vld [vmem:[%s5 + $0x12c] sm:$0xf]
  %v642 = vld [vmem:[%s5 + $0x130] sm:$0xf]
  %v643 = vld [vmem:[%s5 + $0x134] sm:$0xf]
  %v644 = vld [vmem:[%s5 + $0x138] sm:$0xf]
  %v645 = vld [vmem:[%s5 + $0x13c] sm:$0xf]
  %v646 = vld [vmem:[%s5 + $0x140] sm:$0xf]
  %v647 = vld [vmem:[%s5 + $0x144] sm:$0xf]
  %v648 = vld [vmem:[%s5 + $0x148] sm:$0xf]
  %v649 = vld [vmem:[%s5 + $0x14c] sm:$0xf]
  %v650 = vld [vmem:[%s5 + $0x150] sm:$0xf]
  %v651 = vld [vmem:[%s5 + $0x154] sm:$0xf]
  %v652 = vld [vmem:[%s5 + $0x158] sm:$0xf]
  %v653 = vld [vmem:[%s5 + $0x15c] sm:$0xf]
  %v654 = vld [vmem:[%s5 + $0x160] sm:$0xf]
  %v655 = vld [vmem:[%s5 + $0x164] sm:$0xf]
  %v656 = vld [vmem:[%s5 + $0x168] sm:$0xf]
  %v657 = vld [vmem:[%s5 + $0x16c] sm:$0xf]
  %v658 = vld [vmem:[%s5 + $0x170] sm:$0xf]
  %v659 = vld [vmem:[%s5 + $0x174] sm:$0xf]
  %v660 = vld [vmem:[%s5 + $0x178] sm:$0xf]
  %v661 = vld [vmem:[%s5 + $0x17c] sm:$0xf]
  %v662 = vld [vmem:[%s5 + $0x180] sm:$0xf]
  %v663 = vld [vmem:[%s5 + $0x184] sm:$0xf]
  %v664 = vld [vmem:[%s5 + $0x188] sm:$0xf]
  %v665 = vld [vmem:[%s5 + $0x18c] sm:$0xf]
  %v666 = vld [vmem:[%s5 + $0x190] sm:$0xf]
  %v667 = vld [vmem:[%s5 + $0x194] sm:$0xf]
  %v668 = vld [vmem:[%s5 + $0x198] sm:$0xf]
  %v669 = vld [vmem:[%s5 + $0x19c] sm:$0xf]
  %v670 = vld [vmem:[%s5 + $0x1a0] sm:$0xf]
  %v671 = vld [vmem:[%s5 + $0x1a4] sm:$0xf]
  %v672 = vld [vmem:[%s5 + $0x1a8] sm:$0xf]
  %v673 = vld [vmem:[%s5 + $0x1ac] sm:$0xf]
  %v674 = vld [vmem:[%s5 + $0x1b0] sm:$0xf]
  %v675 = vld [vmem:[%s5 + $0x1b4] sm:$0xf]
  %v676 = vld [vmem:[%s5 + $0x1b8] sm:$0xf]
  %v677 = vld [vmem:[%s5 + $0x1bc] sm:$0xf]
  %v678 = vld [vmem:[%s5 + $0x1c0] sm:$0xf]
  %v679 = vld [vmem:[%s5 + $0x1c4] sm:$0xf]
  %v680 = vld [vmem:[%s5 + $0x1c8] sm:$0xf]
  %v681 = vld [vmem:[%s5 + $0x1cc] sm:$0xf]
  %v682 = vld [vmem:[%s5 + $0x1d0] sm:$0xf]
  %v683 = vld [vmem:[%s5 + $0x1d4] sm:$0xf]
  %v684 = vld [vmem:[%s5 + $0x1d8] sm:$0xf]
  %v685 = vld [vmem:[%s5 + $0x1dc] sm:$0xf]
  %v686 = vld [vmem:[%s5 + $0x1e0] sm:$0xf]
  %v687 = vld [vmem:[%s5 + $0x1e4] sm:$0xf]
  %v688 = vld [vmem:[%s5 + $0x1e8] sm:$0xf]
  %v689 = vld [vmem:[%s5 + $0x1ec] sm:$0xf]
  %v690 = vld [vmem:[%s5 + $0x1f0] sm:$0xf]
  %v691 = vld [vmem:[%s5 + $0x1f4] sm:$0xf]
  %v692 = vld [vmem:[%s5 + $0x1f8] sm:$0xf]
  %v693 = vld [vmem:[%s5 + $0x1fc] sm:$0xf]
  %v694 = vld [vmem:[%s5 + $0x200] sm:$0xf]
  %v695 = vld [vmem:[%s5 + $0x204] sm:$0xf]
  %v696 = vld [vmem:[%s5 + $0x208] sm:$0xf]
  %v697 = vld [vmem:[%s5 + $0x20c] sm:$0xf]
  %v698 = vld [vmem:[%s5 + $0x210] sm:$0xf]
  %v699 = vld [vmem:[%s5 + $0x214] sm:$0xf]
  %v700 = vld [vmem:[%s5 + $0x218] sm:$0xf]
  %v701 = vld [vmem:[%s5 + $0x21c] sm:$0xf]
  %v702 = vld [vmem:[%s5 + $0x220] sm:$0xf]
  %v703 = vld [vmem:[%s5 + $0x224] sm:$0xf]
  %v704 = vld [vmem:[%s5 + $0x228] sm:$0xf]
  %v705 = vld [vmem:[%s5 + $0x22c] sm:$0xf]
  %v706 = vld [vmem:[%s5 + $0x230] sm:$0xf]
  %v707 = vld [vmem:[%s5 + $0x234] sm:$0xf]
  %v708 = vld [vmem:[%s5 + $0x238] sm:$0xf]
  %v709 = vld [vmem:[%s5 + $0x23c] sm:$0xf]
  %v710 = vld [vmem:[%s5 + $0x240] sm:$0xf]
  %v711 = vld [vmem:[%s5 + $0x244] sm:$0xf]
  %v712 = vld [vmem:[%s5 + $0x248] sm:$0xf]
  %v713 = vld [vmem:[%s5 + $0x24c] sm:$0xf]
  %v714 = vld [vmem:[%s5 + $0x250] sm:$0xf]
  %v715 = vld [vmem:[%s5 + $0x254] sm:$0xf]
  %v716 = vld [vmem:[%s5 + $0x258] sm:$0xf]
  %v717 = vld [vmem:[%s5 + $0x25c] sm:$0xf]
  %v718 = vld [vmem:[%s5 + $0x260] sm:$0xf]
  %v719 = vld [vmem:[%s5 + $0x264] sm:$0xf]
  %v720 = vld [vmem:[%s5 + $0x268] sm:$0xf]
  %v721 = vld [vmem:[%s5 + $0x26c] sm:$0xf]
  %v722 = vld [vmem:[%s5 + $0x270] sm:$0xf]
  %v723 = vld [vmem:[%s5 + $0x274] sm:$0xf]
  %v724 = vld [vmem:[%s5 + $0x278] sm:$0xf]
  %v725 = vld [vmem:[%s5 + $0x27c] sm:$0xf]
  %v726 = vld [vmem:[%s5 + $0x280] sm:$0xf]
  %v727 = vld [vmem:[%s5 + $0x284] sm:$0xf]
  %v728 = vld [vmem:[%s5 + $0x288] sm:$0xf]
  %v729 = vld [vmem:[%s5 + $0x28c] sm:$0xf]
  %v730 = vld [vmem:[%s5 + $0x290] sm:$0xf]
  %v731 = vld [vmem:[%s5 + $0x294] sm:$0xf]
  %v732 = vld [vmem:[%s5 + $0x298] sm:$0xf]
  %v733 = vld [vmem:[%s5 + $0x29c] sm:$0xf]
  %v734 = vld [vmem:[%s5 + $0x2a0] sm:$0xf]
  %v735 = vld [vmem:[%s5 + $0x2a4] sm:$0xf]
  %v736 = vld [vmem:[%s5 + $0x2a8] sm:$0xf]
  %v737 = vld [vmem:[%s5 + $0x2ac] sm:$0xf]
  %v738 = vld [vmem:[%s5 + $0x2b0] sm:$0xf]
  %v739 = vld [vmem:[%s5 + $0x2b4] sm:$0xf]
  %v740 = vld [vmem:[%s5 + $0x2b8] sm:$0xf]
  %v741 = vld [vmem:[%s5 + $0x2bc] sm:$0xf]
  %v742 = vld [vmem:[%s5 + $0x2c0] sm:$0xf]
  %v743 = vld [vmem:[%s5 + $0x2c4] sm:$0xf]
  %v744 = vld [vmem:[%s5 + $0x2c8] sm:$0xf]
  %v745 = vld [vmem:[%s5 + $0x2cc] sm:$0xf]
  %v746 = vld [vmem:[%s5 + $0x2d0] sm:$0xf]
  %v747 = vld [vmem:[%s5 + $0x2d4] sm:$0xf]
  %v748 = vld [vmem:[%s5 + $0x2d8] sm:$0xf]
  %v749 = vld [vmem:[%s5 + $0x2dc] sm:$0xf]
  %v750 = vld [vmem:[%s5 + $0x2e0] sm:$0xf]
  %v751 = vld [vmem:[%s5 + $0x2e4] sm:$0xf]
  %v752 = vld [vmem:[%s5 + $0x2e8] sm:$0xf]
  %v753 = vld [vmem:[%s5 + $0x2ec] sm:$0xf]
  %v754 = vld [vmem:[%s5 + $0x2f0] sm:$0xf]
  %v755 = vld [vmem:[%s5 + $0x2f4] sm:$0xf]
  %v756 = vld [vmem:[%s5 + $0x2f8] sm:$0xf]
  %v757 = vld [vmem:[%s5 + $0x2fc] sm:$0xf]
  %v758 = vld [vmem:[%s5 + $0x300] sm:$0xf]
  %v759 = vld [vmem:[%s5 + $0x304] sm:$0xf]
  %v760 = vld [vmem:[%s5 + $0x308] sm:$0xf]
  %v761 = vld [vmem:[%s5 + $0x30c] sm:$0xf]
  %v762 = vld [vmem:[%s5 + $0x310] sm:$0xf]
  %v763 = vld [vmem:[%s5 + $0x314] sm:$0xf]
  %v764 = vld [vmem:[%s5 + $0x318] sm:$0xf]
  %v765 = vld [vmem:[%s5 + $0x31c] sm:$0xf]
  %v766 = vld [vmem:[%s5 + $0x320] sm:$0xf]
  %v767 = vld [vmem:[%s5 + $0x324] sm:$0xf]
  %v768 = vld [vmem:[%s5 + $0x328] sm:$0xf]
  %v769 = vld [vmem:[%s5 + $0x32c] sm:$0xf]
  %v770 = vld [vmem:[%s5 + $0x330] sm:$0xf]
  %v771 = vld [vmem:[%s5 + $0x334] sm:$0xf]
  %v772 = vld [vmem:[%s5 + $0x338] sm:$0xf]
  %v773 = vld [vmem:[%s5 + $0x33c] sm:$0xf]
  %v774 = vld [vmem:[%s5 + $0x340] sm:$0xf]
  %v775 = vld [vmem:[%s5 + $0x344] sm:$0xf]
  %v776 = vld [vmem:[%s5 + $0x348] sm:$0xf]
  %v777 = vld [vmem:[%s5 + $0x34c] sm:$0xf]
  %v778 = vld [vmem:[%s5 + $0x350] sm:$0xf]
  %v779 = vld [vmem:[%s5 + $0x354] sm:$0xf]
  %v780 = vld [vmem:[%s5 + $0x358] sm:$0xf]
  %v781 = vld [vmem:[%s5 + $0x35c] sm:$0xf]
  %v782 = vld [vmem:[%s5 + $0x360] sm:$0xf]
  %v783 = vld [vmem:[%s5 + $0x364] sm:$0xf]
  %v784 = vld [vmem:[%s5 + $0x368] sm:$0xf]
  %v785 = vld [vmem:[%s5 + $0x36c] sm:$0xf]
  %v786 = vld [vmem:[%s5 + $0x370] sm:$0xf]
  %v787 = vld [vmem:[%s5 + $0x374] sm:$0xf]
  %v788 = vld [vmem:[%s5 + $0x378] sm:$0xf]
  %v789 = vld [vmem:[%s5 + $0x37c] sm:$0xf]
  %v790 = vld [vmem:[%s5 + $0x380] sm:$0xf]
  %v791 = vld [vmem:[%s5 + $0x384] sm:$0xf]
  %v792 = vld [vmem:[%s5 + $0x388] sm:$0xf]
  %v793 = vld [vmem:[%s5 + $0x38c] sm:$0xf]
  %v794 = vld [vmem:[%s5 + $0x390] sm:$0xf]
  %v795 = vld [vmem:[%s5 + $0x394] sm:$0xf]
  %v796 = vld [vmem:[%s5 + $0x398] sm:$0xf]
  %v797 = vld [vmem:[%s5 + $0x39c] sm:$0xf]
  %v798 = vld [vmem:[%s5 + $0x3a0] sm:$0xf]
  %v799 = vld [vmem:[%s5 + $0x3a4] sm:$0xf]
  %v800 = vld [vmem:[%s5 + $0x3a8] sm:$0xf]
  %v801 = vld [vmem:[%s5 + $0x3ac] sm:$0xf]
  %v802 = vld [vmem:[%s5 + $0x3b0] sm:$0xf]
  %v803 = vld [vmem:[%s5 + $0x3b4] sm:$0xf]
  %v804 = vld [vmem:[%s5 + $0x3b8] sm:$0xf]
  %v805 = vld [vmem:[%s5 + $0x3bc] sm:$0xf]
  %v806 = vld [vmem:[%s5 + $0x3c0] sm:$0xf]
  %v807 = vld [vmem:[%s5 + $0x3c4] sm:$0xf]
  %v808 = vld [vmem:[%s5 + $0x3c8] sm:$0xf]
  %v809 = vld [vmem:[%s5 + $0x3cc] sm:$0xf]
  %v810 = vld [vmem:[%s5 + $0x3d0] sm:$0xf]
  %v811 = vld [vmem:[%s5 + $0x3d4] sm:$0xf]
  %v812 = vld [vmem:[%s5 + $0x3d8] sm:$0xf]
  %v813 = vld [vmem:[%s5 + $0x3dc] sm:$0xf]
  %v814 = vld [vmem:[%s5 + $0x3e0] sm:$0xf]
  %v815 = vld [vmem:[%s5 + $0x3e4] sm:$0xf]
  %v816 = vld [vmem:[%s5 + $0x3e8] sm:$0xf]
  %v817 = vld [vmem:[%s5 + $0x3ec] sm:$0xf]
  %v818 = vld [vmem:[%s5 + $0x3f0] sm:$0xf]
  %v819 = vld [vmem:[%s5 + $0x3f4] sm:$0xf]
  %v820 = vld [vmem:[%s5 + $0x3f8] sm:$0xf]
  %v821 = vld [vmem:[%s5 + $0x3fc] sm:$0xf]
  %v822 = vld [vmem:[%s5 + $0x400] sm:$0xf]
  %v823 = vld [vmem:[%s5 + $0x404] sm:$0xf]
  %v824 = vld [vmem:[%s5 + $0x408] sm:$0xf]
  %v825 = vld [vmem:[%s5 + $0x40c] sm:$0xf]
  %v826 = vld [vmem:[%s5 + $0x410] sm:$0xf]
  %v827 = vld [vmem:[%s5 + $0x414] sm:$0xf]
  %v828 = vld [vmem:[%s5 + $0x418] sm:$0xf]
  %v829 = vld [vmem:[%s5 + $0x41c] sm:$0xf]
  %v830 = vld [vmem:[%s5 + $0x420] sm:$0xf]
  %v831 = vld [vmem:[%s5 + $0x424] sm:$0xf]
  %v832 = vld [vmem:[%s5 + $0x428] sm:$0xf]
  %v833 = vld [vmem:[%s5 + $0x42c] sm:$0xf]
  %v834 = vld [vmem:[%s5 + $0x430] sm:$0xf]
  %v835 = vld [vmem:[%s5 + $0x434] sm:$0xf]
  %v836 = vld [vmem:[%s5 + $0x438] sm:$0xf]
  %v837 = vld [vmem:[%s5 + $0x43c] sm:$0xf]
  %v838 = vld [vmem:[%s5 + $0x440] sm:$0xf]
  %v839 = vld [vmem:[%s5 + $0x444] sm:$0xf]
  %v840 = vld [vmem:[%s5 + $0x448] sm:$0xf]
  %v841 = vld [vmem:[%s5 + $0x44c] sm:$0xf]
  %v842 = vld [vmem:[%s5 + $0x450] sm:$0xf]
  %v843 = vld [vmem:[%s5 + $0x454] sm:$0xf]
  %v844 = vld [vmem:[%s5 + $0x458] sm:$0xf]
  %v845 = vld [vmem:[%s5 + $0x45c] sm:$0xf]
  %v846 = vld [vmem:[%s5 + $0x460] sm:$0xf]
  %v847 = vld [vmem:[%s5 + $0x464] sm:$0xf]
  %v848 = vld [vmem:[%s5 + $0x468] sm:$0xf]
  %v849 = vld [vmem:[%s5 + $0x46c] sm:$0xf]
  %v850 = vld [vmem:[%s5 + $0x470] sm:$0xf]
  %v851 = vld [vmem:[%s5 + $0x474] sm:$0xf]
  %v852 = vld [vmem:[%s5 + $0x478] sm:$0xf]
  %v853 = vld [vmem:[%s5 + $0x47c] sm:$0xf]
  %v854 = vld [vmem:[%s5 + $0x480] sm:$0xf]
  %v855 = vld [vmem:[%s5 + $0x484] sm:$0xf]
  %v856 = vld [vmem:[%s5 + $0x488] sm:$0xf]
  %v857 = vld [vmem:[%s5 + $0x48c] sm:$0xf]
  %v858 = vld [vmem:[%s5 + $0x490] sm:$0xf]
  %v859 = vld [vmem:[%s5 + $0x494] sm:$0xf]
  %v860 = vld [vmem:[%s5 + $0x498] sm:$0xf]
  %v861 = vld [vmem:[%s5 + $0x49c] sm:$0xf]
  %v862 = vld [vmem:[%s5 + $0x4a0] sm:$0xf]
  %v863 = vld [vmem:[%s5 + $0x4a4] sm:$0xf]
  %v864 = vld [vmem:[%s5 + $0x4a8] sm:$0xf]
  %v865 = vld [vmem:[%s5 + $0x4ac] sm:$0xf]
  %v866 = vld [vmem:[%s5 + $0x4b0] sm:$0xf]
  %v867 = vld [vmem:[%s5 + $0x4b4] sm:$0xf]
  %v868 = vld [vmem:[%s5 + $0x4b8] sm:$0xf]
  %v869 = vld [vmem:[%s5 + $0x4bc] sm:$0xf]
  %v870 = vld [vmem:[%s5 + $0x4c0] sm:$0xf]
  %v871 = vld [vmem:[%s5 + $0x4c4] sm:$0xf]
  %v872 = vld [vmem:[%s5 + $0x4c8] sm:$0xf]
  %v873 = vld [vmem:[%s5 + $0x4cc] sm:$0xf]
  %v874 = vld [vmem:[%s5 + $0x4d0] sm:$0xf]
  %v875 = vld [vmem:[%s5 + $0x4d4] sm:$0xf]
  %v876 = vld [vmem:[%s5 + $0x4d8] sm:$0xf]
  %v877 = vld [vmem:[%s5 + $0x4dc] sm:$0xf]
  %v878 = vld [vmem:[%s5 + $0x4e0] sm:$0xf]
  %v879 = vld [vmem:[%s5 + $0x4e4] sm:$0xf]
  %v880 = vld [vmem:[%s5 + $0x4e8] sm:$0xf]
  %v881 = vld [vmem:[%s5 + $0x4ec] sm:$0xf]
  %v882 = vld [vmem:[%s5 + $0x4f0] sm:$0xf]
  %v883 = vld [vmem:[%s5 + $0x4f4] sm:$0xf]
  %v884 = vld [vmem:[%s5 + $0x4f8] sm:$0xf]
  %v885 = vld [vmem:[%s5 + $0x4fc] sm:$0xf]
  %v886 = vld [vmem:[%s5 + $0x500] sm:$0xf]
  %v887 = vld [vmem:[%s5 + $0x504] sm:$0xf]
  %v888 = vld [vmem:[%s5 + $0x508] sm:$0xf]
  %v889 = vld [vmem:[%s5 + $0x50c] sm:$0xf]
  %v890 = vld [vmem:[%s5 + $0x510] sm:$0xf]
  %v891 = vld [vmem:[%s5 + $0x514] sm:$0xf]
  %v892 = vld [vmem:[%s5 + $0x518] sm:$0xf]
  %v893 = vld [vmem:[%s5 + $0x51c] sm:$0xf]
  %v894 = vld [vmem:[%s5 + $0x520] sm:$0xf]
  %v895 = vld [vmem:[%s5 + $0x524] sm:$0xf]
  %v896 = vld [vmem:[%s5 + $0x528] sm:$0xf]
  %v897 = vld [vmem:[%s5 + $0x52c] sm:$0xf]
  %v898 = vld [vmem:[%s5 + $0x530] sm:$0xf]
  %v899 = vld [vmem:[%s5 + $0x534] sm:$0xf]
  %v900 = vld [vmem:[%s5 + $0x538] sm:$0xf]
  %v901 = vld [vmem:[%s5 + $0x53c] sm:$0xf]
  %v902 = vld [vmem:[%s5 + $0x540] sm:$0xf]
  %v903 = vld [vmem:[%s5 + $0x544] sm:$0xf]
  %v904 = vld [vmem:[%s5 + $0x548] sm:$0xf]
  %v905 = vld [vmem:[%s5 + $0x54c] sm:$0xf]
  %v906 = vld [vmem:[%s5 + $0x550] sm:$0xf]
  %v907 = vld [vmem:[%s5 + $0x554] sm:$0xf]
  %v908 = vld [vmem:[%s5 + $0x558] sm:$0xf]
  %v909 = vld [vmem:[%s5 + $0x55c] sm:$0xf]
  %v910 = vld [vmem:[%s5 + $0x560] sm:$0xf]
  %v911 = vld [vmem:[%s5 + $0x564] sm:$0xf]
  %v912 = vld [vmem:[%s5 + $0x568] sm:$0xf]
  %v913 = vld [vmem:[%s5 + $0x56c] sm:$0xf]
  %v914 = vld [vmem:[%s5 + $0x570] sm:$0xf]
  %v915 = vld [vmem:[%s5 + $0x574] sm:$0xf]
  %v916 = vld [vmem:[%s5 + $0x578] sm:$0xf]
  %v917 = vld [vmem:[%s5 + $0x57c] sm:$0xf]
  %v918 = vld [vmem:[%s5 + $0x580] sm:$0xf]
  %v919 = vld [vmem:[%s5 + $0x584] sm:$0xf]
  %v920 = vld [vmem:[%s5 + $0x588] sm:$0xf]
  %v921 = vld [vmem:[%s5 + $0x58c] sm:$0xf]
  %v922 = vld [vmem:[%s5 + $0x590] sm:$0xf]
  %v923 = vld [vmem:[%s5 + $0x594] sm:$0xf]
  %v924 = vld [vmem:[%s5 + $0x598] sm:$0xf]
  %v925 = vld [vmem:[%s5 + $0x59c] sm:$0xf]
  %v926 = vld [vmem:[%s5 + $0x5a0] sm:$0xf]
  %v927 = vld [vmem:[%s5 + $0x5a4] sm:$0xf]
  %v928 = vld [vmem:[%s5 + $0x5a8] sm:$0xf]
  %v929 = vld [vmem:[%s5 + $0x5ac] sm:$0xf]
  %v930 = vld [vmem:[%s5 + $0x5b0] sm:$0xf]
  %v931 = vld [vmem:[%s5 + $0x5b4] sm:$0xf]
  %v932 = vld [vmem:[%s5 + $0x5b8] sm:$0xf]
  %v933 = vld [vmem:[%s5 + $0x5bc] sm:$0xf]
  %v934 = vld [vmem:[%s5 + $0x5c0] sm:$0xf]
  %v935 = vld [vmem:[%s5 + $0x5c4] sm:$0xf]
  %v936 = vld [vmem:[%s5 + $0x5c8] sm:$0xf]
  %v937 = vld [vmem:[%s5 + $0x5cc] sm:$0xf]
  %v938 = vld [vmem:[%s5 + $0x5d0] sm:$0xf]
  %v939 = vld [vmem:[%s5 + $0x5d4] sm:$0xf]
  %v940 = vld [vmem:[%s5 + $0x5d8] sm:$0xf]
  %v941 = vld [vmem:[%s5 + $0x5dc] sm:$0xf]
  %v942 = vld [vmem:[%s5 + $0x5e0] sm:$0xf]
  %v943 = vld [vmem:[%s5 + $0x5e4] sm:$0xf]
  %v944 = vld [vmem:[%s5 + $0x5e8] sm:$0xf]
  %v945 = vld [vmem:[%s5 + $0x5ec] sm:$0xf]
  %v946 = vld [vmem:[%s5 + $0x5f0] sm:$0xf]
  %v947 = vld [vmem:[%s5 + $0x5f4] sm:$0xf]
  %v948 = vld [vmem:[%s5 + $0x5f8] sm:$0xf]
  %v949 = vld [vmem:[%s5 + $0x5fc] sm:$0xf]
  %v950 = vld [vmem:[%s5 + $0x600] sm:$0xf]
  %v951 = vld [vmem:[%s5 + $0x604] sm:$0xf]
  %v952 = vld [vmem:[%s5 + $0x608] sm:$0xf]
  %v953 = vld [vmem:[%s5 + $0x60c] sm:$0xf]
  %v954 = vld [vmem:[%s5 + $0x610] sm:$0xf]
  %v955 = vld [vmem:[%s5 + $0x614] sm:$0xf]
  %v956 = vld [vmem:[%s5 + $0x618] sm:$0xf]
  %v957 = vld [vmem:[%s5 + $0x61c] sm:$0xf]
  %v958 = vld [vmem:[%s5 + $0x620] sm:$0xf]
  %v959 = vld [vmem:[%s5 + $0x624] sm:$0xf]
  %v960 = vld [vmem:[%s5 + $0x628] sm:$0xf]
  %v961 = vld [vmem:[%s5 + $0x62c] sm:$0xf]
  %v962 = vld [vmem:[%s5 + $0x630] sm:$0xf]
  %v963 = vld [vmem:[%s5 + $0x634] sm:$0xf]
  %v964 = vld [vmem:[%s5 + $0x638] sm:$0xf]
  %v965 = vld [vmem:[%s5 + $0x63c] sm:$0xf]
  %v966 = vld [vmem:[%s5 + $0x640] sm:$0xf]
  %v967 = vld [vmem:[%s5 + $0x644] sm:$0xf]
  %v968 = vld [vmem:[%s5 + $0x648] sm:$0xf]
  %v969 = vld [vmem:[%s5 + $0x64c] sm:$0xf]
  %v970 = vld [vmem:[%s5 + $0x650] sm:$0xf]
  %v971 = vld [vmem:[%s5 + $0x654] sm:$0xf]
  %v972 = vld [vmem:[%s5 + $0x658] sm:$0xf]
  %v973 = vld [vmem:[%s5 + $0x65c] sm:$0xf]
  %v974 = vld [vmem:[%s5 + $0x660] sm:$0xf]
  %v975 = vld [vmem:[%s5 + $0x664] sm:$0xf]
  %v976 = vld [vmem:[%s5 + $0x668] sm:$0xf]
  %v977 = vld [vmem:[%s5 + $0x66c] sm:$0xf]
  %v978 = vld [vmem:[%s5 + $0x670] sm:$0xf]
  %v979 = vld [vmem:[%s5 + $0x674] sm:$0xf]
  %v980 = vld [vmem:[%s5 + $0x678] sm:$0xf]
  %v981 = vld [vmem:[%s5 + $0x67c] sm:$0xf]
  %v982 = vld [vmem:[%s5 + $0x680] sm:$0xf]
  %v983 = vld [vmem:[%s5 + $0x684] sm:$0xf]
  %v984 = vld [vmem:[%s5 + $0x688] sm:$0xf]
  %v985 = vld [vmem:[%s5 + $0x68c] sm:$0xf]
  %v986 = vld [vmem:[%s5 + $0x690] sm:$0xf]
  %v987 = vld [vmem:[%s5 + $0x694] sm:$0xf]
  %v988 = vld [vmem:[%s5 + $0x698] sm:$0xf]
  %v989 = vld [vmem:[%s5 + $0x69c] sm:$0xf]
  %v990 = vld [vmem:[%s5 + $0x6a0] sm:$0xf]
  %v991 = vld [vmem:[%s5 + $0x6a4] sm:$0xf]
  %v992 = vld [vmem:[%s5 + $0x6a8] sm:$0xf]
  %v993 = vld [vmem:[%s5 + $0x6ac] sm:$0xf]
  %v994 = vld [vmem:[%s5 + $0x6b0] sm:$0xf]
  %v995 = vld [vmem:[%s5 + $0x6b4] sm:$0xf]
  %v996 = vld [vmem:[%s5 + $0x6b8] sm:$0xf]
  %v997 = vld [vmem:[%s5 + $0x6bc] sm:$0xf]
  %v998 = vld [vmem:[%s5 + $0x6c0] sm:$0xf]
  %v999 = vld [vmem:[%s5 + $0x6c4] sm:$0xf]
  %v1000 = vld [vmem:[%s5 + $0x6c8] sm:$0xf]
  %v1001 = vld [vmem:[%s5 + $0x6cc] sm:$0xf]
  %v1002 = vld [vmem:[%s5 + $0x6d0] sm:$0xf]
  %v1003 = vld [vmem:[%s5 + $0x6d4] sm:$0xf]
  %v1004 = vld [vmem:[%s5 + $0x6d8] sm:$0xf]
  %v1005 = vld [vmem:[%s5 + $0x6dc] sm:$0xf]
  %v1006 = vld [vmem:[%s5 + $0x6e0] sm:$0xf]
  %v1007 = vld [vmem:[%s5 + $0x6e4] sm:$0xf]
  %v1008 = vld [vmem:[%s5 + $0x6e8] sm:$0xf]
  %v1009 = vld [vmem:[%s5 + $0x6ec] sm:$0xf]
  %v1010 = vld [vmem:[%s5 + $0x6f0] sm:$0xf]
  %v1011 = vld [vmem:[%s5 + $0x6f4] sm:$0xf]
  %v1012 = vld [vmem:[%s5 + $0x6f8] sm:$0xf]
  %v1013 = vld [vmem:[%s5 + $0x6fc] sm:$0xf]
  %v1014 = vld [vmem:[%s5 + $0x700] sm:$0xf]
  %v1015 = vld [vmem:[%s5 + $0x704] sm:$0xf]
  %v1016 = vld [vmem:[%s5 + $0x708] sm:$0xf]
  %v1017 = vld [vmem:[%s5 + $0x70c] sm:$0xf]
  %v1018 = vld [vmem:[%s5 + $0x710] sm:$0xf]
  %v1019 = vld [vmem:[%s5 + $0x714] sm:$0xf]
  %v1020 = vld [vmem:[%s5 + $0x718] sm:$0xf]
  %v1021 = vld [vmem:[%s5 + $0x71c] sm:$0xf]
  %v1022 = vld [vmem:[%s5 + $0x720] sm:$0xf]
  %v1023 = vld [vmem:[%s5 + $0x724] sm:$0xf]
  %v1024 = vld [vmem:[%s5 + $0x728] sm:$0xf]
  %v1025 = vld [vmem:[%s5 + $0x72c] sm:$0xf]
  %v1026 = vld [vmem:[%s5 + $0x730] sm:$0xf]
  %v1027 = vld [vmem:[%s5 + $0x734] sm:$0xf]
  %v1028 = vld [vmem:[%s5 + $0x738] sm:$0xf]
  %v1029 = vld [vmem:[%s5 + $0x73c] sm:$0xf]
  %v1030 = vld [vmem:[%s5 + $0x740] sm:$0xf]
  %v1031 = vld [vmem:[%s5 + $0x744] sm:$0xf]
  %v1032 = vld [vmem:[%s5 + $0x748] sm:$0xf]
  %v1033 = vld [vmem:[%s5 + $0x74c] sm:$0xf]
  %v1034 = vld [vmem:[%s5 + $0x750] sm:$0xf]
  %v1035 = vld [vmem:[%s5 + $0x754] sm:$0xf]
  %v1036 = vld [vmem:[%s5 + $0x758] sm:$0xf]
  %v1037 = vld [vmem:[%s5 + $0x75c] sm:$0xf]
  %v1038 = vld [vmem:[%s5 + $0x760] sm:$0xf]
  %v1039 = vld [vmem:[%s5 + $0x764] sm:$0xf]
  %v1040 = vld [vmem:[%s5 + $0x768] sm:$0xf]
  %v1041 = vld [vmem:[%s5 + $0x76c] sm:$0xf]
  %v1042 = vld [vmem:[%s5 + $0x770] sm:$0xf]
  %v1043 = vld [vmem:[%s5 + $0x774] sm:$0xf]
  %v1044 = vld [vmem:[%s5 + $0x778] sm:$0xf]
  %v1045 = vld [vmem:[%s5 + $0x77c] sm:$0xf]
  %v1046 = vld [vmem:[%s5 + $0x780] sm:$0xf]
  %v1047 = vld [vmem:[%s5 + $0x784] sm:$0xf]
  %v1048 = vld [vmem:[%s5 + $0x788] sm:$0xf]
  %v1049 = vld [vmem:[%s5 + $0x78c] sm:$0xf]
  %v1050 = vld [vmem:[%s5 + $0x790] sm:$0xf]
  %v1051 = vld [vmem:[%s5 + $0x794] sm:$0xf]
  %v1052 = vld [vmem:[%s5 + $0x798] sm:$0xf]
  %v1053 = vld [vmem:[%s5 + $0x79c] sm:$0xf]
  %v1054 = vld [vmem:[%s5 + $0x7a0] sm:$0xf]
  %v1055 = vld [vmem:[%s5 + $0x7a4] sm:$0xf]
  %v1056 = vld [vmem:[%s5 + $0x7a8] sm:$0xf]
  %v1057 = vld [vmem:[%s5 + $0x7ac] sm:$0xf]
  %v1058 = vld [vmem:[%s5 + $0x7b0] sm:$0xf]
  %v1059 = vld [vmem:[%s5 + $0x7b4] sm:$0xf]
  %v1060 = vld [vmem:[%s5 + $0x7b8] sm:$0xf]
  %v1061 = vld [vmem:[%s5 + $0x7bc] sm:$0xf]
  %v1062 = vld [vmem:[%s5 + $0x7c0] sm:$0xf]
  %v1063 = vld [vmem:[%s5 + $0x7c4] sm:$0xf]
  %v1064 = vld [vmem:[%s5 + $0x7c8] sm:$0xf]
  %v1065 = vld [vmem:[%s5 + $0x7cc] sm:$0xf]
  %v1066 = vld [vmem:[%s5 + $0x7d0] sm:$0xf]
  %v1067 = vld [vmem:[%s5 + $0x7d4] sm:$0xf]
  %v1068 = vld [vmem:[%s5 + $0x7d8] sm:$0xf]
  %v1069 = vld [vmem:[%s5 + $0x7dc] sm:$0xf]
  %v1070 = vld [vmem:[%s5 + $0x7e0] sm:$0xf]
  %v1071 = vld [vmem:[%s5 + $0x7e4] sm:$0xf]
  %v1072 = vld [vmem:[%s5 + $0x7e8] sm:$0xf]
  %v1073 = vld [vmem:[%s5 + $0x7ec] sm:$0xf]
  %v1074 = vld [vmem:[%s5 + $0x7f0] sm:$0xf]
  %v1075 = vld [vmem:[%s5 + $0x7f4] sm:$0xf]
  %v1076 = vld [vmem:[%s5 + $0x7f8] sm:$0xf]
  %v1077 = vld [vmem:[%s5 + $0x7fc] sm:$0xf]
  %v1078 = vld [vmem:[%s6] sm:$0x1]
  %v1080 = vperm.slane %v1078, 0
  %v1594 = vunpack.c.l.b16 %v566
  %v1595 = vunpack.c.l.b16 %v567
  %v1596 = vunpack.c.l.b16 %v568
  %v1597 = vunpack.c.l.b16 %v569
  %v1598 = vunpack.c.l.b16 %v570
  %v1599 = vunpack.c.l.b16 %v571
  %v1600 = vunpack.c.l.b16 %v572
  %v1601 = vunpack.c.l.b16 %v573
  %v1602 = vunpack.c.l.b16 %v574
  %v1603 = vunpack.c.l.b16 %v575
  %v1604 = vunpack.c.l.b16 %v576
  %v1605 = vunpack.c.l.b16 %v577
  %v1606 = vunpack.c.l.b16 %v578
  %v1607 = vunpack.c.l.b16 %v579
  %v1608 = vunpack.c.l.b16 %v580
  %v1609 = vunpack.c.l.b16 %v581
  %v1610 = vunpack.c.l.b16 %v582
  %v1611 = vunpack.c.l.b16 %v583
  %v1612 = vunpack.c.l.b16 %v584
  %v1613 = vunpack.c.l.b16 %v585
  %v1614 = vunpack.c.l.b16 %v586
  %v1615 = vunpack.c.l.b16 %v587
  %v1616 = vunpack.c.l.b16 %v588
  %v1617 = vunpack.c.l.b16 %v589
  %v1618 = vunpack.c.l.b16 %v590
  %v1619 = vunpack.c.l.b16 %v591
  %v1620 = vunpack.c.l.b16 %v592
  %v1621 = vunpack.c.l.b16 %v593
  %v1622 = vunpack.c.l.b16 %v594
  %v1623 = vunpack.c.l.b16 %v595
  %v1624 = vunpack.c.l.b16 %v596
  %v1625 = vunpack.c.l.b16 %v597
  %v1626 = vunpack.c.l.b16 %v598
  %v1627 = vunpack.c.l.b16 %v599
  %v1628 = vunpack.c.l.b16 %v600
  %v1629 = vunpack.c.l.b16 %v601
  %v1630 = vunpack.c.l.b16 %v602
  %v1631 = vunpack.c.l.b16 %v603
  %v1632 = vunpack.c.l.b16 %v604
  %v1633 = vunpack.c.l.b16 %v605
  %v1634 = vunpack.c.l.b16 %v606
  %v1635 = vunpack.c.l.b16 %v607
  %v1636 = vunpack.c.l.b16 %v608
  %v1637 = vunpack.c.l.b16 %v609
  %v1638 = vunpack.c.l.b16 %v610
  %v1639 = vunpack.c.l.b16 %v611
  %v1640 = vunpack.c.l.b16 %v612
  %v1641 = vunpack.c.l.b16 %v613
  %v1642 = vunpack.c.l.b16 %v614
  %v1643 = vunpack.c.l.b16 %v615
  %v1644 = vunpack.c.l.b16 %v616
  %v1645 = vunpack.c.l.b16 %v617
  %v1646 = vunpack.c.l.b16 %v618
  %v1647 = vunpack.c.l.b16 %v619
  %v1648 = vunpack.c.l.b16 %v620
  %v1649 = vunpack.c.l.b16 %v621
  %v1650 = vunpack.c.l.b16 %v622
  %v1651 = vunpack.c.l.b16 %v623
  %v1652 = vunpack.c.l.b16 %v624
  %v1653 = vunpack.c.l.b16 %v625
  %v1654 = vunpack.c.l.b16 %v626
  %v1655 = vunpack.c.l.b16 %v627
  %v1656 = vunpack.c.l.b16 %v628
  %v1657 = vunpack.c.l.b16 %v629
  %v1658 = vunpack.c.l.b16 %v630
  %v1659 = vunpack.c.l.b16 %v631
  %v1660 = vunpack.c.l.b16 %v632
  %v1661 = vunpack.c.l.b16 %v633
  %v1662 = vunpack.c.l.b16 %v634
  %v1663 = vunpack.c.l.b16 %v635
  %v1664 = vunpack.c.l.b16 %v636
  %v1665 = vunpack.c.l.b16 %v637
  %v1666 = vunpack.c.l.b16 %v638
  %v1667 = vunpack.c.l.b16 %v639
  %v1668 = vunpack.c.l.b16 %v640
  %v1669 = vunpack.c.l.b16 %v641
  %v1670 = vunpack.c.l.b16 %v642
  %v1671 = vunpack.c.l.b16 %v643
  %v1672 = vunpack.c.l.b16 %v644
  %v1673 = vunpack.c.l.b16 %v645
  %v1674 = vunpack.c.l.b16 %v646
  %v1675 = vunpack.c.l.b16 %v647
  %v1676 = vunpack.c.l.b16 %v648
  %v1677 = vunpack.c.l.b16 %v649
  %v1678 = vunpack.c.l.b16 %v650
  %v1679 = vunpack.c.l.b16 %v651
  %v1680 = vunpack.c.l.b16 %v652
  %v1681 = vunpack.c.l.b16 %v653
  %v1682 = vunpack.c.l.b16 %v654
  %v1683 = vunpack.c.l.b16 %v655
  %v1684 = vunpack.c.l.b16 %v656
  %v1685 = vunpack.c.l.b16 %v657
  %v1686 = vunpack.c.l.b16 %v658
  %v1687 = vunpack.c.l.b16 %v659
  %v1688 = vunpack.c.l.b16 %v660
  %v1689 = vunpack.c.l.b16 %v661
  %v1690 = vunpack.c.l.b16 %v662
  %v1691 = vunpack.c.l.b16 %v663
  %v1692 = vunpack.c.l.b16 %v664
  %v1693 = vunpack.c.l.b16 %v665
  %v1694 = vunpack.c.l.b16 %v666
  %v1695 = vunpack.c.l.b16 %v667
  %v1696 = vunpack.c.l.b16 %v668
  %v1697 = vunpack.c.l.b16 %v669
  %v1698 = vunpack.c.l.b16 %v670
  %v1699 = vunpack.c.l.b16 %v671
  %v1700 = vunpack.c.l.b16 %v672
  %v1701 = vunpack.c.l.b16 %v673
  %v1702 = vunpack.c.l.b16 %v674
  %v1703 = vunpack.c.l.b16 %v675
  %v1704 = vunpack.c.l.b16 %v676
  %v1705 = vunpack.c.l.b16 %v677
  %v1706 = vunpack.c.l.b16 %v678
  %v1707 = vunpack.c.l.b16 %v679
  %v1708 = vunpack.c.l.b16 %v680
  %v1709 = vunpack.c.l.b16 %v681
  %v1710 = vunpack.c.l.b16 %v682
  %v1711 = vunpack.c.l.b16 %v683
  %v1712 = vunpack.c.l.b16 %v684
  %v1713 = vunpack.c.l.b16 %v685
  %v1714 = vunpack.c.l.b16 %v686
  %v1715 = vunpack.c.l.b16 %v687
  %v1716 = vunpack.c.l.b16 %v688
  %v1717 = vunpack.c.l.b16 %v689
  %v1718 = vunpack.c.l.b16 %v690
  %v1719 = vunpack.c.l.b16 %v691
  %v1720 = vunpack.c.l.b16 %v692
  %v1721 = vunpack.c.l.b16 %v693
  %v1722 = vunpack.c.l.b16 %v694
  %v1723 = vunpack.c.l.b16 %v695
  %v1724 = vunpack.c.l.b16 %v696
  %v1725 = vunpack.c.l.b16 %v697
  %v1726 = vunpack.c.l.b16 %v698
  %v1727 = vunpack.c.l.b16 %v699
  %v1728 = vunpack.c.l.b16 %v700
  %v1729 = vunpack.c.l.b16 %v701
  %v1730 = vunpack.c.l.b16 %v702
  %v1731 = vunpack.c.l.b16 %v703
  %v1732 = vunpack.c.l.b16 %v704
  %v1733 = vunpack.c.l.b16 %v705
  %v1734 = vunpack.c.l.b16 %v706
  %v1735 = vunpack.c.l.b16 %v707
  %v1736 = vunpack.c.l.b16 %v708
  %v1737 = vunpack.c.l.b16 %v709
  %v1738 = vunpack.c.l.b16 %v710
  %v1739 = vunpack.c.l.b16 %v711
  %v1740 = vunpack.c.l.b16 %v712
  %v1741 = vunpack.c.l.b16 %v713
  %v1742 = vunpack.c.l.b16 %v714
  %v1743 = vunpack.c.l.b16 %v715
  %v1744 = vunpack.c.l.b16 %v716
  %v1745 = vunpack.c.l.b16 %v717
  %v1746 = vunpack.c.l.b16 %v718
  %v1747 = vunpack.c.l.b16 %v719
  %v1748 = vunpack.c.l.b16 %v720
  %v1749 = vunpack.c.l.b16 %v721
  %v1750 = vunpack.c.l.b16 %v722
  %v1751 = vunpack.c.l.b16 %v723
  %v1752 = vunpack.c.l.b16 %v724
  %v1753 = vunpack.c.l.b16 %v725
  %v1754 = vunpack.c.l.b16 %v726
  %v1755 = vunpack.c.l.b16 %v727
  %v1756 = vunpack.c.l.b16 %v728
  %v1757 = vunpack.c.l.b16 %v729
  %v1758 = vunpack.c.l.b16 %v730
  %v1759 = vunpack.c.l.b16 %v731
  %v1760 = vunpack.c.l.b16 %v732
  %v1761 = vunpack.c.l.b16 %v733
  %v1762 = vunpack.c.l.b16 %v734
  %v1763 = vunpack.c.l.b16 %v735
  %v1764 = vunpack.c.l.b16 %v736
  %v1765 = vunpack.c.l.b16 %v737
  %v1766 = vunpack.c.l.b16 %v738
  %v1767 = vunpack.c.l.b16 %v739
  %v1768 = vunpack.c.l.b16 %v740
  %v1769 = vunpack.c.l.b16 %v741
  %v1770 = vunpack.c.l.b16 %v742
  %v1771 = vunpack.c.l.b16 %v743
  %v1772 = vunpack.c.l.b16 %v744
  %v1773 = vunpack.c.l.b16 %v745
  %v1774 = vunpack.c.l.b16 %v746
  %v1775 = vunpack.c.l.b16 %v747
  %v1776 = vunpack.c.l.b16 %v748
  %v1777 = vunpack.c.l.b16 %v749
  %v1778 = vunpack.c.l.b16 %v750
  %v1779 = vunpack.c.l.b16 %v751
  %v1780 = vunpack.c.l.b16 %v752
  %v1781 = vunpack.c.l.b16 %v753
  %v1782 = vunpack.c.l.b16 %v754
  %v1783 = vunpack.c.l.b16 %v755
  %v1784 = vunpack.c.l.b16 %v756
  %v1785 = vunpack.c.l.b16 %v757
  %v1786 = vunpack.c.l.b16 %v758
  %v1787 = vunpack.c.l.b16 %v759
  %v1788 = vunpack.c.l.b16 %v760
  %v1789 = vunpack.c.l.b16 %v761
  %v1790 = vunpack.c.l.b16 %v762
  %v1791 = vunpack.c.l.b16 %v763
  %v1792 = vunpack.c.l.b16 %v764
  %v1793 = vunpack.c.l.b16 %v765
  %v1794 = vunpack.c.l.b16 %v766
  %v1795 = vunpack.c.l.b16 %v767
  %v1796 = vunpack.c.l.b16 %v768
  %v1797 = vunpack.c.l.b16 %v769
  %v1798 = vunpack.c.l.b16 %v770
  %v1799 = vunpack.c.l.b16 %v771
  %v1800 = vunpack.c.l.b16 %v772
  %v1801 = vunpack.c.l.b16 %v773
  %v1802 = vunpack.c.l.b16 %v774
  %v1803 = vunpack.c.l.b16 %v775
  %v1804 = vunpack.c.l.b16 %v776
  %v1805 = vunpack.c.l.b16 %v777
  %v1806 = vunpack.c.l.b16 %v778
  %v1807 = vunpack.c.l.b16 %v779
  %v1808 = vunpack.c.l.b16 %v780
  %v1809 = vunpack.c.l.b16 %v781
  %v1810 = vunpack.c.l.b16 %v782
  %v1811 = vunpack.c.l.b16 %v783
  %v1812 = vunpack.c.l.b16 %v784
  %v1813 = vunpack.c.l.b16 %v785
  %v1814 = vunpack.c.l.b16 %v786
  %v1815 = vunpack.c.l.b16 %v787
  %v1816 = vunpack.c.l.b16 %v788
  %v1817 = vunpack.c.l.b16 %v789
  %v1818 = vunpack.c.l.b16 %v790
  %v1819 = vunpack.c.l.b16 %v791
  %v1820 = vunpack.c.l.b16 %v792
  %v1821 = vunpack.c.l.b16 %v793
  %v1822 = vunpack.c.l.b16 %v794
  %v1823 = vunpack.c.l.b16 %v795
  %v1824 = vunpack.c.l.b16 %v796
  %v1825 = vunpack.c.l.b16 %v797
  %v1826 = vunpack.c.l.b16 %v798
  %v1827 = vunpack.c.l.b16 %v799
  %v1828 = vunpack.c.l.b16 %v800
  %v1829 = vunpack.c.l.b16 %v801
  %v1830 = vunpack.c.l.b16 %v802
  %v1831 = vunpack.c.l.b16 %v803
  %v1832 = vunpack.c.l.b16 %v804
  %v1833 = vunpack.c.l.b16 %v805
  %v1834 = vunpack.c.l.b16 %v806
  %v1835 = vunpack.c.l.b16 %v807
  %v1836 = vunpack.c.l.b16 %v808
  %v1837 = vunpack.c.l.b16 %v809
  %v1838 = vunpack.c.l.b16 %v810
  %v1839 = vunpack.c.l.b16 %v811
  %v1840 = vunpack.c.l.b16 %v812
  %v1841 = vunpack.c.l.b16 %v813
  %v1842 = vunpack.c.l.b16 %v814
  %v1843 = vunpack.c.l.b16 %v815
  %v1844 = vunpack.c.l.b16 %v816
  %v1845 = vunpack.c.l.b16 %v817
  %v1846 = vunpack.c.l.b16 %v818
  %v1847 = vunpack.c.l.b16 %v819
  %v1848 = vunpack.c.l.b16 %v820
  %v1849 = vunpack.c.l.b16 %v821
  %v1850 = vunpack.c.l.b16 %v822
  %v1851 = vunpack.c.l.b16 %v823
  %v1852 = vunpack.c.l.b16 %v824
  %v1853 = vunpack.c.l.b16 %v825
  %v1854 = vunpack.c.l.b16 %v826
  %v1855 = vunpack.c.l.b16 %v827
  %v1856 = vunpack.c.l.b16 %v828
  %v1857 = vunpack.c.l.b16 %v829
  %v1858 = vunpack.c.l.b16 %v830
  %v1859 = vunpack.c.l.b16 %v831
  %v1860 = vunpack.c.l.b16 %v832
  %v1861 = vunpack.c.l.b16 %v833
  %v1862 = vunpack.c.l.b16 %v834
  %v1863 = vunpack.c.l.b16 %v835
  %v1864 = vunpack.c.l.b16 %v836
  %v1865 = vunpack.c.l.b16 %v837
  %v1866 = vunpack.c.l.b16 %v838
  %v1867 = vunpack.c.l.b16 %v839
  %v1868 = vunpack.c.l.b16 %v840
  %v1869 = vunpack.c.l.b16 %v841
  %v1870 = vunpack.c.l.b16 %v842
  %v1871 = vunpack.c.l.b16 %v843
  %v1872 = vunpack.c.l.b16 %v844
  %v1873 = vunpack.c.l.b16 %v845
  %v1874 = vunpack.c.l.b16 %v846
  %v1875 = vunpack.c.l.b16 %v847
  %v1876 = vunpack.c.l.b16 %v848
  %v1877 = vunpack.c.l.b16 %v849
  %v1878 = vunpack.c.l.b16 %v850
  %v1879 = vunpack.c.l.b16 %v851
  %v1880 = vunpack.c.l.b16 %v852
  %v1881 = vunpack.c.l.b16 %v853
  %v1882 = vunpack.c.l.b16 %v854
  %v1883 = vunpack.c.l.b16 %v855
  %v1884 = vunpack.c.l.b16 %v856
  %v1885 = vunpack.c.l.b16 %v857
  %v1886 = vunpack.c.l.b16 %v858
  %v1887 = vunpack.c.l.b16 %v859
  %v1888 = vunpack.c.l.b16 %v860
  %v1889 = vunpack.c.l.b16 %v861
  %v1890 = vunpack.c.l.b16 %v862
  %v1891 = vunpack.c.l.b16 %v863
  %v1892 = vunpack.c.l.b16 %v864
  %v1893 = vunpack.c.l.b16 %v865
  %v1894 = vunpack.c.l.b16 %v866
  %v1895 = vunpack.c.l.b16 %v867
  %v1896 = vunpack.c.l.b16 %v868
  %v1897 = vunpack.c.l.b16 %v869
  %v1898 = vunpack.c.l.b16 %v870
  %v1899 = vunpack.c.l.b16 %v871
  %v1900 = vunpack.c.l.b16 %v872
  %v1901 = vunpack.c.l.b16 %v873
  %v1902 = vunpack.c.l.b16 %v874
  %v1903 = vunpack.c.l.b16 %v875
  %v1904 = vunpack.c.l.b16 %v876
  %v1905 = vunpack.c.l.b16 %v877
  %v1906 = vunpack.c.l.b16 %v878
  %v1907 = vunpack.c.l.b16 %v879
  %v1908 = vunpack.c.l.b16 %v880
  %v1909 = vunpack.c.l.b16 %v881
  %v1910 = vunpack.c.l.b16 %v882
  %v1911 = vunpack.c.l.b16 %v883
  %v1912 = vunpack.c.l.b16 %v884
  %v1913 = vunpack.c.l.b16 %v885
  %v1914 = vunpack.c.l.b16 %v886
  %v1915 = vunpack.c.l.b16 %v887
  %v1916 = vunpack.c.l.b16 %v888
  %v1917 = vunpack.c.l.b16 %v889
  %v1918 = vunpack.c.l.b16 %v890
  %v1919 = vunpack.c.l.b16 %v891
  %v1920 = vunpack.c.l.b16 %v892
  %v1921 = vunpack.c.l.b16 %v893
  %v1922 = vunpack.c.l.b16 %v894
  %v1923 = vunpack.c.l.b16 %v895
  %v1924 = vunpack.c.l.b16 %v896
  %v1925 = vunpack.c.l.b16 %v897
  %v1926 = vunpack.c.l.b16 %v898
  %v1927 = vunpack.c.l.b16 %v899
  %v1928 = vunpack.c.l.b16 %v900
  %v1929 = vunpack.c.l.b16 %v901
  %v1930 = vunpack.c.l.b16 %v902
  %v1931 = vunpack.c.l.b16 %v903
  %v1932 = vunpack.c.l.b16 %v904
  %v1933 = vunpack.c.l.b16 %v905
  %v1934 = vunpack.c.l.b16 %v906
  %v1935 = vunpack.c.l.b16 %v907
  %v1936 = vunpack.c.l.b16 %v908
  %v1937 = vunpack.c.l.b16 %v909
  %v1938 = vunpack.c.l.b16 %v910
  %v1939 = vunpack.c.l.b16 %v911
  %v1940 = vunpack.c.l.b16 %v912
  %v1941 = vunpack.c.l.b16 %v913
  %v1942 = vunpack.c.l.b16 %v914
  %v1943 = vunpack.c.l.b16 %v915
  %v1944 = vunpack.c.l.b16 %v916
  %v1945 = vunpack.c.l.b16 %v917
  %v1946 = vunpack.c.l.b16 %v918
  %v1947 = vunpack.c.l.b16 %v919
  %v1948 = vunpack.c.l.b16 %v920
  %v1949 = vunpack.c.l.b16 %v921
  %v1950 = vunpack.c.l.b16 %v922
  %v1951 = vunpack.c.l.b16 %v923
  %v1952 = vunpack.c.l.b16 %v924
  %v1953 = vunpack.c.l.b16 %v925
  %v1954 = vunpack.c.l.b16 %v926
  %v1955 = vunpack.c.l.b16 %v927
  %v1956 = vunpack.c.l.b16 %v928
  %v1957 = vunpack.c.l.b16 %v929
  %v1958 = vunpack.c.l.b16 %v930
  %v1959 = vunpack.c.l.b16 %v931
  %v1960 = vunpack.c.l.b16 %v932
  %v1961 = vunpack.c.l.b16 %v933
  %v1962 = vunpack.c.l.b16 %v934
  %v1963 = vunpack.c.l.b16 %v935
  %v1964 = vunpack.c.l.b16 %v936
  %v1965 = vunpack.c.l.b16 %v937
  %v1966 = vunpack.c.l.b16 %v938
  %v1967 = vunpack.c.l.b16 %v939
  %v1968 = vunpack.c.l.b16 %v940
  %v1969 = vunpack.c.l.b16 %v941
  %v1970 = vunpack.c.l.b16 %v942
  %v1971 = vunpack.c.l.b16 %v943
  %v1972 = vunpack.c.l.b16 %v944
  %v1973 = vunpack.c.l.b16 %v945
  %v1974 = vunpack.c.l.b16 %v946
  %v1975 = vunpack.c.l.b16 %v947
  %v1976 = vunpack.c.l.b16 %v948
  %v1977 = vunpack.c.l.b16 %v949
  %v1978 = vunpack.c.l.b16 %v950
  %v1979 = vunpack.c.l.b16 %v951
  %v1980 = vunpack.c.l.b16 %v952
  %v1981 = vunpack.c.l.b16 %v953
  %v1982 = vunpack.c.l.b16 %v954
  %v1983 = vunpack.c.l.b16 %v955
  %v1984 = vunpack.c.l.b16 %v956
  %v1985 = vunpack.c.l.b16 %v957
  %v1986 = vunpack.c.l.b16 %v958
  %v1987 = vunpack.c.l.b16 %v959
  %v1988 = vunpack.c.l.b16 %v960
  %v1989 = vunpack.c.l.b16 %v961
  %v1990 = vunpack.c.l.b16 %v962
  %v1991 = vunpack.c.l.b16 %v963
  %v1992 = vunpack.c.l.b16 %v964
  %v1993 = vunpack.c.l.b16 %v965
  %v1994 = vunpack.c.l.b16 %v966
  %v1995 = vunpack.c.l.b16 %v967
  %v1996 = vunpack.c.l.b16 %v968
  %v1997 = vunpack.c.l.b16 %v969
  %v1998 = vunpack.c.l.b16 %v970
  %v1999 = vunpack.c.l.b16 %v971
  %v2000 = vunpack.c.l.b16 %v972
  %v2001 = vunpack.c.l.b16 %v973
  %v2002 = vunpack.c.l.b16 %v974
  %v2003 = vunpack.c.l.b16 %v975
  %v2004 = vunpack.c.l.b16 %v976
  %v2005 = vunpack.c.l.b16 %v977
  %v2006 = vunpack.c.l.b16 %v978
  %v2007 = vunpack.c.l.b16 %v979
  %v2008 = vunpack.c.l.b16 %v980
  %v2009 = vunpack.c.l.b16 %v981
  %v2010 = vunpack.c.l.b16 %v982
  %v2011 = vunpack.c.l.b16 %v983
  %v2012 = vunpack.c.l.b16 %v984
  %v2013 = vunpack.c.l.b16 %v985
  %v2014 = vunpack.c.l.b16 %v986
  %v2015 = vunpack.c.l.b16 %v987
  %v2016 = vunpack.c.l.b16 %v988
  %v2017 = vunpack.c.l.b16 %v989
  %v2018 = vunpack.c.l.b16 %v990
  %v2019 = vunpack.c.l.b16 %v991
  %v2020 = vunpack.c.l.b16 %v992
  %v2021 = vunpack.c.l.b16 %v993
  %v2022 = vunpack.c.l.b16 %v994
  %v2023 = vunpack.c.l.b16 %v995
  %v2024 = vunpack.c.l.b16 %v996
  %v2025 = vunpack.c.l.b16 %v997
  %v2026 = vunpack.c.l.b16 %v998
  %v2027 = vunpack.c.l.b16 %v999
  %v2028 = vunpack.c.l.b16 %v1000
  %v2029 = vunpack.c.l.b16 %v1001
  %v2030 = vunpack.c.l.b16 %v1002
  %v2031 = vunpack.c.l.b16 %v1003
  %v2032 = vunpack.c.l.b16 %v1004
  %v2033 = vunpack.c.l.b16 %v1005
  %v2034 = vunpack.c.l.b16 %v1006
  %v2035 = vunpack.c.l.b16 %v1007
  %v2036 = vunpack.c.l.b16 %v1008
  %v2037 = vunpack.c.l.b16 %v1009
  %v2038 = vunpack.c.l.b16 %v1010
  %v2039 = vunpack.c.l.b16 %v1011
  %v2040 = vunpack.c.l.b16 %v1012
  %v2041 = vunpack.c.l.b16 %v1013
  %v2042 = vunpack.c.l.b16 %v1014
  %v2043 = vunpack.c.l.b16 %v1015
  %v2044 = vunpack.c.l.b16 %v1016
  %v2045 = vunpack.c.l.b16 %v1017
  %v2046 = vunpack.c.l.b16 %v1018
  %v2047 = vunpack.c.l.b16 %v1019
  %v2048 = vunpack.c.l.b16 %v1020
  %v2049 = vunpack.c.l.b16 %v1021
  %v2050 = vunpack.c.l.b16 %v1022
  %v2051 = vunpack.c.l.b16 %v1023
  %v2052 = vunpack.c.l.b16 %v1024
  %v2053 = vunpack.c.l.b16 %v1025
  %v2054 = vunpack.c.l.b16 %v1026
  %v2055 = vunpack.c.l.b16 %v1027
  %v2056 = vunpack.c.l.b16 %v1028
  %v2057 = vunpack.c.l.b16 %v1029
  %v2058 = vunpack.c.l.b16 %v1030
  %v2059 = vunpack.c.l.b16 %v1031
  %v2060 = vunpack.c.l.b16 %v1032
  %v2061 = vunpack.c.l.b16 %v1033
  %v2062 = vunpack.c.l.b16 %v1034
  %v2063 = vunpack.c.l.b16 %v1035
  %v2064 = vunpack.c.l.b16 %v1036
  %v2065 = vunpack.c.l.b16 %v1037
  %v2066 = vunpack.c.l.b16 %v1038
  %v2067 = vunpack.c.l.b16 %v1039
  %v2068 = vunpack.c.l.b16 %v1040
  %v2069 = vunpack.c.l.b16 %v1041
  %v2070 = vunpack.c.l.b16 %v1042
  %v2071 = vunpack.c.l.b16 %v1043
  %v2072 = vunpack.c.l.b16 %v1044
  %v2073 = vunpack.c.l.b16 %v1045
  %v2074 = vunpack.c.l.b16 %v1046
  %v2075 = vunpack.c.l.b16 %v1047
  %v2076 = vunpack.c.l.b16 %v1048
  %v2077 = vunpack.c.l.b16 %v1049
  %v2078 = vunpack.c.l.b16 %v1050
  %v2079 = vunpack.c.l.b16 %v1051
  %v2080 = vunpack.c.l.b16 %v1052
  %v2081 = vunpack.c.l.b16 %v1053
  %v2082 = vunpack.c.l.b16 %v1054
  %v2083 = vunpack.c.l.b16 %v1055
  %v2084 = vunpack.c.l.b16 %v1056
  %v2085 = vunpack.c.l.b16 %v1057
  %v2086 = vunpack.c.l.b16 %v1058
  %v2087 = vunpack.c.l.b16 %v1059
  %v2088 = vunpack.c.l.b16 %v1060
  %v2089 = vunpack.c.l.b16 %v1061
  %v2090 = vunpack.c.l.b16 %v1062
  %v2091 = vunpack.c.l.b16 %v1063
  %v2092 = vunpack.c.l.b16 %v1064
  %v2093 = vunpack.c.l.b16 %v1065
  %v2094 = vunpack.c.l.b16 %v1066
  %v2095 = vunpack.c.l.b16 %v1067
  %v2096 = vunpack.c.l.b16 %v1068
  %v2097 = vunpack.c.l.b16 %v1069
  %v2098 = vunpack.c.l.b16 %v1070
  %v2099 = vunpack.c.l.b16 %v1071
  %v2100 = vunpack.c.l.b16 %v1072
  %v2101 = vunpack.c.l.b16 %v1073
  %v2102 = vunpack.c.l.b16 %v1074
  %v2103 = vunpack.c.l.b16 %v1075
  %v2104 = vunpack.c.l.b16 %v1076
  %v2105 = vunpack.c.l.b16 %v1077
  %v2106 = vpack.c.b16 %v1595, %v1594
  %v2107 = vpack.c.b16 %v1597, %v1596
  %v2108 = vpack.c.b16 %v1599, %v1598
  %v2109 = vpack.c.b16 %v1601, %v1600
  %v2110 = vpack.c.b16 %v1603, %v1602
  %v2111 = vpack.c.b16 %v1605, %v1604
  %v2112 = vpack.c.b16 %v1607, %v1606
  %v2113 = vpack.c.b16 %v1609, %v1608
  %v2114 = vpack.c.b16 %v1611, %v1610
  %v2115 = vpack.c.b16 %v1613, %v1612
  %v2116 = vpack.c.b16 %v1615, %v1614
  %v2117 = vpack.c.b16 %v1617, %v1616
  %v2118 = vpack.c.b16 %v1619, %v1618
  %v2119 = vpack.c.b16 %v1621, %v1620
  %v2120 = vpack.c.b16 %v1623, %v1622
  %v2121 = vpack.c.b16 %v1625, %v1624
  %v2122 = vpack.c.b16 %v1627, %v1626
  %v2123 = vpack.c.b16 %v1629, %v1628
  %v2124 = vpack.c.b16 %v1631, %v1630
  %v2125 = vpack.c.b16 %v1633, %v1632
  %v2126 = vpack.c.b16 %v1635, %v1634
  %v2127 = vpack.c.b16 %v1637, %v1636
  %v2128 = vpack.c.b16 %v1639, %v1638
  %v2129 = vpack.c.b16 %v1641, %v1640
  %v2130 = vpack.c.b16 %v1643, %v1642
  %v2131 = vpack.c.b16 %v1645, %v1644
  %v2132 = vpack.c.b16 %v1647, %v1646
  %v2133 = vpack.c.b16 %v1649, %v1648
  %v2134 = vpack.c.b16 %v1651, %v1650
  %v2135 = vpack.c.b16 %v1653, %v1652
  %v2136 = vpack.c.b16 %v1655, %v1654
  %v2137 = vpack.c.b16 %v1657, %v1656
  %v2138 = vpack.c.b16 %v1659, %v1658
  %v2139 = vpack.c.b16 %v1661, %v1660
  %v2140 = vpack.c.b16 %v1663, %v1662
  %v2141 = vpack.c.b16 %v1665, %v1664
  %v2142 = vpack.c.b16 %v1667, %v1666
  %v2143 = vpack.c.b16 %v1669, %v1668
  %v2144 = vpack.c.b16 %v1671, %v1670
  %v2145 = vpack.c.b16 %v1673, %v1672
  %v2146 = vpack.c.b16 %v1675, %v1674
  %v2147 = vpack.c.b16 %v1677, %v1676
  %v2148 = vpack.c.b16 %v1679, %v1678
  %v2149 = vpack.c.b16 %v1681, %v1680
  %v2150 = vpack.c.b16 %v1683, %v1682
  %v2151 = vpack.c.b16 %v1685, %v1684
  %v2152 = vpack.c.b16 %v1687, %v1686
  %v2153 = vpack.c.b16 %v1689, %v1688
  %v2154 = vpack.c.b16 %v1691, %v1690
  %v2155 = vpack.c.b16 %v1693, %v1692
  %v2156 = vpack.c.b16 %v1695, %v1694
  %v2157 = vpack.c.b16 %v1697, %v1696
  %v2158 = vpack.c.b16 %v1699, %v1698
  %v2159 = vpack.c.b16 %v1701, %v1700
  %v2160 = vpack.c.b16 %v1703, %v1702
  %v2161 = vpack.c.b16 %v1705, %v1704
  %v2162 = vpack.c.b16 %v1707, %v1706
  %v2163 = vpack.c.b16 %v1709, %v1708
  %v2164 = vpack.c.b16 %v1711, %v1710
  %v2165 = vpack.c.b16 %v1713, %v1712
  %v2166 = vpack.c.b16 %v1715, %v1714
  %v2167 = vpack.c.b16 %v1717, %v1716
  %v2168 = vpack.c.b16 %v1719, %v1718
  %v2169 = vpack.c.b16 %v1721, %v1720
  %v2170 = vpack.c.b16 %v1723, %v1722
  %v2171 = vpack.c.b16 %v1725, %v1724
  %v2172 = vpack.c.b16 %v1727, %v1726
  %v2173 = vpack.c.b16 %v1729, %v1728
  %v2174 = vpack.c.b16 %v1731, %v1730
  %v2175 = vpack.c.b16 %v1733, %v1732
  %v2176 = vpack.c.b16 %v1735, %v1734
  %v2177 = vpack.c.b16 %v1737, %v1736
  %v2178 = vpack.c.b16 %v1739, %v1738
  %v2179 = vpack.c.b16 %v1741, %v1740
  %v2180 = vpack.c.b16 %v1743, %v1742
  %v2181 = vpack.c.b16 %v1745, %v1744
  %v2182 = vpack.c.b16 %v1747, %v1746
  %v2183 = vpack.c.b16 %v1749, %v1748
  %v2184 = vpack.c.b16 %v1751, %v1750
  %v2185 = vpack.c.b16 %v1753, %v1752
  %v2186 = vpack.c.b16 %v1755, %v1754
  %v2187 = vpack.c.b16 %v1757, %v1756
  %v2188 = vpack.c.b16 %v1759, %v1758
  %v2189 = vpack.c.b16 %v1761, %v1760
  %v2190 = vpack.c.b16 %v1763, %v1762
  %v2191 = vpack.c.b16 %v1765, %v1764
  %v2192 = vpack.c.b16 %v1767, %v1766
  %v2193 = vpack.c.b16 %v1769, %v1768
  %v2194 = vpack.c.b16 %v1771, %v1770
  %v2195 = vpack.c.b16 %v1773, %v1772
  %v2196 = vpack.c.b16 %v1775, %v1774
  %v2197 = vpack.c.b16 %v1777, %v1776
  %v2198 = vpack.c.b16 %v1779, %v1778
  %v2199 = vpack.c.b16 %v1781, %v1780
  %v2200 = vpack.c.b16 %v1783, %v1782
  %v2201 = vpack.c.b16 %v1785, %v1784
  %v2202 = vpack.c.b16 %v1787, %v1786
  %v2203 = vpack.c.b16 %v1789, %v1788
  %v2204 = vpack.c.b16 %v1791, %v1790
  %v2205 = vpack.c.b16 %v1793, %v1792
  %v2206 = vpack.c.b16 %v1795, %v1794
  %v2207 = vpack.c.b16 %v1797, %v1796
  %v2208 = vpack.c.b16 %v1799, %v1798
  %v2209 = vpack.c.b16 %v1801, %v1800
  %v2210 = vpack.c.b16 %v1803, %v1802
  %v2211 = vpack.c.b16 %v1805, %v1804
  %v2212 = vpack.c.b16 %v1807, %v1806
  %v2213 = vpack.c.b16 %v1809, %v1808
  %v2214 = vpack.c.b16 %v1811, %v1810
  %v2215 = vpack.c.b16 %v1813, %v1812
  %v2216 = vpack.c.b16 %v1815, %v1814
  %v2217 = vpack.c.b16 %v1817, %v1816
  %v2218 = vpack.c.b16 %v1819, %v1818
  %v2219 = vpack.c.b16 %v1821, %v1820
  %v2220 = vpack.c.b16 %v1823, %v1822
  %v2221 = vpack.c.b16 %v1825, %v1824
  %v2222 = vpack.c.b16 %v1827, %v1826
  %v2223 = vpack.c.b16 %v1829, %v1828
  %v2224 = vpack.c.b16 %v1831, %v1830
  %v2225 = vpack.c.b16 %v1833, %v1832
  %v2226 = vpack.c.b16 %v1835, %v1834
  %v2227 = vpack.c.b16 %v1837, %v1836
  %v2228 = vpack.c.b16 %v1839, %v1838
  %v2229 = vpack.c.b16 %v1841, %v1840
  %v2230 = vpack.c.b16 %v1843, %v1842
  %v2231 = vpack.c.b16 %v1845, %v1844
  %v2232 = vpack.c.b16 %v1847, %v1846
  %v2233 = vpack.c.b16 %v1849, %v1848
  %v2234 = vpack.c.b16 %v1851, %v1850
  %v2235 = vpack.c.b16 %v1853, %v1852
  %v2236 = vpack.c.b16 %v1855, %v1854
  %v2237 = vpack.c.b16 %v1857, %v1856
  %v2238 = vpack.c.b16 %v1859, %v1858
  %v2239 = vpack.c.b16 %v1861, %v1860
  %v2240 = vpack.c.b16 %v1863, %v1862
  %v2241 = vpack.c.b16 %v1865, %v1864
  %v2242 = vpack.c.b16 %v1867, %v1866
  %v2243 = vpack.c.b16 %v1869, %v1868
  %v2244 = vpack.c.b16 %v1871, %v1870
  %v2245 = vpack.c.b16 %v1873, %v1872
  %v2246 = vpack.c.b16 %v1875, %v1874
  %v2247 = vpack.c.b16 %v1877, %v1876
  %v2248 = vpack.c.b16 %v1879, %v1878
  %v2249 = vpack.c.b16 %v1881, %v1880
  %v2250 = vpack.c.b16 %v1883, %v1882
  %v2251 = vpack.c.b16 %v1885, %v1884
  %v2252 = vpack.c.b16 %v1887, %v1886
  %v2253 = vpack.c.b16 %v1889, %v1888
  %v2254 = vpack.c.b16 %v1891, %v1890
  %v2255 = vpack.c.b16 %v1893, %v1892
  %v2256 = vpack.c.b16 %v1895, %v1894
  %v2257 = vpack.c.b16 %v1897, %v1896
  %v2258 = vpack.c.b16 %v1899, %v1898
  %v2259 = vpack.c.b16 %v1901, %v1900
  %v2260 = vpack.c.b16 %v1903, %v1902
  %v2261 = vpack.c.b16 %v1905, %v1904
  %v2262 = vpack.c.b16 %v1907, %v1906
  %v2263 = vpack.c.b16 %v1909, %v1908
  %v2264 = vpack.c.b16 %v1911, %v1910
  %v2265 = vpack.c.b16 %v1913, %v1912
  %v2266 = vpack.c.b16 %v1915, %v1914
  %v2267 = vpack.c.b16 %v1917, %v1916
  %v2268 = vpack.c.b16 %v1919, %v1918
  %v2269 = vpack.c.b16 %v1921, %v1920
  %v2270 = vpack.c.b16 %v1923, %v1922
  %v2271 = vpack.c.b16 %v1925, %v1924
  %v2272 = vpack.c.b16 %v1927, %v1926
  %v2273 = vpack.c.b16 %v1929, %v1928
  %v2274 = vpack.c.b16 %v1931, %v1930
  %v2275 = vpack.c.b16 %v1933, %v1932
  %v2276 = vpack.c.b16 %v1935, %v1934
  %v2277 = vpack.c.b16 %v1937, %v1936
  %v2278 = vpack.c.b16 %v1939, %v1938
  %v2279 = vpack.c.b16 %v1941, %v1940
  %v2280 = vpack.c.b16 %v1943, %v1942
  %v2281 = vpack.c.b16 %v1945, %v1944
  %v2282 = vpack.c.b16 %v1947, %v1946
  %v2283 = vpack.c.b16 %v1949, %v1948
  %v2284 = vpack.c.b16 %v1951, %v1950
  %v2285 = vpack.c.b16 %v1953, %v1952
  %v2286 = vpack.c.b16 %v1955, %v1954
  %v2287 = vpack.c.b16 %v1957, %v1956
  %v2288 = vpack.c.b16 %v1959, %v1958
  %v2289 = vpack.c.b16 %v1961, %v1960
  %v2290 = vpack.c.b16 %v1963, %v1962
  %v2291 = vpack.c.b16 %v1965, %v1964
  %v2292 = vpack.c.b16 %v1967, %v1966
  %v2293 = vpack.c.b16 %v1969, %v1968
  %v2294 = vpack.c.b16 %v1971, %v1970
  %v2295 = vpack.c.b16 %v1973, %v1972
  %v2296 = vpack.c.b16 %v1975, %v1974
  %v2297 = vpack.c.b16 %v1977, %v1976
  %v2298 = vpack.c.b16 %v1979, %v1978
  %v2299 = vpack.c.b16 %v1981, %v1980
  %v2300 = vpack.c.b16 %v1983, %v1982
  %v2301 = vpack.c.b16 %v1985, %v1984
  %v2302 = vpack.c.b16 %v1987, %v1986
  %v2303 = vpack.c.b16 %v1989, %v1988
  %v2304 = vpack.c.b16 %v1991, %v1990
  %v2305 = vpack.c.b16 %v1993, %v1992
  %v2306 = vpack.c.b16 %v1995, %v1994
  %v2307 = vpack.c.b16 %v1997, %v1996
  %v2308 = vpack.c.b16 %v1999, %v1998
  %v2309 = vpack.c.b16 %v2001, %v2000
  %v2310 = vpack.c.b16 %v2003, %v2002
  %v2311 = vpack.c.b16 %v2005, %v2004
  %v2312 = vpack.c.b16 %v2007, %v2006
  %v2313 = vpack.c.b16 %v2009, %v2008
  %v2314 = vpack.c.b16 %v2011, %v2010
  %v2315 = vpack.c.b16 %v2013, %v2012
  %v2316 = vpack.c.b16 %v2015, %v2014
  %v2317 = vpack.c.b16 %v2017, %v2016
  %v2318 = vpack.c.b16 %v2019, %v2018
  %v2319 = vpack.c.b16 %v2021, %v2020
  %v2320 = vpack.c.b16 %v2023, %v2022
  %v2321 = vpack.c.b16 %v2025, %v2024
  %v2322 = vpack.c.b16 %v2027, %v2026
  %v2323 = vpack.c.b16 %v2029, %v2028
  %v2324 = vpack.c.b16 %v2031, %v2030
  %v2325 = vpack.c.b16 %v2033, %v2032
  %v2326 = vpack.c.b16 %v2035, %v2034
  %v2327 = vpack.c.b16 %v2037, %v2036
  %v2328 = vpack.c.b16 %v2039, %v2038
  %v2329 = vpack.c.b16 %v2041, %v2040
  %v2330 = vpack.c.b16 %v2043, %v2042
  %v2331 = vpack.c.b16 %v2045, %v2044
  %v2332 = vpack.c.b16 %v2047, %v2046
  %v2333 = vpack.c.b16 %v2049, %v2048
  %v2334 = vpack.c.b16 %v2051, %v2050
  %v2335 = vpack.c.b16 %v2053, %v2052
  %v2336 = vpack.c.b16 %v2055, %v2054
  %v2337 = vpack.c.b16 %v2057, %v2056
  %v2338 = vpack.c.b16 %v2059, %v2058
  %v2339 = vpack.c.b16 %v2061, %v2060
  %v2340 = vpack.c.b16 %v2063, %v2062
  %v2341 = vpack.c.b16 %v2065, %v2064
  %v2342 = vpack.c.b16 %v2067, %v2066
  %v2343 = vpack.c.b16 %v2069, %v2068
  %v2344 = vpack.c.b16 %v2071, %v2070
  %v2345 = vpack.c.b16 %v2073, %v2072
  %v2346 = vpack.c.b16 %v2075, %v2074
  %v2347 = vpack.c.b16 %v2077, %v2076
  %v2348 = vpack.c.b16 %v2079, %v2078
  %v2349 = vpack.c.b16 %v2081, %v2080
  %v2350 = vpack.c.b16 %v2083, %v2082
  %v2351 = vpack.c.b16 %v2085, %v2084
  %v2352 = vpack.c.b16 %v2087, %v2086
  %v2353 = vpack.c.b16 %v2089, %v2088
  %v2354 = vpack.c.b16 %v2091, %v2090
  %v2355 = vpack.c.b16 %v2093, %v2092
  %v2356 = vpack.c.b16 %v2095, %v2094
  %v2357 = vpack.c.b16 %v2097, %v2096
  %v2358 = vpack.c.b16 %v2099, %v2098
  %v2359 = vpack.c.b16 %v2101, %v2100
  %v2360 = vpack.c.b16 %v2103, %v2102
  %v2361 = vpack.c.b16 %v2105, %v2104
  %2618 = vmatpush.bf16.msra.mxu0 %v2113
  %2619 = vmatpush.bf16.msra.mxu0 %v2112
  %2620 = vmatpush.bf16.msra.mxu0 %v2111
  %2621 = vmatpush.bf16.msra.mxu0 %v2110
  %2622 = vmatpush.bf16.msra.mxu0 %v2109
  %2623 = vmatpush.bf16.msra.mxu0 %v2108
  %2624 = vmatpush.bf16.msra.mxu0 %v2107
  %2625 = vmatpush.bf16.msra.mxu0 %v2106
  %2626 = vmatmul.bf16.gmra.mxu0 %v534
  %v2627 = vpop.f32.mrf.mxu0
  %v2628 = vadd.f32 %v1080, %v2627
  %v2629 = vpop.f32.mrf.mxu0
  %2630 = vdwg.mxu0
  %2631 = vmatpush.bf16.msra.mxu0 %v2121
  %2632 = vmatpush.bf16.msra.mxu0 %v2120
  %2633 = vmatpush.bf16.msra.mxu0 %v2119
  %2634 = vmatpush.bf16.msra.mxu0 %v2118
  %2635 = vmatpush.bf16.msra.mxu0 %v2117
  %2636 = vmatpush.bf16.msra.mxu0 %v2116
  %2637 = vmatpush.bf16.msra.mxu0 %v2115
  %2638 = vmatpush.bf16.msra.mxu0 %v2114
  %2639 = vmatmul.bf16.gmra.mxu0 %v535
  %v2640 = vpop.f32.mrf.mxu0
  %v2641 = vadd.f32 %v2628, %v2640
  %v2642 = vpop.f32.mrf.mxu0
  %2643 = vdwg.mxu0
  %2644 = vmatpush.bf16.msra.mxu0 %v2129
  %2645 = vmatpush.bf16.msra.mxu0 %v2128
  %2646 = vmatpush.bf16.msra.mxu0 %v2127
  %2647 = vmatpush.bf16.msra.mxu0 %v2126
  %2648 = vmatpush.bf16.msra.mxu0 %v2125
  %2649 = vmatpush.bf16.msra.mxu0 %v2124
  %2650 = vmatpush.bf16.msra.mxu0 %v2123
  %2651 = vmatpush.bf16.msra.mxu0 %v2122
  %2652 = vmatmul.bf16.gmra.mxu0 %v536
  %v2653 = vpop.f32.mrf.mxu0
  %v2654 = vadd.f32 %v2641, %v2653
  %v2655 = vpop.f32.mrf.mxu0
  %2656 = vdwg.mxu0
  %2657 = vmatpush.bf16.msra.mxu0 %v2137
  %2658 = vmatpush.bf16.msra.mxu0 %v2136
  %2659 = vmatpush.bf16.msra.mxu0 %v2135
  %2660 = vmatpush.bf16.msra.mxu0 %v2134
  %2661 = vmatpush.bf16.msra.mxu0 %v2133
  %2662 = vmatpush.bf16.msra.mxu0 %v2132
  %2663 = vmatpush.bf16.msra.mxu0 %v2131
  %2664 = vmatpush.bf16.msra.mxu0 %v2130
  %2665 = vmatmul.bf16.gmra.mxu0 %v537
  %v2666 = vpop.f32.mrf.mxu0
  %v2667 = vadd.f32 %v2654, %v2666
  %v2668 = vpop.f32.mrf.mxu0
  %2669 = vdwg.mxu0
  %2670 = vmatpush.bf16.msra.mxu0 %v2145
  %2671 = vmatpush.bf16.msra.mxu0 %v2144
  %2672 = vmatpush.bf16.msra.mxu0 %v2143
  %2673 = vmatpush.bf16.msra.mxu0 %v2142
  %2674 = vmatpush.bf16.msra.mxu0 %v2141
  %2675 = vmatpush.bf16.msra.mxu0 %v2140
  %2676 = vmatpush.bf16.msra.mxu0 %v2139
  %2677 = vmatpush.bf16.msra.mxu0 %v2138
  %2678 = vmatmul.bf16.gmra.mxu0 %v538
  %v2679 = vpop.f32.mrf.mxu0
  %v2680 = vadd.f32 %v2667, %v2679
  %v2681 = vpop.f32.mrf.mxu0
  %2682 = vdwg.mxu0
  %2683 = vmatpush.bf16.msra.mxu0 %v2153
  %2684 = vmatpush.bf16.msra.mxu0 %v2152
  %2685 = vmatpush.bf16.msra.mxu0 %v2151
  %2686 = vmatpush.bf16.msra.mxu0 %v2150
  %2687 = vmatpush.bf16.msra.mxu0 %v2149
  %2688 = vmatpush.bf16.msra.mxu0 %v2148
  %2689 = vmatpush.bf16.msra.mxu0 %v2147
  %2690 = vmatpush.bf16.msra.mxu0 %v2146
  %2691 = vmatmul.bf16.gmra.mxu0 %v539
  %v2692 = vpop.f32.mrf.mxu0
  %v2693 = vadd.f32 %v2680, %v2692
  %v2694 = vpop.f32.mrf.mxu0
  %2695 = vdwg.mxu0
  %2696 = vmatpush.bf16.msra.mxu0 %v2161
  %2697 = vmatpush.bf16.msra.mxu0 %v2160
  %2698 = vmatpush.bf16.msra.mxu0 %v2159
  %2699 = vmatpush.bf16.msra.mxu0 %v2158
  %2700 = vmatpush.bf16.msra.mxu0 %v2157
  %2701 = vmatpush.bf16.msra.mxu0 %v2156
  %2702 = vmatpush.bf16.msra.mxu0 %v2155
  %2703 = vmatpush.bf16.msra.mxu0 %v2154
  %2704 = vmatmul.bf16.gmra.mxu0 %v540
  %v2705 = vpop.f32.mrf.mxu0
  %v2706 = vadd.f32 %v2693, %v2705
  %v2707 = vpop.f32.mrf.mxu0
  %2708 = vdwg.mxu0
  %2709 = vmatpush.bf16.msra.mxu0 %v2169
  %2710 = vmatpush.bf16.msra.mxu0 %v2168
  %2711 = vmatpush.bf16.msra.mxu0 %v2167
  %2712 = vmatpush.bf16.msra.mxu0 %v2166
  %2713 = vmatpush.bf16.msra.mxu0 %v2165
  %2714 = vmatpush.bf16.msra.mxu0 %v2164
  %2715 = vmatpush.bf16.msra.mxu0 %v2163
  %2716 = vmatpush.bf16.msra.mxu0 %v2162
  %2717 = vmatmul.bf16.gmra.mxu0 %v541
  %v2718 = vpop.f32.mrf.mxu0
  %v2719 = vadd.f32 %v2706, %v2718
  %v2720 = vpop.f32.mrf.mxu0
  %2721 = vdwg.mxu0
  %2722 = vmatpush.bf16.msra.mxu0 %v2177
  %2723 = vmatpush.bf16.msra.mxu0 %v2176
  %2724 = vmatpush.bf16.msra.mxu0 %v2175
  %2725 = vmatpush.bf16.msra.mxu0 %v2174
  %2726 = vmatpush.bf16.msra.mxu0 %v2173
  %2727 = vmatpush.bf16.msra.mxu0 %v2172
  %2728 = vmatpush.bf16.msra.mxu0 %v2171
  %2729 = vmatpush.bf16.msra.mxu0 %v2170
  %2730 = vmatmul.bf16.gmra.mxu0 %v542
  %v2731 = vpop.f32.mrf.mxu0
  %v2732 = vadd.f32 %v2719, %v2731
  %v2733 = vpop.f32.mrf.mxu0
  %2734 = vdwg.mxu0
  %2735 = vmatpush.bf16.msra.mxu0 %v2185
  %2736 = vmatpush.bf16.msra.mxu0 %v2184
  %2737 = vmatpush.bf16.msra.mxu0 %v2183
  %2738 = vmatpush.bf16.msra.mxu0 %v2182
  %2739 = vmatpush.bf16.msra.mxu0 %v2181
  %2740 = vmatpush.bf16.msra.mxu0 %v2180
  %2741 = vmatpush.bf16.msra.mxu0 %v2179
  %2742 = vmatpush.bf16.msra.mxu0 %v2178
  %2743 = vmatmul.bf16.gmra.mxu0 %v543
  %v2744 = vpop.f32.mrf.mxu0
  %v2745 = vadd.f32 %v2732, %v2744
  %v2746 = vpop.f32.mrf.mxu0
  %2747 = vdwg.mxu0
  %2748 = vmatpush.bf16.msra.mxu0 %v2193
  %2749 = vmatpush.bf16.msra.mxu0 %v2192
  %2750 = vmatpush.bf16.msra.mxu0 %v2191
  %2751 = vmatpush.bf16.msra.mxu0 %v2190
  %2752 = vmatpush.bf16.msra.mxu0 %v2189
  %2753 = vmatpush.bf16.msra.mxu0 %v2188
  %2754 = vmatpush.bf16.msra.mxu0 %v2187
  %2755 = vmatpush.bf16.msra.mxu0 %v2186
  %2756 = vmatmul.bf16.gmra.mxu0 %v544
  %v2757 = vpop.f32.mrf.mxu0
  %v2758 = vadd.f32 %v2745, %v2757
  %v2759 = vpop.f32.mrf.mxu0
  %2760 = vdwg.mxu0
  %2761 = vmatpush.bf16.msra.mxu0 %v2201
  %2762 = vmatpush.bf16.msra.mxu0 %v2200
  %2763 = vmatpush.bf16.msra.mxu0 %v2199
  %2764 = vmatpush.bf16.msra.mxu0 %v2198
  %2765 = vmatpush.bf16.msra.mxu0 %v2197
  %2766 = vmatpush.bf16.msra.mxu0 %v2196
  %2767 = vmatpush.bf16.msra.mxu0 %v2195
  %2768 = vmatpush.bf16.msra.mxu0 %v2194
  %2769 = vmatmul.bf16.gmra.mxu0 %v545
  %v2770 = vpop.f32.mrf.mxu0
  %v2771 = vadd.f32 %v2758, %v2770
  %v2772 = vpop.f32.mrf.mxu0
  %2773 = vdwg.mxu0
  %2774 = vmatpush.bf16.msra.mxu0 %v2209
  %2775 = vmatpush.bf16.msra.mxu0 %v2208
  %2776 = vmatpush.bf16.msra.mxu0 %v2207
  %2777 = vmatpush.bf16.msra.mxu0 %v2206
  %2778 = vmatpush.bf16.msra.mxu0 %v2205
  %2779 = vmatpush.bf16.msra.mxu0 %v2204
  %2780 = vmatpush.bf16.msra.mxu0 %v2203
  %2781 = vmatpush.bf16.msra.mxu0 %v2202
  %2782 = vmatmul.bf16.gmra.mxu0 %v546
  %v2783 = vpop.f32.mrf.mxu0
  %v2784 = vadd.f32 %v2771, %v2783
  %v2785 = vpop.f32.mrf.mxu0
  %2786 = vdwg.mxu0
  %2787 = vmatpush.bf16.msra.mxu0 %v2217
  %2788 = vmatpush.bf16.msra.mxu0 %v2216
  %2789 = vmatpush.bf16.msra.mxu0 %v2215
  %2790 = vmatpush.bf16.msra.mxu0 %v2214
  %2791 = vmatpush.bf16.msra.mxu0 %v2213
  %2792 = vmatpush.bf16.msra.mxu0 %v2212
  %2793 = vmatpush.bf16.msra.mxu0 %v2211
  %2794 = vmatpush.bf16.msra.mxu0 %v2210
  %2795 = vmatmul.bf16.gmra.mxu0 %v547
  %v2796 = vpop.f32.mrf.mxu0
  %v2797 = vadd.f32 %v2784, %v2796
  %v2798 = vpop.f32.mrf.mxu0
  %2799 = vdwg.mxu0
  %2800 = vmatpush.bf16.msra.mxu0 %v2225
  %2801 = vmatpush.bf16.msra.mxu0 %v2224
  %2802 = vmatpush.bf16.msra.mxu0 %v2223
  %2803 = vmatpush.bf16.msra.mxu0 %v2222
  %2804 = vmatpush.bf16.msra.mxu0 %v2221
  %2805 = vmatpush.bf16.msra.mxu0 %v2220
  %2806 = vmatpush.bf16.msra.mxu0 %v2219
  %2807 = vmatpush.bf16.msra.mxu0 %v2218
  %2808 = vmatmul.bf16.gmra.mxu0 %v548
  %v2809 = vpop.f32.mrf.mxu0
  %v2810 = vadd.f32 %v2797, %v2809
  %v2811 = vpop.f32.mrf.mxu0
  %2812 = vdwg.mxu0
  %2813 = vmatpush.bf16.msra.mxu0 %v2233
  %2814 = vmatpush.bf16.msra.mxu0 %v2232
  %2815 = vmatpush.bf16.msra.mxu0 %v2231
  %2816 = vmatpush.bf16.msra.mxu0 %v2230
  %2817 = vmatpush.bf16.msra.mxu0 %v2229
  %2818 = vmatpush.bf16.msra.mxu0 %v2228
  %2819 = vmatpush.bf16.msra.mxu0 %v2227
  %2820 = vmatpush.bf16.msra.mxu0 %v2226
  %2821 = vmatmul.bf16.gmra.mxu0 %v549
  %v2822 = vpop.f32.mrf.mxu0
  %v2823 = vadd.f32 %v2810, %v2822
  %v2824 = vpop.f32.mrf.mxu0
  %2825 = vdwg.mxu0
  %2826 = vmatpush.bf16.msra.mxu0 %v2241
  %2827 = vmatpush.bf16.msra.mxu0 %v2240
  %2828 = vmatpush.bf16.msra.mxu0 %v2239
  %2829 = vmatpush.bf16.msra.mxu0 %v2238
  %2830 = vmatpush.bf16.msra.mxu0 %v2237
  %2831 = vmatpush.bf16.msra.mxu0 %v2236
  %2832 = vmatpush.bf16.msra.mxu0 %v2235
  %2833 = vmatpush.bf16.msra.mxu0 %v2234
  %2834 = vmatmul.bf16.gmra.mxu0 %v550
  %v2835 = vpop.f32.mrf.mxu0
  %v2836 = vadd.f32 %v2823, %v2835
  %v2837 = vpop.f32.mrf.mxu0
  %2838 = vdwg.mxu0
  %2839 = vmatpush.bf16.msra.mxu0 %v2249
  %2840 = vmatpush.bf16.msra.mxu0 %v2248
  %2841 = vmatpush.bf16.msra.mxu0 %v2247
  %2842 = vmatpush.bf16.msra.mxu0 %v2246
  %2843 = vmatpush.bf16.msra.mxu0 %v2245
  %2844 = vmatpush.bf16.msra.mxu0 %v2244
  %2845 = vmatpush.bf16.msra.mxu0 %v2243
  %2846 = vmatpush.bf16.msra.mxu0 %v2242
  %2847 = vmatmul.bf16.gmra.mxu0 %v551
  %v2848 = vpop.f32.mrf.mxu0
  %v2849 = vadd.f32 %v2836, %v2848
  %v2850 = vpop.f32.mrf.mxu0
  %2851 = vdwg.mxu0
  %2852 = vmatpush.bf16.msra.mxu0 %v2257
  %2853 = vmatpush.bf16.msra.mxu0 %v2256
  %2854 = vmatpush.bf16.msra.mxu0 %v2255
  %2855 = vmatpush.bf16.msra.mxu0 %v2254
  %2856 = vmatpush.bf16.msra.mxu0 %v2253
  %2857 = vmatpush.bf16.msra.mxu0 %v2252
  %2858 = vmatpush.bf16.msra.mxu0 %v2251
  %2859 = vmatpush.bf16.msra.mxu0 %v2250
  %2860 = vmatmul.bf16.gmra.mxu0 %v552
  %v2861 = vpop.f32.mrf.mxu0
  %v2862 = vadd.f32 %v2849, %v2861
  %v2863 = vpop.f32.mrf.mxu0
  %2864 = vdwg.mxu0
  %2865 = vmatpush.bf16.msra.mxu0 %v2265
  %2866 = vmatpush.bf16.msra.mxu0 %v2264
  %2867 = vmatpush.bf16.msra.mxu0 %v2263
  %2868 = vmatpush.bf16.msra.mxu0 %v2262
  %2869 = vmatpush.bf16.msra.mxu0 %v2261
  %2870 = vmatpush.bf16.msra.mxu0 %v2260
  %2871 = vmatpush.bf16.msra.mxu0 %v2259
  %2872 = vmatpush.bf16.msra.mxu0 %v2258
  %2873 = vmatmul.bf16.gmra.mxu0 %v553
  %v2874 = vpop.f32.mrf.mxu0
  %v2875 = vadd.f32 %v2862, %v2874
  %v2876 = vpop.f32.mrf.mxu0
  %2877 = vdwg.mxu0
  %2878 = vmatpush.bf16.msra.mxu0 %v2273
  %2879 = vmatpush.bf16.msra.mxu0 %v2272
  %2880 = vmatpush.bf16.msra.mxu0 %v2271
  %2881 = vmatpush.bf16.msra.mxu0 %v2270
  %2882 = vmatpush.bf16.msra.mxu0 %v2269
  %2883 = vmatpush.bf16.msra.mxu0 %v2268
  %2884 = vmatpush.bf16.msra.mxu0 %v2267
  %2885 = vmatpush.bf16.msra.mxu0 %v2266
  %2886 = vmatmul.bf16.gmra.mxu0 %v554
  %v2887 = vpop.f32.mrf.mxu0
  %v2888 = vadd.f32 %v2875, %v2887
  %v2889 = vpop.f32.mrf.mxu0
  %2890 = vdwg.mxu0
  %2891 = vmatpush.bf16.msra.mxu0 %v2281
  %2892 = vmatpush.bf16.msra.mxu0 %v2280
  %2893 = vmatpush.bf16.msra.mxu0 %v2279
  %2894 = vmatpush.bf16.msra.mxu0 %v2278
  %2895 = vmatpush.bf16.msra.mxu0 %v2277
  %2896 = vmatpush.bf16.msra.mxu0 %v2276
  %2897 = vmatpush.bf16.msra.mxu0 %v2275
  %2898 = vmatpush.bf16.msra.mxu0 %v2274
  %2899 = vmatmul.bf16.gmra.mxu0 %v555
  %v2900 = vpop.f32.mrf.mxu0
  %v2901 = vadd.f32 %v2888, %v2900
  %v2902 = vpop.f32.mrf.mxu0
  %2903 = vdwg.mxu0
  %2904 = vmatpush.bf16.msra.mxu0 %v2289
  %2905 = vmatpush.bf16.msra.mxu0 %v2288
  %2906 = vmatpush.bf16.msra.mxu0 %v2287
  %2907 = vmatpush.bf16.msra.mxu0 %v2286
  %2908 = vmatpush.bf16.msra.mxu0 %v2285
  %2909 = vmatpush.bf16.msra.mxu0 %v2284
  %2910 = vmatpush.bf16.msra.mxu0 %v2283
  %2911 = vmatpush.bf16.msra.mxu0 %v2282
  %2912 = vmatmul.bf16.gmra.mxu0 %v556
  %v2913 = vpop.f32.mrf.mxu0
  %v2914 = vadd.f32 %v2901, %v2913
  %v2915 = vpop.f32.mrf.mxu0
  %2916 = vdwg.mxu0
  %2917 = vmatpush.bf16.msra.mxu0 %v2297
  %2918 = vmatpush.bf16.msra.mxu0 %v2296
  %2919 = vmatpush.bf16.msra.mxu0 %v2295
  %2920 = vmatpush.bf16.msra.mxu0 %v2294
  %2921 = vmatpush.bf16.msra.mxu0 %v2293
  %2922 = vmatpush.bf16.msra.mxu0 %v2292
  %2923 = vmatpush.bf16.msra.mxu0 %v2291
  %2924 = vmatpush.bf16.msra.mxu0 %v2290
  %2925 = vmatmul.bf16.gmra.mxu0 %v557
  %v2926 = vpop.f32.mrf.mxu0
  %v2927 = vadd.f32 %v2914, %v2926
  %v2928 = vpop.f32.mrf.mxu0
  %2929 = vdwg.mxu0
  %2930 = vmatpush.bf16.msra.mxu0 %v2305
  %2931 = vmatpush.bf16.msra.mxu0 %v2304
  %2932 = vmatpush.bf16.msra.mxu0 %v2303
  %2933 = vmatpush.bf16.msra.mxu0 %v2302
  %2934 = vmatpush.bf16.msra.mxu0 %v2301
  %2935 = vmatpush.bf16.msra.mxu0 %v2300
  %2936 = vmatpush.bf16.msra.mxu0 %v2299
  %2937 = vmatpush.bf16.msra.mxu0 %v2298
  %2938 = vmatmul.bf16.gmra.mxu0 %v558
  %v2939 = vpop.f32.mrf.mxu0
  %v2940 = vadd.f32 %v2927, %v2939
  %v2941 = vpop.f32.mrf.mxu0
  %2942 = vdwg.mxu0
  %2943 = vmatpush.bf16.msra.mxu0 %v2313
  %2944 = vmatpush.bf16.msra.mxu0 %v2312
  %2945 = vmatpush.bf16.msra.mxu0 %v2311
  %2946 = vmatpush.bf16.msra.mxu0 %v2310
  %2947 = vmatpush.bf16.msra.mxu0 %v2309
  %2948 = vmatpush.bf16.msra.mxu0 %v2308
  %2949 = vmatpush.bf16.msra.mxu0 %v2307
  %2950 = vmatpush.bf16.msra.mxu0 %v2306
  %2951 = vmatmul.bf16.gmra.mxu0 %v559
  %v2952 = vpop.f32.mrf.mxu0
  %v2953 = vadd.f32 %v2940, %v2952
  %v2954 = vpop.f32.mrf.mxu0
  %2955 = vdwg.mxu0
  %2956 = vmatpush.bf16.msra.mxu0 %v2321
  %2957 = vmatpush.bf16.msra.mxu0 %v2320
  %2958 = vmatpush.bf16.msra.mxu0 %v2319
  %2959 = vmatpush.bf16.msra.mxu0 %v2318
  %2960 = vmatpush.bf16.msra.mxu0 %v2317
  %2961 = vmatpush.bf16.msra.mxu0 %v2316
  %2962 = vmatpush.bf16.msra.mxu0 %v2315
  %2963 = vmatpush.bf16.msra.mxu0 %v2314
  %2964 = vmatmul.bf16.gmra.mxu0 %v560
  %v2965 = vpop.f32.mrf.mxu0
  %v2966 = vadd.f32 %v2953, %v2965
  %v2967 = vpop.f32.mrf.mxu0
  %2968 = vdwg.mxu0
  %2969 = vmatpush.bf16.msra.mxu0 %v2329
  %2970 = vmatpush.bf16.msra.mxu0 %v2328
  %2971 = vmatpush.bf16.msra.mxu0 %v2327
  %2972 = vmatpush.bf16.msra.mxu0 %v2326
  %2973 = vmatpush.bf16.msra.mxu0 %v2325
  %2974 = vmatpush.bf16.msra.mxu0 %v2324
  %2975 = vmatpush.bf16.msra.mxu0 %v2323
  %2976 = vmatpush.bf16.msra.mxu0 %v2322
  %2977 = vmatmul.bf16.gmra.mxu0 %v561
  %v2978 = vpop.f32.mrf.mxu0
  %v2979 = vadd.f32 %v2966, %v2978
  %v2980 = vpop.f32.mrf.mxu0
  %2981 = vdwg.mxu0
  %2982 = vmatpush.bf16.msra.mxu0 %v2337
  %2983 = vmatpush.bf16.msra.mxu0 %v2336
  %2984 = vmatpush.bf16.msra.mxu0 %v2335
  %2985 = vmatpush.bf16.msra.mxu0 %v2334
  %2986 = vmatpush.bf16.msra.mxu0 %v2333
  %2987 = vmatpush.bf16.msra.mxu0 %v2332
  %2988 = vmatpush.bf16.msra.mxu0 %v2331
  %2989 = vmatpush.bf16.msra.mxu0 %v2330
  %2990 = vmatmul.bf16.gmra.mxu0 %v562
  %v2991 = vpop.f32.mrf.mxu0
  %v2992 = vadd.f32 %v2979, %v2991
  %v2993 = vpop.f32.mrf.mxu0
  %2994 = vdwg.mxu0
  %2995 = vmatpush.bf16.msra.mxu0 %v2345
  %2996 = vmatpush.bf16.msra.mxu0 %v2344
  %2997 = vmatpush.bf16.msra.mxu0 %v2343
  %2998 = vmatpush.bf16.msra.mxu0 %v2342
  %2999 = vmatpush.bf16.msra.mxu0 %v2341
  %3000 = vmatpush.bf16.msra.mxu0 %v2340
  %3001 = vmatpush.bf16.msra.mxu0 %v2339
  %3002 = vmatpush.bf16.msra.mxu0 %v2338
  %3003 = vmatmul.bf16.gmra.mxu0 %v563
  %v3004 = vpop.f32.mrf.mxu0
  %v3005 = vadd.f32 %v2992, %v3004
  %v3006 = vpop.f32.mrf.mxu0
  %3007 = vdwg.mxu0
  %3008 = vmatpush.bf16.msra.mxu0 %v2353
  %3009 = vmatpush.bf16.msra.mxu0 %v2352
  %3010 = vmatpush.bf16.msra.mxu0 %v2351
  %3011 = vmatpush.bf16.msra.mxu0 %v2350
  %3012 = vmatpush.bf16.msra.mxu0 %v2349
  %3013 = vmatpush.bf16.msra.mxu0 %v2348
  %3014 = vmatpush.bf16.msra.mxu0 %v2347
  %3015 = vmatpush.bf16.msra.mxu0 %v2346
  %3016 = vmatmul.bf16.gmra.mxu0 %v564
  %v3017 = vpop.f32.mrf.mxu0
  %v3018 = vadd.f32 %v3005, %v3017
  %v3019 = vpop.f32.mrf.mxu0
  %3020 = vdwg.mxu0
  %3021 = vmatpush.bf16.msra.mxu0 %v2361
  %3022 = vmatpush.bf16.msra.mxu0 %v2360
  %3023 = vmatpush.bf16.msra.mxu0 %v2359
  %3024 = vmatpush.bf16.msra.mxu0 %v2358
  %3025 = vmatpush.bf16.msra.mxu0 %v2357
  %3026 = vmatpush.bf16.msra.mxu0 %v2356
  %3027 = vmatpush.bf16.msra.mxu0 %v2355
  %3028 = vmatpush.bf16.msra.mxu0 %v2354
  %3029 = vmatmul.bf16.gmra.mxu0 %v565
  %v3030 = vpop.f32.mrf.mxu0
  %v3031 = vadd.f32 %v3018, %v3030
  %v3032 = vpop.f32.mrf.mxu0
  %3033 = vdwg.mxu0
  %v3034 = vpack.c.bf16 %v3031, %v3031
  %v3035 = vld [vmem:[%s7] sm:$0xf]
  %v3036 = vld [vmem:[%s7 + $0x4] sm:$0xf]
  %v3037 = vld [vmem:[%s7 + $0x8] sm:$0xf]
  %v3038 = vld [vmem:[%s7 + $0xc] sm:$0xf]
  %v3039 = vld [vmem:[%s7 + $0x10] sm:$0xf]
  %v3040 = vld [vmem:[%s7 + $0x14] sm:$0xf]
  %v3041 = vld [vmem:[%s7 + $0x18] sm:$0xf]
  %v3042 = vld [vmem:[%s7 + $0x1c] sm:$0xf]
  %v3043 = vld [vmem:[%s7 + $0x20] sm:$0xf]
  %v3044 = vld [vmem:[%s7 + $0x24] sm:$0xf]
  %v3045 = vld [vmem:[%s7 + $0x28] sm:$0xf]
  %v3046 = vld [vmem:[%s7 + $0x2c] sm:$0xf]
  %v3047 = vld [vmem:[%s7 + $0x30] sm:$0xf]
  %v3048 = vld [vmem:[%s7 + $0x34] sm:$0xf]
  %v3049 = vld [vmem:[%s7 + $0x38] sm:$0xf]
  %v3050 = vld [vmem:[%s7 + $0x3c] sm:$0xf]
  %v3051 = vld [vmem:[%s8] sm:$0x1]
  %v3053 = vperm.slane %v3051, 0
  %v3071 = vunpack.c.l.b16 %v3035
  %v3072 = vunpack.c.l.b16 %v3036
  %v3073 = vunpack.c.l.b16 %v3037
  %v3074 = vunpack.c.l.b16 %v3038
  %v3075 = vunpack.c.l.b16 %v3039
  %v3076 = vunpack.c.l.b16 %v3040
  %v3077 = vunpack.c.l.b16 %v3041
  %v3078 = vunpack.c.l.b16 %v3042
  %v3079 = vunpack.c.l.b16 %v3043
  %v3080 = vunpack.c.l.b16 %v3044
  %v3081 = vunpack.c.l.b16 %v3045
  %v3082 = vunpack.c.l.b16 %v3046
  %v3083 = vunpack.c.l.b16 %v3047
  %v3084 = vunpack.c.l.b16 %v3048
  %v3085 = vunpack.c.l.b16 %v3049
  %v3086 = vunpack.c.l.b16 %v3050
  %v3087 = vpack.c.b16 %v3072, %v3071
  %v3088 = vpack.c.b16 %v3074, %v3073
  %v3089 = vpack.c.b16 %v3076, %v3075
  %v3090 = vpack.c.b16 %v3078, %v3077
  %v3091 = vpack.c.b16 %v3080, %v3079
  %v3092 = vpack.c.b16 %v3082, %v3081
  %v3093 = vpack.c.b16 %v3084, %v3083
  %v3094 = vpack.c.b16 %v3086, %v3085
  %3103 = vmatpush.bf16.msra.mxu0 %v3094
  %3104 = vmatpush.bf16.msra.mxu0 %v3093
  %3105 = vmatpush.bf16.msra.mxu0 %v3092
  %3106 = vmatpush.bf16.msra.mxu0 %v3091
  %3107 = vmatpush.bf16.msra.mxu0 %v3090
  %3108 = vmatpush.bf16.msra.mxu0 %v3089
  %3109 = vmatpush.bf16.msra.mxu0 %v3088
  %3110 = vmatpush.bf16.msra.mxu0 %v3087
  %3111 = vmatmul.bf16.gmra.mxu0 %v3034
  %v3112 = vpop.f32.mrf.mxu0
  %v3113 = vadd.f32 %v3053, %v3112
  %v3114 = vpop.f32.mrf.mxu0
  %3115 = vdwg.mxu0
  %v3116 = vpack.c.bf16 %v3113, %v3113
  %v3117 = vld [vmem:[%s9] sm:$0xf]
  %v3118 = vld [vmem:[%s9 + $0x4] sm:$0xf]
  %v3119 = vld [vmem:[%s9 + $0x8] sm:$0xf]
  %v3120 = vld [vmem:[%s9 + $0xc] sm:$0xf]
  %v3121 = vld [vmem:[%s10] sm:$0x1]
  %v3123 = vperm.slane %v3121, 0
  %v3129 = vunpack.c.l.b16 %v3117
  %v3130 = vunpack.c.l.b16 %v3118
  %v3131 = vunpack.c.l.b16 %v3119
  %v3132 = vunpack.c.l.b16 %v3120
  %v3133 = vpack.c.b16 %v3130, %v3129
  %v3134 = vpack.c.b16 %v3132, %v3131
  %vm3137 = vcmask 261120
  %v3139 = vsel %vm3137, %v3116, 0
  %3141 = vmatpush.bf16.msra.mxu0 0
  %3142 = vmatpush.bf16.msra.mxu0 0
  %3143 = vmatpush.bf16.msra.mxu0 0
  %3144 = vmatpush.bf16.msra.mxu0 0
  %3145 = vmatpush.bf16.msra.mxu0 0
  %3146 = vmatpush.bf16.msra.mxu0 0
  %3147 = vmatpush.bf16.msra.mxu0 %v3134
  %3148 = vmatpush.bf16.msra.mxu0 %v3133
  %3149 = vmatmul.bf16.gmra.mxu0 %v3139
  %v3150 = vpop.f32.mrf.mxu0
  %v3151 = vadd.f32 %v3123, %v3150
  %v3152 = vpop.f32.mrf.mxu0
  %3153 = vdwg.mxu0
  %3154 = vst [vmem:[%s17] sm:$0xf] %v3151
  %v3155 = vpack.c.bf16 %v412, %v410
  %v3156 = vpack.c.bf16 %v417, %v415
  %v3157 = vld [vmem:[%s11] sm:$0xf]
  %v3158 = vld [vmem:[%s11 + $0x4] sm:$0xf]
  %v3159 = vld [vmem:[%s12] sm:$0x1]
  %v3161 = vperm.slane %v3159, 0
  %v3165 = vunpack.c.l.b16 %v3157
  %v3166 = vunpack.c.l.b16 %v3158
  %v3167 = vpack.c.b16 %v3166, %v3165
  %vm3169 = vcmask 130048
  %v3171 = vsel %vm3169, %v3155, 0
  %v3174 = vsel %vm3169, %v3156, 0
  %3176 = vmatpush.bf16.msra.mxu0 0
  %3177 = vmatpush.bf16.msra.mxu0 0
  %3178 = vmatpush.bf16.msra.mxu0 0
  %3179 = vmatpush.bf16.msra.mxu0 0
  %3180 = vmatpush.bf16.msra.mxu0 0
  %3181 = vmatpush.bf16.msra.mxu0 0
  %3182 = vmatpush.bf16.msra.mxu0 0
  %3183 = vmatpush.bf16.msra.mxu0 %v3167
  %3184 = vmatmul.bf16.gmra.mxu0 %v3171
  %v3185 = vpop.f32.mrf.mxu0
  %v3186 = vadd.f32 %v3161, %v3185
  %v3187 = vpop.f32.mrf.mxu0
  %v3188 = vadd.f32 %v3161, %v3187
  %3189 = vmatmul.bf16.gmra.mxu0 %v3174
  %v3190 = vpop.f32.mrf.mxu0
  %v3191 = vadd.f32 %v3161, %v3190
  %v3192 = vpop.f32.mrf.mxu0
  %v3193 = vadd.f32 %v3161, %v3192
  %3194 = vdwg.mxu0
  %v3195 = vmax.f32 %v3186, 0.0
  %v3196 = vmax.f32 %v3188, 0.0
  %v3197 = vmax.f32 %v3191, 0.0
  %v3198 = vmax.f32 %v3193, 0.0
  %v3199 = vpack.c.bf16 %v3196, %v3195
  %v3200 = vpack.c.bf16 %v3198, %v3197
  %v3201 = vld [vmem:[%s13] sm:$0xff]
  %v3202 = vld [vmem:[%s13 + $0x8] sm:$0xff]
  %v3203 = vld [vmem:[%s13 + $0x10] sm:$0xff]
  %v3204 = vld [vmem:[%s13 + $0x18] sm:$0xff]
  %v3205 = vld [vmem:[%s13 + $0x20] sm:$0xff]
  %v3206 = vld [vmem:[%s13 + $0x28] sm:$0xff]
  %v3207 = vld [vmem:[%s13 + $0x30] sm:$0xff]
  %v3208 = vld [vmem:[%s13 + $0x38] sm:$0xff]
  %v3209 = vld [vmem:[%s14] sm:$0x3]
  %v3211 = vperm.slane %v3209, 0
  %v3212 = vperm.slane %v3209, 1
  %v3223 = vunpack.c.l.b16 %v3201
  %v3224 = vunpack.c.h.b16 %v3201
  %v3225 = vunpack.c.l.b16 %v3202
  %v3226 = vunpack.c.h.b16 %v3202
  %v3227 = vunpack.c.l.b16 %v3203
  %v3228 = vunpack.c.h.b16 %v3203
  %v3229 = vunpack.c.l.b16 %v3204
  %v3230 = vunpack.c.h.b16 %v3204
  %v3231 = vunpack.c.l.b16 %v3205
  %v3232 = vunpack.c.h.b16 %v3205
  %v3233 = vunpack.c.l.b16 %v3206
  %v3234 = vunpack.c.h.b16 %v3206
  %v3235 = vunpack.c.l.b16 %v3207
  %v3236 = vunpack.c.h.b16 %v3207
  %v3237 = vunpack.c.l.b16 %v3208
  %v3238 = vunpack.c.h.b16 %v3208
  %v3239 = vpack.c.b16 %v3225, %v3223
  %v3240 = vpack.c.b16 %v3226, %v3224
  %v3241 = vpack.c.b16 %v3229, %v3227
  %v3242 = vpack.c.b16 %v3230, %v3228
  %v3243 = vpack.c.b16 %v3233, %v3231
  %v3244 = vpack.c.b16 %v3234, %v3232
  %v3245 = vpack.c.b16 %v3237, %v3235
  %v3246 = vpack.c.b16 %v3238, %v3236
  %vm3255 = vcmask 523264
  %v3257 = vsel %vm3255, %v3199, 0
  %v3260 = vsel %vm3255, %v3200, 0
  %3262 = vmatpush.bf16.msra.mxu0 0
  %3263 = vmatpush.bf16.msra.mxu0 0
  %3264 = vmatpush.bf16.msra.mxu0 0
  %3265 = vmatpush.bf16.msra.mxu0 0
  %3266 = vmatpush.bf16.msra.mxu0 %v3245
  %3267 = vmatpush.bf16.msra.mxu0 %v3243
  %3268 = vmatpush.bf16.msra.mxu0 %v3241
  %3269 = vmatpush.bf16.msra.mxu0 %v3239
  %3270 = vmatmul.bf16.gmra.mxu0 %v3257
  %v3271 = vpop.f32.mrf.mxu0
  %v3272 = vadd.f32 %v3211, %v3271
  %v3273 = vpop.f32.mrf.mxu0
  %v3274 = vadd.f32 %v3211, %v3273
  %3275 = vmatmul.bf16.gmra.mxu0 %v3260
  %v3276 = vpop.f32.mrf.mxu0
  %v3277 = vadd.f32 %v3211, %v3276
  %v3278 = vpop.f32.mrf.mxu0
  %v3279 = vadd.f32 %v3211, %v3278
  %3280 = vdwg.mxu0
  %3281 = vmatpush.bf16.msra.mxu0 0
  %3282 = vmatpush.bf16.msra.mxu0 0
  %3283 = vmatpush.bf16.msra.mxu0 0
  %3284 = vmatpush.bf16.msra.mxu0 0
  %3285 = vmatpush.bf16.msra.mxu0 %v3246
  %3286 = vmatpush.bf16.msra.mxu0 %v3244
  %3287 = vmatpush.bf16.msra.mxu0 %v3242
  %3288 = vmatpush.bf16.msra.mxu0 %v3240
  %3289 = vmatmul.bf16.gmra.mxu0 %v3257
  %v3290 = vpop.f32.mrf.mxu0
  %v3291 = vadd.f32 %v3212, %v3290
  %v3292 = vpop.f32.mrf.mxu0
  %v3293 = vadd.f32 %v3212, %v3292
  %3294 = vmatmul.bf16.gmra.mxu0 %v3260
  %v3295 = vpop.f32.mrf.mxu0
  %v3296 = vadd.f32 %v3212, %v3295
  %v3297 = vpop.f32.mrf.mxu0
  %v3298 = vadd.f32 %v3212, %v3297
  %3299 = vdwg.mxu0
  %v3300 = vmax.f32 %v3272, 0.0
  %v3301 = vmax.f32 %v3291, 0.0
  %v3302 = vmax.f32 %v3274, 0.0
  %v3303 = vmax.f32 %v3293, 0.0
  %v3304 = vmax.f32 %v3277, 0.0
  %v3305 = vmax.f32 %v3296, 0.0
  %v3306 = vmax.f32 %v3279, 0.0
  %v3307 = vmax.f32 %v3298, 0.0
  %v3308 = vpack.c.bf16 %v3302, %v3300
  %v3309 = vpack.c.bf16 %v3303, %v3301
  %v3310 = vpack.c.bf16 %v3306, %v3304
  %v3311 = vpack.c.bf16 %v3307, %v3305
  %v3312 = vld [vmem:[%s15] sm:$0xff]
  %v3313 = vld [vmem:[%s15 + $0x8] sm:$0xff]
  %v3314 = vld [vmem:[%s15 + $0x10] sm:$0xff]
  %v3315 = vld [vmem:[%s15 + $0x18] sm:$0xff]
  %v3316 = vld [vmem:[%s15 + $0x20] sm:$0xff]
  %v3317 = vld [vmem:[%s15 + $0x28] sm:$0xff]
  %v3318 = vld [vmem:[%s15 + $0x30] sm:$0xff]
  %v3319 = vld [vmem:[%s15 + $0x38] sm:$0xff]
  %v3320 = vld [vmem:[%s15 + $0x40] sm:$0xff]
  %v3321 = vld [vmem:[%s15 + $0x48] sm:$0xff]
  %v3322 = vld [vmem:[%s15 + $0x50] sm:$0xff]
  %v3323 = vld [vmem:[%s15 + $0x58] sm:$0xff]
  %v3324 = vld [vmem:[%s15 + $0x60] sm:$0xff]
  %v3325 = vld [vmem:[%s15 + $0x68] sm:$0xff]
  %v3326 = vld [vmem:[%s15 + $0x70] sm:$0xff]
  %v3327 = vld [vmem:[%s15 + $0x78] sm:$0xff]
  %v3328 = vld [vmem:[%s15 + $0x80] sm:$0xff]
  %v3329 = vld [vmem:[%s15 + $0x88] sm:$0xff]
  %v3330 = vld [vmem:[%s15 + $0x90] sm:$0xff]
  %v3331 = vld [vmem:[%s15 + $0x98] sm:$0xff]
  %v3332 = vld [vmem:[%s15 + $0xa0] sm:$0xff]
  %v3333 = vld [vmem:[%s15 + $0xa8] sm:$0xff]
  %v3334 = vld [vmem:[%s15 + $0xb0] sm:$0xff]
  %v3335 = vld [vmem:[%s15 + $0xb8] sm:$0xff]
  %v3336 = vld [vmem:[%s15 + $0xc0] sm:$0xff]
  %v3337 = vld [vmem:[%s15 + $0xc8] sm:$0xff]
  %v3338 = vld [vmem:[%s15 + $0xd0] sm:$0xff]
  %v3339 = vld [vmem:[%s15 + $0xd8] sm:$0xff]
  %v3340 = vld [vmem:[%s15 + $0xe0] sm:$0xff]
  %v3341 = vld [vmem:[%s15 + $0xe8] sm:$0xff]
  %v3342 = vld [vmem:[%s15 + $0xf0] sm:$0xff]
  %v3343 = vld [vmem:[%s15 + $0xf8] sm:$0xff]
  %v3344 = vld [vmem:[%s15 + $0x100] sm:$0xff]
  %v3345 = vld [vmem:[%s15 + $0x108] sm:$0xff]
  %v3346 = vld [vmem:[%s15 + $0x110] sm:$0xff]
  %v3347 = vld [vmem:[%s15 + $0x118] sm:$0xff]
  %v3348 = vld [vmem:[%s15 + $0x120] sm:$0xff]
  %v3349 = vld [vmem:[%s15 + $0x128] sm:$0xff]
  %v3350 = vld [vmem:[%s15 + $0x130] sm:$0xff]
  %v3351 = vld [vmem:[%s15 + $0x138] sm:$0xff]
  %v3352 = vld [vmem:[%s15 + $0x140] sm:$0xff]
  %v3353 = vld [vmem:[%s15 + $0x148] sm:$0xff]
  %v3354 = vld [vmem:[%s15 + $0x150] sm:$0xff]
  %v3355 = vld [vmem:[%s15 + $0x158] sm:$0xff]
  %v3356 = vld [vmem:[%s15 + $0x160] sm:$0xff]
  %v3357 = vld [vmem:[%s15 + $0x168] sm:$0xff]
  %v3358 = vld [vmem:[%s15 + $0x170] sm:$0xff]
  %v3359 = vld [vmem:[%s15 + $0x178] sm:$0xff]
  %v3360 = vld [vmem:[%s15 + $0x180] sm:$0xff]
  %v3361 = vld [vmem:[%s15 + $0x188] sm:$0xff]
  %v3362 = vld [vmem:[%s15 + $0x190] sm:$0xff]
  %v3363 = vld [vmem:[%s15 + $0x198] sm:$0xff]
  %v3364 = vld [vmem:[%s15 + $0x1a0] sm:$0xff]
  %v3365 = vld [vmem:[%s15 + $0x1a8] sm:$0xff]
  %v3366 = vld [vmem:[%s15 + $0x1b0] sm:$0xff]
  %v3367 = vld [vmem:[%s15 + $0x1b8] sm:$0xff]
  %v3368 = vld [vmem:[%s15 + $0x1c0] sm:$0xff]
  %v3369 = vld [vmem:[%s15 + $0x1c8] sm:$0xff]
  %v3370 = vld [vmem:[%s15 + $0x1d0] sm:$0xff]
  %v3371 = vld [vmem:[%s15 + $0x1d8] sm:$0xff]
  %v3372 = vld [vmem:[%s15 + $0x1e0] sm:$0xff]
  %v3373 = vld [vmem:[%s15 + $0x1e8] sm:$0xff]
  %v3374 = vld [vmem:[%s15 + $0x1f0] sm:$0xff]
  %v3375 = vld [vmem:[%s15 + $0x1f8] sm:$0xff]
  %v3376 = vld [vmem:[%s16] sm:$0xf]
  %v3378 = vperm.slane %v3376, 0
  %v3379 = vperm.slane %v3376, 1
  %v3380 = vperm.slane %v3376, 2
  %v3381 = vperm.slane %v3376, 3
  %v3450 = vunpack.c.l.b16 %v3312
  %v3451 = vunpack.c.h.b16 %v3312
  %v3452 = vunpack.c.l.b16 %v3313
  %v3453 = vunpack.c.h.b16 %v3313
  %v3454 = vunpack.c.l.b16 %v3314
  %v3455 = vunpack.c.h.b16 %v3314
  %v3456 = vunpack.c.l.b16 %v3315
  %v3457 = vunpack.c.h.b16 %v3315
  %v3458 = vunpack.c.l.b16 %v3316
  %v3459 = vunpack.c.h.b16 %v3316
  %v3460 = vunpack.c.l.b16 %v3317
  %v3461 = vunpack.c.h.b16 %v3317
  %v3462 = vunpack.c.l.b16 %v3318
  %v3463 = vunpack.c.h.b16 %v3318
  %v3464 = vunpack.c.l.b16 %v3319
  %v3465 = vunpack.c.h.b16 %v3319
  %v3466 = vunpack.c.l.b16 %v3320
  %v3467 = vunpack.c.h.b16 %v3320
  %v3468 = vunpack.c.l.b16 %v3321
  %v3469 = vunpack.c.h.b16 %v3321
  %v3470 = vunpack.c.l.b16 %v3322
  %v3471 = vunpack.c.h.b16 %v3322
  %v3472 = vunpack.c.l.b16 %v3323
  %v3473 = vunpack.c.h.b16 %v3323
  %v3474 = vunpack.c.l.b16 %v3324
  %v3475 = vunpack.c.h.b16 %v3324
  %v3476 = vunpack.c.l.b16 %v3325
  %v3477 = vunpack.c.h.b16 %v3325
  %v3478 = vunpack.c.l.b16 %v3326
  %v3479 = vunpack.c.h.b16 %v3326
  %v3480 = vunpack.c.l.b16 %v3327
  %v3481 = vunpack.c.h.b16 %v3327
  %v3482 = vunpack.c.l.b16 %v3328
  %v3483 = vunpack.c.h.b16 %v3328
  %v3484 = vunpack.c.l.b16 %v3329
  %v3485 = vunpack.c.h.b16 %v3329
  %v3486 = vunpack.c.l.b16 %v3330
  %v3487 = vunpack.c.h.b16 %v3330
  %v3488 = vunpack.c.l.b16 %v3331
  %v3489 = vunpack.c.h.b16 %v3331
  %v3490 = vunpack.c.l.b16 %v3332
  %v3491 = vunpack.c.h.b16 %v3332
  %v3492 = vunpack.c.l.b16 %v3333
  %v3493 = vunpack.c.h.b16 %v3333
  %v3494 = vunpack.c.l.b16 %v3334
  %v3495 = vunpack.c.h.b16 %v3334
  %v3496 = vunpack.c.l.b16 %v3335
  %v3497 = vunpack.c.h.b16 %v3335
  %v3498 = vunpack.c.l.b16 %v3336
  %v3499 = vunpack.c.h.b16 %v3336
  %v3500 = vunpack.c.l.b16 %v3337
  %v3501 = vunpack.c.h.b16 %v3337
  %v3502 = vunpack.c.l.b16 %v3338
  %v3503 = vunpack.c.h.b16 %v3338
  %v3504 = vunpack.c.l.b16 %v3339
  %v3505 = vunpack.c.h.b16 %v3339
  %v3506 = vunpack.c.l.b16 %v3340
  %v3507 = vunpack.c.h.b16 %v3340
  %v3508 = vunpack.c.l.b16 %v3341
  %v3509 = vunpack.c.h.b16 %v3341
  %v3510 = vunpack.c.l.b16 %v3342
  %v3511 = vunpack.c.h.b16 %v3342
  %v3512 = vunpack.c.l.b16 %v3343
  %v3513 = vunpack.c.h.b16 %v3343
  %v3514 = vunpack.c.l.b16 %v3344
  %v3515 = vunpack.c.h.b16 %v3344
  %v3516 = vunpack.c.l.b16 %v3345
  %v3517 = vunpack.c.h.b16 %v3345
  %v3518 = vunpack.c.l.b16 %v3346
  %v3519 = vunpack.c.h.b16 %v3346
  %v3520 = vunpack.c.l.b16 %v3347
  %v3521 = vunpack.c.h.b16 %v3347
  %v3522 = vunpack.c.l.b16 %v3348
  %v3523 = vunpack.c.h.b16 %v3348
  %v3524 = vunpack.c.l.b16 %v3349
  %v3525 = vunpack.c.h.b16 %v3349
  %v3526 = vunpack.c.l.b16 %v3350
  %v3527 = vunpack.c.h.b16 %v3350
  %v3528 = vunpack.c.l.b16 %v3351
  %v3529 = vunpack.c.h.b16 %v3351
  %v3530 = vunpack.c.l.b16 %v3352
  %v3531 = vunpack.c.h.b16 %v3352
  %v3532 = vunpack.c.l.b16 %v3353
  %v3533 = vunpack.c.h.b16 %v3353
  %v3534 = vunpack.c.l.b16 %v3354
  %v3535 = vunpack.c.h.b16 %v3354
  %v3536 = vunpack.c.l.b16 %v3355
  %v3537 = vunpack.c.h.b16 %v3355
  %v3538 = vunpack.c.l.b16 %v3356
  %v3539 = vunpack.c.h.b16 %v3356
  %v3540 = vunpack.c.l.b16 %v3357
  %v3541 = vunpack.c.h.b16 %v3357
  %v3542 = vunpack.c.l.b16 %v3358
  %v3543 = vunpack.c.h.b16 %v3358
  %v3544 = vunpack.c.l.b16 %v3359
  %v3545 = vunpack.c.h.b16 %v3359
  %v3546 = vunpack.c.l.b16 %v3360
  %v3547 = vunpack.c.h.b16 %v3360
  %v3548 = vunpack.c.l.b16 %v3361
  %v3549 = vunpack.c.h.b16 %v3361
  %v3550 = vunpack.c.l.b16 %v3362
  %v3551 = vunpack.c.h.b16 %v3362
  %v3552 = vunpack.c.l.b16 %v3363
  %v3553 = vunpack.c.h.b16 %v3363
  %v3554 = vunpack.c.l.b16 %v3364
  %v3555 = vunpack.c.h.b16 %v3364
  %v3556 = vunpack.c.l.b16 %v3365
  %v3557 = vunpack.c.h.b16 %v3365
  %v3558 = vunpack.c.l.b16 %v3366
  %v3559 = vunpack.c.h.b16 %v3366
  %v3560 = vunpack.c.l.b16 %v3367
  %v3561 = vunpack.c.h.b16 %v3367
  %v3562 = vunpack.c.l.b16 %v3368
  %v3563 = vunpack.c.h.b16 %v3368
  %v3564 = vunpack.c.l.b16 %v3369
  %v3565 = vunpack.c.h.b16 %v3369
  %v3566 = vunpack.c.l.b16 %v3370
  %v3567 = vunpack.c.h.b16 %v3370
  %v3568 = vunpack.c.l.b16 %v3371
  %v3569 = vunpack.c.h.b16 %v3371
  %v3570 = vunpack.c.l.b16 %v3372
  %v3571 = vunpack.c.h.b16 %v3372
  %v3572 = vunpack.c.l.b16 %v3373
  %v3573 = vunpack.c.h.b16 %v3373
  %v3574 = vunpack.c.l.b16 %v3374
  %v3575 = vunpack.c.h.b16 %v3374
  %v3576 = vunpack.c.l.b16 %v3375
  %v3577 = vunpack.c.h.b16 %v3375
  %v3578 = vpack.c.b16 %v3454, %v3450
  %v3579 = vpack.c.b16 %v3455, %v3451
  %v3580 = vpack.c.b16 %v3456, %v3452
  %v3581 = vpack.c.b16 %v3457, %v3453
  %v3582 = vpack.c.b16 %v3462, %v3458
  %v3583 = vpack.c.b16 %v3463, %v3459
  %v3584 = vpack.c.b16 %v3464, %v3460
  %v3585 = vpack.c.b16 %v3465, %v3461
  %v3586 = vpack.c.b16 %v3470, %v3466
  %v3587 = vpack.c.b16 %v3471, %v3467
  %v3588 = vpack.c.b16 %v3472, %v3468
  %v3589 = vpack.c.b16 %v3473, %v3469
  %v3590 = vpack.c.b16 %v3478, %v3474
  %v3591 = vpack.c.b16 %v3479, %v3475
  %v3592 = vpack.c.b16 %v3480, %v3476
  %v3593 = vpack.c.b16 %v3481, %v3477
  %v3594 = vpack.c.b16 %v3486, %v3482
  %v3595 = vpack.c.b16 %v3487, %v3483
  %v3596 = vpack.c.b16 %v3488, %v3484
  %v3597 = vpack.c.b16 %v3489, %v3485
  %v3598 = vpack.c.b16 %v3494, %v3490
  %v3599 = vpack.c.b16 %v3495, %v3491
  %v3600 = vpack.c.b16 %v3496, %v3492
  %v3601 = vpack.c.b16 %v3497, %v3493
  %v3602 = vpack.c.b16 %v3502, %v3498
  %v3603 = vpack.c.b16 %v3503, %v3499
  %v3604 = vpack.c.b16 %v3504, %v3500
  %v3605 = vpack.c.b16 %v3505, %v3501
  %v3606 = vpack.c.b16 %v3510, %v3506
  %v3607 = vpack.c.b16 %v3511, %v3507
  %v3608 = vpack.c.b16 %v3512, %v3508
  %v3609 = vpack.c.b16 %v3513, %v3509
  %v3610 = vpack.c.b16 %v3518, %v3514
  %v3611 = vpack.c.b16 %v3519, %v3515
  %v3612 = vpack.c.b16 %v3520, %v3516
  %v3613 = vpack.c.b16 %v3521, %v3517
  %v3614 = vpack.c.b16 %v3526, %v3522
  %v3615 = vpack.c.b16 %v3527, %v3523
  %v3616 = vpack.c.b16 %v3528, %v3524
  %v3617 = vpack.c.b16 %v3529, %v3525
  %v3618 = vpack.c.b16 %v3534, %v3530
  %v3619 = vpack.c.b16 %v3535, %v3531
  %v3620 = vpack.c.b16 %v3536, %v3532
  %v3621 = vpack.c.b16 %v3537, %v3533
  %v3622 = vpack.c.b16 %v3542, %v3538
  %v3623 = vpack.c.b16 %v3543, %v3539
  %v3624 = vpack.c.b16 %v3544, %v3540
  %v3625 = vpack.c.b16 %v3545, %v3541
  %v3626 = vpack.c.b16 %v3550, %v3546
  %v3627 = vpack.c.b16 %v3551, %v3547
  %v3628 = vpack.c.b16 %v3552, %v3548
  %v3629 = vpack.c.b16 %v3553, %v3549
  %v3630 = vpack.c.b16 %v3558, %v3554
  %v3631 = vpack.c.b16 %v3559, %v3555
  %v3632 = vpack.c.b16 %v3560, %v3556
  %v3633 = vpack.c.b16 %v3561, %v3557
  %v3634 = vpack.c.b16 %v3566, %v3562
  %v3635 = vpack.c.b16 %v3567, %v3563
  %v3636 = vpack.c.b16 %v3568, %v3564
  %v3637 = vpack.c.b16 %v3569, %v3565
  %v3638 = vpack.c.b16 %v3574, %v3570
  %v3639 = vpack.c.b16 %v3575, %v3571
  %v3640 = vpack.c.b16 %v3576, %v3572
  %v3641 = vpack.c.b16 %v3577, %v3573
  %3706 = vmatpush.bf16.msra.mxu0 %v3606
  %3707 = vmatpush.bf16.msra.mxu0 %v3602
  %3708 = vmatpush.bf16.msra.mxu0 %v3598
  %3709 = vmatpush.bf16.msra.mxu0 %v3594
  %3710 = vmatpush.bf16.msra.mxu0 %v3590
  %3711 = vmatpush.bf16.msra.mxu0 %v3586
  %3712 = vmatpush.bf16.msra.mxu0 %v3582
  %3713 = vmatpush.bf16.msra.mxu0 %v3578
  %3714 = vmatmul.bf16.gmra.mxu0 %v3308
  %v3715 = vpop.f32.mrf.mxu0
  %v3716 = vadd.f32 %v3378, %v3715
  %v3717 = vpop.f32.mrf.mxu0
  %v3718 = vadd.f32 %v3378, %v3717
  %3719 = vmatmul.bf16.gmra.mxu0 %v3310
  %v3720 = vpop.f32.mrf.mxu0
  %v3721 = vadd.f32 %v3378, %v3720
  %v3722 = vpop.f32.mrf.mxu0
  %v3723 = vadd.f32 %v3378, %v3722
  %3724 = vdwg.mxu0
  %3725 = vmatpush.bf16.msra.mxu0 %v3638
  %3726 = vmatpush.bf16.msra.mxu0 %v3634
  %3727 = vmatpush.bf16.msra.mxu0 %v3630
  %3728 = vmatpush.bf16.msra.mxu0 %v3626
  %3729 = vmatpush.bf16.msra.mxu0 %v3622
  %3730 = vmatpush.bf16.msra.mxu0 %v3618
  %3731 = vmatpush.bf16.msra.mxu0 %v3614
  %3732 = vmatpush.bf16.msra.mxu0 %v3610
  %3733 = vmatmul.bf16.gmra.mxu0 %v3309
  %v3734 = vpop.f32.mrf.mxu0
  %v3735 = vadd.f32 %v3716, %v3734
  %v3736 = vpop.f32.mrf.mxu0
  %v3737 = vadd.f32 %v3718, %v3736
  %3738 = vmatmul.bf16.gmra.mxu0 %v3311
  %v3739 = vpop.f32.mrf.mxu0
  %v3740 = vadd.f32 %v3721, %v3739
  %v3741 = vpop.f32.mrf.mxu0
  %v3742 = vadd.f32 %v3723, %v3741
  %3743 = vdwg.mxu0
  %3744 = vmatpush.bf16.msra.mxu0 %v3607
  %3745 = vmatpush.bf16.msra.mxu0 %v3603
  %3746 = vmatpush.bf16.msra.mxu0 %v3599
  %3747 = vmatpush.bf16.msra.mxu0 %v3595
  %3748 = vmatpush.bf16.msra.mxu0 %v3591
  %3749 = vmatpush.bf16.msra.mxu0 %v3587
  %3750 = vmatpush.bf16.msra.mxu0 %v3583
  %3751 = vmatpush.bf16.msra.mxu0 %v3579
  %3752 = vmatmul.bf16.gmra.mxu0 %v3308
  %v3753 = vpop.f32.mrf.mxu0
  %v3754 = vadd.f32 %v3379, %v3753
  %v3755 = vpop.f32.mrf.mxu0
  %v3756 = vadd.f32 %v3379, %v3755
  %3757 = vmatmul.bf16.gmra.mxu0 %v3310
  %v3758 = vpop.f32.mrf.mxu0
  %v3759 = vadd.f32 %v3379, %v3758
  %v3760 = vpop.f32.mrf.mxu0
  %v3761 = vadd.f32 %v3379, %v3760
  %3762 = vdwg.mxu0
  %3763 = vmatpush.bf16.msra.mxu0 %v3639
  %3764 = vmatpush.bf16.msra.mxu0 %v3635
  %3765 = vmatpush.bf16.msra.mxu0 %v3631
  %3766 = vmatpush.bf16.msra.mxu0 %v3627
  %3767 = vmatpush.bf16.msra.mxu0 %v3623
  %3768 = vmatpush.bf16.msra.mxu0 %v3619
  %3769 = vmatpush.bf16.msra.mxu0 %v3615
  %3770 = vmatpush.bf16.msra.mxu0 %v3611
  %3771 = vmatmul.bf16.gmra.mxu0 %v3309
  %v3772 = vpop.f32.mrf.mxu0
  %v3773 = vadd.f32 %v3754, %v3772
  %v3774 = vpop.f32.mrf.mxu0
  %v3775 = vadd.f32 %v3756, %v3774
  %3776 = vmatmul.bf16.gmra.mxu0 %v3311
  %v3777 = vpop.f32.mrf.mxu0
  %v3778 = vadd.f32 %v3759, %v3777
  %v3779 = vpop.f32.mrf.mxu0
  %v3780 = vadd.f32 %v3761, %v3779
  %3781 = vdwg.mxu0
  %3782 = vmatpush.bf16.msra.mxu0 %v3608
  %3783 = vmatpush.bf16.msra.mxu0 %v3604
  %3784 = vmatpush.bf16.msra.mxu0 %v3600
  %3785 = vmatpush.bf16.msra.mxu0 %v3596
  %3786 = vmatpush.bf16.msra.mxu0 %v3592
  %3787 = vmatpush.bf16.msra.mxu0 %v3588
  %3788 = vmatpush.bf16.msra.mxu0 %v3584
  %3789 = vmatpush.bf16.msra.mxu0 %v3580
  %3790 = vmatmul.bf16.gmra.mxu0 %v3308
  %v3791 = vpop.f32.mrf.mxu0
  %v3792 = vadd.f32 %v3380, %v3791
  %v3793 = vpop.f32.mrf.mxu0
  %v3794 = vadd.f32 %v3380, %v3793
  %3795 = vmatmul.bf16.gmra.mxu0 %v3310
  %v3796 = vpop.f32.mrf.mxu0
  %v3797 = vadd.f32 %v3380, %v3796
  %v3798 = vpop.f32.mrf.mxu0
  %v3799 = vadd.f32 %v3380, %v3798
  %3800 = vdwg.mxu0
  %3801 = vmatpush.bf16.msra.mxu0 %v3640
  %3802 = vmatpush.bf16.msra.mxu0 %v3636
  %3803 = vmatpush.bf16.msra.mxu0 %v3632
  %3804 = vmatpush.bf16.msra.mxu0 %v3628
  %3805 = vmatpush.bf16.msra.mxu0 %v3624
  %3806 = vmatpush.bf16.msra.mxu0 %v3620
  %3807 = vmatpush.bf16.msra.mxu0 %v3616
  %3808 = vmatpush.bf16.msra.mxu0 %v3612
  %3809 = vmatmul.bf16.gmra.mxu0 %v3309
  %v3810 = vpop.f32.mrf.mxu0
  %v3811 = vadd.f32 %v3792, %v3810
  %v3812 = vpop.f32.mrf.mxu0
  %v3813 = vadd.f32 %v3794, %v3812
  %3814 = vmatmul.bf16.gmra.mxu0 %v3311
  %v3815 = vpop.f32.mrf.mxu0
  %v3816 = vadd.f32 %v3797, %v3815
  %v3817 = vpop.f32.mrf.mxu0
  %v3818 = vadd.f32 %v3799, %v3817
  %3819 = vdwg.mxu0
  %3820 = vmatpush.bf16.msra.mxu0 %v3609
  %3821 = vmatpush.bf16.msra.mxu0 %v3605
  %3822 = vmatpush.bf16.msra.mxu0 %v3601
  %3823 = vmatpush.bf16.msra.mxu0 %v3597
  %3824 = vmatpush.bf16.msra.mxu0 %v3593
  %3825 = vmatpush.bf16.msra.mxu0 %v3589
  %3826 = vmatpush.bf16.msra.mxu0 %v3585
  %3827 = vmatpush.bf16.msra.mxu0 %v3581
  %3828 = vmatmul.bf16.gmra.mxu0 %v3308
  %v3829 = vpop.f32.mrf.mxu0
  %v3830 = vadd.f32 %v3381, %v3829
  %v3831 = vpop.f32.mrf.mxu0
  %v3832 = vadd.f32 %v3381, %v3831
  %3833 = vmatmul.bf16.gmra.mxu0 %v3310
  %v3834 = vpop.f32.mrf.mxu0
  %v3835 = vadd.f32 %v3381, %v3834
  %v3836 = vpop.f32.mrf.mxu0
  %v3837 = vadd.f32 %v3381, %v3836
  %3838 = vdwg.mxu0
  %3839 = vmatpush.bf16.msra.mxu0 %v3641
  %3840 = vmatpush.bf16.msra.mxu0 %v3637
  %3841 = vmatpush.bf16.msra.mxu0 %v3633
  %3842 = vmatpush.bf16.msra.mxu0 %v3629
  %3843 = vmatpush.bf16.msra.mxu0 %v3625
  %3844 = vmatpush.bf16.msra.mxu0 %v3621
  %3845 = vmatpush.bf16.msra.mxu0 %v3617
  %3846 = vmatpush.bf16.msra.mxu0 %v3613
  %3847 = vmatmul.bf16.gmra.mxu0 %v3309
  %v3848 = vpop.f32.mrf.mxu0
  %v3849 = vadd.f32 %v3830, %v3848
  %v3850 = vpop.f32.mrf.mxu0
  %v3851 = vadd.f32 %v3832, %v3850
  %3852 = vmatmul.bf16.gmra.mxu0 %v3311
  %v3853 = vpop.f32.mrf.mxu0
  %v3854 = vadd.f32 %v3835, %v3853
  %v3855 = vpop.f32.mrf.mxu0
  %v3856 = vadd.f32 %v3837, %v3855
  %3857 = vdwg.mxu0
  %v3858 = vld [vmem:[%s2] sm:$0xff]
  %v3859 = vld [vmem:[%s2 + $0x8] sm:$0xff]
  %v3860 = vld [vmem:[%s2 + $0x10] sm:$0xff]
  %v3861 = vld [vmem:[%s2 + $0x18] sm:$0xff]
  %v3862 = vld [vmem:[%s2 + $0x20] sm:$0xff]
  %v3863 = vld [vmem:[%s2 + $0x28] sm:$0xff]
  %v3864 = vld [vmem:[%s2 + $0x30] sm:$0xff]
  %v3865 = vld [vmem:[%s2 + $0x38] sm:$0xff]
  %v3866 = vld [vmem:[%s2 + $0x40] sm:$0xff]
  %v3867 = vld [vmem:[%s2 + $0x48] sm:$0xff]
  %v3868 = vld [vmem:[%s2 + $0x50] sm:$0xff]
  %v3869 = vld [vmem:[%s2 + $0x58] sm:$0xff]
  %v3870 = vld [vmem:[%s2 + $0x60] sm:$0xff]
  %v3871 = vld [vmem:[%s2 + $0x68] sm:$0xff]
  %v3872 = vld [vmem:[%s2 + $0x70] sm:$0xff]
  %v3873 = vld [vmem:[%s2 + $0x78] sm:$0xff]
  %v3874 = vsub.f32 %v3735, %v3858
  %v3875 = vsub.f32 %v3773, %v3859
  %v3876 = vsub.f32 %v3811, %v3860
  %v3877 = vsub.f32 %v3849, %v3861
  %v3878 = vsub.f32 %v3737, %v3862
  %v3879 = vsub.f32 %v3775, %v3863
  %v3880 = vsub.f32 %v3813, %v3864
  %v3881 = vsub.f32 %v3851, %v3865
  %v3882 = vsub.f32 %v3740, %v3866
  %v3883 = vsub.f32 %v3778, %v3867
  %v3884 = vsub.f32 %v3816, %v3868
  %v3885 = vsub.f32 %v3854, %v3869
  %v3886 = vsub.f32 %v3742, %v3870
  %v3887 = vsub.f32 %v3780, %v3871
  %v3888 = vsub.f32 %v3818, %v3872
  %v3889 = vsub.f32 %v3856, %v3873
  %v3890 = vmul.f32 %v3874, %v3874
  %v3891 = vmul.f32 %v3875, %v3875
  %v3892 = vmul.f32 %v3876, %v3876
  %v3893 = vmul.f32 %v3877, %v3877
  %v3894 = vmul.f32 %v3878, %v3878
  %v3895 = vmul.f32 %v3879, %v3879
  %v3896 = vmul.f32 %v3880, %v3880
  %v3897 = vmul.f32 %v3881, %v3881
  %v3898 = vmul.f32 %v3882, %v3882
  %v3899 = vmul.f32 %v3883, %v3883
  %v3900 = vmul.f32 %v3884, %v3884
  %v3901 = vmul.f32 %v3885, %v3885
  %v3902 = vmul.f32 %v3886, %v3886
  %v3903 = vmul.f32 %v3887, %v3887
  %v3904 = vmul.f32 %v3888, %v3888
  %v3905 = vmul.f32 %v3889, %v3889
  %v3906 = vadd.f32 %v3890, %v3891
  %v3907 = vadd.f32 %v3906, %v3892
  %v3908 = vadd.f32 %v3907, %v3893
  %v3909 = vadd.f32 %v3908, %v3894
  %v3910 = vadd.f32 %v3909, %v3895
  %v3911 = vadd.f32 %v3910, %v3896
  %v3912 = vadd.f32 %v3911, %v3897
  %v3913 = vadd.f32 %v3912, %v3898
  %v3914 = vadd.f32 %v3913, %v3899
  %v3915 = vadd.f32 %v3914, %v3900
  %v3916 = vadd.f32 %v3915, %v3901
  %v3917 = vadd.f32 %v3916, %v3902
  %v3918 = vadd.f32 %v3917, %v3903
  %v3919 = vadd.f32 %v3918, %v3904
  %v3920 = vadd.f32 %v3919, %v3905
  %3921 = vadd.xlane.f32.xlu0 %v3920
  %v3922 = vpop.xlane.xlu0 %3921
  %v3923 = vrot.slane %v3922, 4
  %v3924 = vadd.f32 %v3922, %v3923
  %v3925 = vrot.slane %v3924, 2
  %v3926 = vadd.f32 %v3924, %v3925
  %v3927 = vrot.slane %v3926, 1
  %v3928 = vadd.f32 %v3926, %v3927
  %s3929 = vtos %v3928
  %v3930 = vstv %s3929
  %3931 = vst [vmem:[%s18] sm:$0x1] %v3930
  // Predicated region
  $region70: #{vision_ssl_forward.3} parent=0 // pred_check
    _
  $region71: #{vision_ssl_forward.3} parent=0 // pred_check_branch
    %3933 = sbr.rel (0) target = $region73
  $region72: #{vision_ssl_forward.3} parent=0 // pred_region
    _
  $region73: #{vision_ssl_forward.3} parent=0 // pred_fallthru
    _
  // Predicated region
  $region74: #{vision_ssl_forward.3} parent=0 // pred_check
    _
  $region75: #{vision_ssl_forward.3} parent=0 // pred_check_branch
    %3935 = sbr.rel (0) target = $region77
  $region76: #{vision_ssl_forward.3} parent=0 // pred_region
    _
  $region77: #{vision_ssl_forward.3} parent=0 // pred_fallthru
    _
  // Predicated region
  $region78: #{vision_ssl_forward.3} parent=0 // pred_check
    _
  $region79: #{vision_ssl_forward.3} parent=0 // pred_check_branch
    %3937 = sbr.rel (0) target = $region81
  $region80: #{vision_ssl_forward.3} parent=0 // pred_region
    _
  $region81: #{vision_ssl_forward.3} parent=0 // pred_fallthru
    _
  // Predicated region
  $region82: #{vision_ssl_forward.3} parent=0 // pred_check
    _
  $region83: #{vision_ssl_forward.3} parent=0 // pred_check_branch
    %3939 = sbr.rel (0) target = $region85
  $region84: #{vision_ssl_forward.3} parent=0 // pred_region
    _
  $region85: #{vision_ssl_forward.3} parent=0 // pred_fallthru
    _

</llo_original>
